<compile_context>
chip_gen: v7x
topology: tpu7x:2x2x1
jax: 0.10.0
libtpu: 0.0.40
codegen_flags: <defaults>
</compile_context>

<pallas_src>
import jax
import jax.numpy as jnp
from jax.experimental import pallas as pl
from jax.experimental.pallas import tpu as pltpu

# ----------------------------- model config (small, synthetic) ---------------
BATCH = 2
SEQ = 8
HIDDEN = 32
HEADS = 2
HEAD_DIM = HIDDEN // HEADS
INTER = 64
LAYERS = 2
VOCAB = 64           # num_tokens after resize_token_embeddings
MAX_POS = 16
NUM_LABELS = 5
LANE_PAD = 128       # lane-dense classifier output (NUM_LABELS padded to 128)
LN_EPS = 1e-12       # BERT LayerNorm eps
NUM_TOWERS = 2       # wiki, pubmed
ROWS = BATCH * SEQ


# ----------------------------- in-kernel helpers ------------------------------
def _ln(x, g, b):
    mean = jnp.mean(x, axis=-1, keepdims=True)
    var = jnp.mean((x - mean) ** 2, axis=-1, keepdims=True)
    return (x - mean) * jax.lax.rsqrt(var + LN_EPS) * g + b


def _gelu(x):
    # TODO(synk): HF BERT uses exact (erf) gelu; tanh approximation used here
    # because erf has no guaranteed Mosaic lowering.
    c = 0.7978845608028654  # sqrt(2/pi)
    return 0.5 * x * (1.0 + jnp.tanh(c * (x + 0.044715 * x * x * x)))


# ----------------------------- fully fused per-tower kernel -------------------
def _fused_kernel(ids_ref, men_ref, maskb_ref,
                  wemb_ref, posty_ref, eg_ref, eb_ref,
                  qkvw_ref, qkvb_ref, aow_ref, aob_ref,
                  l1g_ref, l1b_ref, iw_ref, ib_ref,
                  fow_ref, fob_ref, l2g_ref, l2b_ref,
                  clsw_ref, clsb_ref, o_ref):
    scale = 1.0 / (HEAD_DIM ** 0.5)

    # ---- embedding: word gather as one-hot @ table (MXU), + pos/type, + LN ----
    ids = ids_ref[...]                                              # [ROWS, 1] i32
    onehot = (jax.lax.broadcasted_iota(jnp.int32, (ROWS, VOCAB), 1)
              == ids).astype(jnp.float32)                           # [ROWS, V]
    x = jnp.dot(onehot, wemb_ref[0], preferred_element_type=jnp.float32)
    x = x + posty_ref[0]                          # position + token-type-0 embeds
    x = _ln(x, eg_ref[0], eb_ref[0])              # embedding LN (dropout = id)

    mask_bias = maskb_ref[...]                    # [ROWS, ROWS] additive bias,
                                                  # block-diagonal + key padding,
                                                  # built once in the wrapper.

    for l in range(LAYERS):
        # --- fused QKV projection (bf16 operands, f32 accumulate) ---
        qkv = (jnp.dot(x.astype(jnp.bfloat16), qkvw_ref[0, l],
                       preferred_element_type=jnp.float32)
               + qkvb_ref[0, l])                                    # [ROWS, 3H] f32

        aow_l = aow_ref[0, l]                                       # [H, H] bf16
        attn = jnp.zeros((ROWS, HIDDEN), jnp.float32)
        for h in range(HEADS):
            lo = h * HEAD_DIM
            qh = qkv[:, lo:lo + HEAD_DIM].astype(jnp.bfloat16)          # [ROWS, Dh]
            kh = qkv[:, HIDDEN + lo:HIDDEN + lo + HEAD_DIM].astype(jnp.bfloat16)
            vh = qkv[:, 2 * HIDDEN + lo:2 * HIDDEN + lo + HEAD_DIM].astype(jnp.bfloat16)

            # flat [ROWS, ROWS] scores; cross-batch / padded keys masked to -1e4
            s = jax.lax.dot_general(qh, kh, (((1,), (1,)), ((), ())),
                                    preferred_element_type=jnp.float32)
            s = s * scale + mask_bias
            s = s - jnp.max(s, axis=-1, keepdims=True)
            p = jnp.exp(s)
            p = p * pl.reciprocal(jnp.sum(p, axis=-1, keepdims=True), approx=True)

            ctx = jnp.dot(p.astype(jnp.bfloat16), vh,
                          preferred_element_type=jnp.float32)           # [ROWS, Dh]
            # per-head split of the out-projection (no head concat relayout)
            attn = attn + jnp.dot(ctx.astype(jnp.bfloat16),
                                  aow_l[lo:lo + HEAD_DIM, :],
                                  preferred_element_type=jnp.float32)

        x = _ln(attn + aob_ref[0, l] + x, l1g_ref[0, l], l1b_ref[0, l])

        # --- FFN: GELU(x @ Wi + bi) @ Wo + bo, residual + LayerNorm ---
        inter = _gelu(jnp.dot(x.astype(jnp.bfloat16), iw_ref[0, l],
                              preferred_element_type=jnp.float32) + ib_ref[0, l])
        ffn = (jnp.dot(inter.astype(jnp.bfloat16), fow_ref[0, l],
                       preferred_element_type=jnp.float32) + fob_ref[0, l])
        x = _ln(ffn + x, l2g_ref[0, l], l2b_ref[0, l])

    # ---- mention-row gather (one-hot @ seq_out) + this tower's classifier half
    men_rows = (men_ref[...]
                + jax.lax.broadcasted_iota(jnp.int32, (BATCH, 1), 0) * SEQ)  # [B,1]
    sel = (jax.lax.broadcasted_iota(jnp.int32, (BATCH, ROWS), 1)
           == men_rows).astype(jnp.float32)                                  # [B,ROWS]
    pooled = jnp.dot(sel, x, preferred_element_type=jnp.float32)             # [B, H]
    part = (jnp.dot(pooled.astype(jnp.bfloat16), clsw_ref[0],
                    preferred_element_type=jnp.float32)
            + clsb_ref[0])                                       # [B, 128] lane-dense
    o_ref[0] = part.astype(o_ref.dtype)


def _per_tower_spec(full_shape):
    rest = tuple(full_shape[1:])
    zeros = (0,) * len(rest)
    return pl.BlockSpec((1,) + rest, lambda t, _z=zeros: (t,) + _z)


def _shared_spec(full_shape):
    zeros = (0,) * len(full_shape)
    return pl.BlockSpec(tuple(full_shape), lambda t, _z=zeros: _z)


def run_fused(packed, ids2d, men2d, mask_bias):
    """One pallas_call = whole BertCombined forward (both towers).
    Returns per-tower partial logits [NUM_TOWERS, BATCH, LANE_PAD]."""
    args = (
        ids2d, men2d, mask_bias,
        packed["word_emb"], packed["posty"],
        packed["emb_ln_g"], packed["emb_ln_b"],
        packed["qkv_w"], packed["qkv_b"],
        packed["o_w"], packed["o_b"],
        packed["ln1_g"], packed["ln1_b"],
        packed["i_w"], packed["i_b"],
        packed["out_w"], packed["out_b"],
        packed["ln2_g"], packed["ln2_b"],
        packed["cls_w"], packed["cls_b"],
    )
    in_specs = ([_shared_spec(a.shape) for a in args[:3]]
                + [_per_tower_spec(a.shape) for a in args[3:]])
    return pl.pallas_call(
        _fused_kernel,
        out_shape=jax.ShapeDtypeStruct((NUM_TOWERS, BATCH, LANE_PAD), jnp.float32),
        grid=(NUM_TOWERS,),
        in_specs=in_specs,
        out_specs=_per_tower_spec((NUM_TOWERS, BATCH, LANE_PAD)),
        compiler_params=pltpu.CompilerParams(
            # towers shard across the two TensorCores on v7x; on single-TC
            # v5e/v6e this is just two cheap sequential grid steps.
            dimension_semantics=("parallel",)),
    )(*args)


# ----------------------------- BertCombined forward --------------------------
@jax.jit
def bert_combined_forward(packed, input_ids, attention_mask, mention_pos_idx):
    # Tiny shape plumbing only -- everything heavy happens inside the kernel.
    ids2d = input_ids.reshape(ROWS, 1).astype(jnp.int32)
    men2d = mention_pos_idx.reshape(BATCH, 1).astype(jnp.int32)

    # Additive attention bias built ONCE per call: block-diagonal over batches
    # (so flat [ROWS,ROWS] attention never mixes batches) + key-padding mask.
    mask_flat = attention_mask.reshape(ROWS).astype(jnp.int32)
    bid = jnp.repeat(jnp.arange(BATCH, dtype=jnp.int32), SEQ)          # [ROWS]
    keep = jnp.logical_and(bid[:, None] == bid[None, :], mask_flat[None, :] > 0)
    mask_bias = jnp.where(keep, 0.0, -10000.0).astype(jnp.float32)     # [ROWS,ROWS]

    part = run_fused(packed, ids2d, men2d, mask_bias)                  # [2,B,128]
    # wiki half + pubmed half of the classifier (bias packed into tower 0).
    logits = (part[0] + part[1])[:, :NUM_LABELS]
    return logits


# ----------------------------- parameter init & packing ----------------------
def _init_layer(key):
    ks = jax.random.split(key, 6)
    n = lambda k, shp: (0.02 * jax.random.normal(k, shp, jnp.float32))
    return {
        "q_w": n(ks[0], (HIDDEN, HIDDEN)), "q_b": jnp.zeros((HIDDEN,), jnp.float32),
        "k_w": n(ks[1], (HIDDEN, HIDDEN)), "k_b": jnp.zeros((HIDDEN,), jnp.float32),
        "v_w": n(ks[2], (HIDDEN, HIDDEN)), "v_b": jnp.zeros((HIDDEN,), jnp.float32),
        "o_w": n(ks[3], (HIDDEN, HIDDEN)), "o_b": jnp.zeros((HIDDEN,), jnp.float32),
        "ln1_g": jnp.ones((HIDDEN,), jnp.float32), "ln1_b": jnp.zeros((HIDDEN,), jnp.float32),
        "i_w": n(ks[4], (HIDDEN, INTER)), "i_b": jnp.zeros((INTER,), jnp.float32),
        "out_w": n(ks[5], (INTER, HIDDEN)), "out_b": jnp.zeros((HIDDEN,), jnp.float32),
        "ln2_g": jnp.ones((HIDDEN,), jnp.float32), "ln2_b": jnp.zeros((HIDDEN,), jnp.float32),
    }


def _init_bert(key):
    ks = jax.random.split(key, 3 + LAYERS)
    n = lambda k, shp: (0.02 * jax.random.normal(k, shp, jnp.float32))
    return {
        "word_emb": n(ks[0], (VOCAB, HIDDEN)),
        "pos_emb": n(ks[1], (MAX_POS, HIDDEN)),
        "type_emb": n(ks[2], (2, HIDDEN)),
        "emb_ln_g": jnp.ones((HIDDEN,), jnp.float32),
        "emb_ln_b": jnp.zeros((HIDDEN,), jnp.float32),
        "layers": [_init_layer(ks[3 + i]) for i in range(LAYERS)],
    }


def init_params(key):
    k_wiki, k_pub, k_cls = jax.random.split(key, 3)
    towers = [_init_bert(k_wiki), _init_bert(k_pub)]
    cls_w = 0.02 * jax.random.normal(k_cls, (2 * HIDDEN, NUM_LABELS), jnp.float32)
    cls_b = jnp.zeros((NUM_LABELS,), jnp.float32)
    return towers, cls_w, cls_b


def pack_tower_params(towers, cls_w, cls_b):
    """Stack the two towers into [TOWERS, LAYERS, ...] arrays.  Q/K/V weights
    are fused into [H, 3H]; matmul weights are stored bf16 (f32 accumulate in
    kernel); position + token-type-0 embeddings are pre-added into a per-row
    slab; the classifier is split per tower and lane-padded to 128."""
    bf = jnp.bfloat16

    def stack_tower(fn):
        return jnp.stack([fn(t) for t in towers], axis=0)

    def stack_layer(fn):
        return jnp.stack(
            [jnp.stack([fn(L) for L in t["layers"]], axis=0) for t in towers],
            axis=0)

    posty = stack_tower(
        lambda t: jnp.tile(t["pos_emb"][:SEQ], (BATCH, 1)) + t["type_emb"][0][None, :])

    cls_w_pad = jnp.zeros((NUM_TOWERS, HIDDEN, LANE_PAD), jnp.float32)
    cls_w_pad = cls_w_pad.at[0, :, :NUM_LABELS].set(cls_w[:HIDDEN])
    cls_w_pad = cls_w_pad.at[1, :, :NUM_LABELS].set(cls_w[HIDDEN:])
    cls_b_pad = jnp.zeros((NUM_TOWERS, 1, LANE_PAD), jnp.float32)
    cls_b_pad = cls_b_pad.at[0, 0, :NUM_LABELS].set(cls_b)   # bias only in tower 0

    return {
        "word_emb": stack_tower(lambda t: t["word_emb"]),               # [2,V,H] f32
        "posty": posty,                                                 # [2,ROWS,H]
        "emb_ln_g": stack_tower(lambda t: t["emb_ln_g"].reshape(1, HIDDEN)),
        "emb_ln_b": stack_tower(lambda t: t["emb_ln_b"].reshape(1, HIDDEN)),
        "qkv_w": stack_layer(lambda L: jnp.concatenate(
            [L["q_w"], L["k_w"], L["v_w"]], axis=1)).astype(bf),        # [2,L,H,3H]
        "qkv_b": stack_layer(lambda L: jnp.concatenate(
            [L["q_b"], L["k_b"], L["v_b"]], axis=0).reshape(1, 3 * HIDDEN)),
        "o_w": stack_layer(lambda L: L["o_w"]).astype(bf),              # [2,L,H,H]
        "o_b": stack_layer(lambda L: L["o_b"].reshape(1, HIDDEN)),
        "ln1_g": stack_layer(lambda L: L["ln1_g"].reshape(1, HIDDEN)),
        "ln1_b": stack_layer(lambda L: L["ln1_b"].reshape(1, HIDDEN)),
        "i_w": stack_layer(lambda L: L["i_w"]).astype(bf),              # [2,L,H,I]
        "i_b": stack_layer(lambda L: L["i_b"].reshape(1, INTER)),
        "out_w": stack_layer(lambda L: L["out_w"]).astype(bf),          # [2,L,I,H]
        "out_b": stack_layer(lambda L: L["out_b"].reshape(1, HIDDEN)),
        "ln2_g": stack_layer(lambda L: L["ln2_g"].reshape(1, HIDDEN)),
        "ln2_b": stack_layer(lambda L: L["ln2_b"].reshape(1, HIDDEN)),
        "cls_w": cls_w_pad.astype(bf),                                  # [2,H,128]
        "cls_b": cls_b_pad,                                             # [2,1,128]
    }


# ----------------------------- main -------------------------------------------
if __name__ == "__main__":
    key = jax.random.PRNGKey(0)
    k_param, k_ids, k_pos = jax.random.split(key, 3)

    towers, cls_w, cls_b = init_params(k_param)
    packed = pack_tower_params(towers, cls_w, cls_b)

    input_ids = jax.random.randint(k_ids, (BATCH, SEQ), 0, VOCAB, dtype=jnp.int32)
    attention_mask = jnp.array(
        [[1, 1, 1, 1, 1, 1, 1, 1],
         [1, 1, 1, 1, 1, 0, 0, 0]], dtype=jnp.int32
    )
    mention_pos_idx = jax.random.randint(k_pos, (BATCH,), 0, SEQ, dtype=jnp.int32)

    logits = bert_combined_forward(packed, input_ids, attention_mask, mention_pos_idx)
    jax.block_until_ready(logits)

    assert logits.shape == (BATCH, NUM_LABELS)
    assert bool(jnp.all(jnp.isfinite(logits)))
    print("KERNEL_OK")
</pallas_src>

<mosaic_0001>
module attributes {stable_mosaic.version = 11 : i64} {
  func.func @_fused_kernel(%arg0: i32, %arg1: memref<16x1xi32, #tpu.memory_space<vmem>>, %arg2: memref<2x1xi32, #tpu.memory_space<vmem>>, %arg3: memref<16x16xf32, #tpu.memory_space<vmem>>, %arg4: memref<1x64x32xf32, #tpu.memory_space<vmem>>, %arg5: memref<1x16x32xf32, #tpu.memory_space<vmem>>, %arg6: memref<1x1x32xf32, #tpu.memory_space<vmem>>, %arg7: memref<1x1x32xf32, #tpu.memory_space<vmem>>, %arg8: memref<1x2x32x96xbf16, #tpu.memory_space<vmem>>, %arg9: memref<1x2x1x96xf32, #tpu.memory_space<vmem>>, %arg10: memref<1x2x32x32xbf16, #tpu.memory_space<vmem>>, %arg11: memref<1x2x1x32xf32, #tpu.memory_space<vmem>>, %arg12: memref<1x2x1x32xf32, #tpu.memory_space<vmem>>, %arg13: memref<1x2x1x32xf32, #tpu.memory_space<vmem>>, %arg14: memref<1x2x32x64xbf16, #tpu.memory_space<vmem>>, %arg15: memref<1x2x1x64xf32, #tpu.memory_space<vmem>>, %arg16: memref<1x2x64x32xbf16, #tpu.memory_space<vmem>>, %arg17: memref<1x2x1x32xf32, #tpu.memory_space<vmem>>, %arg18: memref<1x2x1x32xf32, #tpu.memory_space<vmem>>, %arg19: memref<1x2x1x32xf32, #tpu.memory_space<vmem>>, %arg20: memref<1x32x128xbf16, #tpu.memory_space<vmem>>, %arg21: memref<1x1x128xf32, #tpu.memory_space<vmem>>, %arg22: memref<1x2x128xf32, #tpu.memory_space<vmem>>) attributes {dimension_semantics = [#tpu.dimension_semantics<parallel>], iteration_bounds = array<i64: 2>, scalar_prefetch = 0 : i64, scratch_operands = 0 : i64, tpu.core_type = #tpu.core_type<tc>, window_params = [{pipeline_mode = #tpu.pipeline_mode<synchronous>, transform_indices = @transform_0, window_bounds = array<i64: 16, 1>}, {pipeline_mode = #tpu.pipeline_mode<synchronous>, transform_indices = @transform_1, window_bounds = array<i64: 2, 1>}, {pipeline_mode = #tpu.pipeline_mode<synchronous>, transform_indices = @transform_2, window_bounds = array<i64: 16, 16>}, {transform_indices = @transform_3, window_bounds = array<i64: 1, 64, 32>}, {transform_indices = @transform_4, window_bounds = array<i64: 1, 16, 32>}, {transform_indices = @transform_5, window_bounds = array<i64: 1, 1, 32>}, {transform_indices = @transform_6, window_bounds = array<i64: 1, 1, 32>}, {transform_indices = @transform_7, window_bounds = array<i64: 1, 2, 32, 96>}, {transform_indices = @transform_8, window_bounds = array<i64: 1, 2, 1, 96>}, {transform_indices = @transform_9, window_bounds = array<i64: 1, 2, 32, 32>}, {transform_indices = @transform_10, window_bounds = array<i64: 1, 2, 1, 32>}, {transform_indices = @transform_11, window_bounds = array<i64: 1, 2, 1, 32>}, {transform_indices = @transform_12, window_bounds = array<i64: 1, 2, 1, 32>}, {transform_indices = @transform_13, window_bounds = array<i64: 1, 2, 32, 64>}, {transform_indices = @transform_14, window_bounds = array<i64: 1, 2, 1, 64>}, {transform_indices = @transform_15, window_bounds = array<i64: 1, 2, 64, 32>}, {transform_indices = @transform_16, window_bounds = array<i64: 1, 2, 1, 32>}, {transform_indices = @transform_17, window_bounds = array<i64: 1, 2, 1, 32>}, {transform_indices = @transform_18, window_bounds = array<i64: 1, 2, 1, 32>}, {transform_indices = @transform_19, window_bounds = array<i64: 1, 32, 128>}, {transform_indices = @transform_20, window_bounds = array<i64: 1, 1, 128>}, {transform_indices = @transform_21, window_bounds = array<i64: 1, 2, 128>}]} {
    %c0 = arith.constant 0 : index
    %c0_0 = arith.constant 0 : index
    %0 = vector.load %arg1[%c0, %c0_0] : memref<16x1xi32, #tpu.memory_space<vmem>>, vector<16x1xi32>
    %1 = tpu.iota {dimensions = array<i32: 1>} : vector<16x64xi32>
    %2 = vector.broadcast %0 : vector<16x1xi32> to vector<16x64xi32>
    %3 = arith.cmpi eq, %1, %2 : vector<16x64xi32>
    %4 = arith.extui %3 : vector<16x64xi1> to vector<16x64xi32>
    %5 = arith.sitofp %4 : vector<16x64xi32> to vector<16x64xf32>
    %c0_1 = arith.constant 0 : index
    %c0_2 = arith.constant 0 : index
    %c0_3 = arith.constant 0 : index
    %6 = vector.load %arg4[%c0_1, %c0_2, %c0_3] : memref<1x64x32xf32, #tpu.memory_space<vmem>>, vector<1x64x32xf32>
    %7 = vector.shape_cast %6 : vector<1x64x32xf32> to vector<64x32xf32>
    %cst = arith.constant dense<0.000000e+00> : vector<16x32xf32>
    %8 = tpu.matmul %5, %7, %cst {dimension_numbers = #tpu.dot_dimension_numbers<[1], [0], [0], [1], [0, 0, 1, 1], [], []>} : vector<16x64xf32>, vector<64x32xf32>, vector<16x32xf32> -> vector<16x32xf32>
    %c0_4 = arith.constant 0 : index
    %c0_5 = arith.constant 0 : index
    %c0_6 = arith.constant 0 : index
    %9 = vector.load %arg5[%c0_4, %c0_5, %c0_6] : memref<1x16x32xf32, #tpu.memory_space<vmem>>, vector<1x16x32xf32>
    %10 = vector.shape_cast %9 : vector<1x16x32xf32> to vector<16x32xf32>
    %11 = arith.addf %8, %10 : vector<16x32xf32>
    %c0_7 = arith.constant 0 : index
    %c0_8 = arith.constant 0 : index
    %c0_9 = arith.constant 0 : index
    %12 = vector.load %arg6[%c0_7, %c0_8, %c0_9] : memref<1x1x32xf32, #tpu.memory_space<vmem>>, vector<1x1x32xf32>
    %13 = vector.shape_cast %12 : vector<1x1x32xf32> to vector<1x32xf32>
    %c0_10 = arith.constant 0 : index
    %c0_11 = arith.constant 0 : index
    %c0_12 = arith.constant 0 : index
    %14 = vector.load %arg7[%c0_10, %c0_11, %c0_12] : memref<1x1x32xf32, #tpu.memory_space<vmem>>, vector<1x1x32xf32>
    %15 = vector.shape_cast %14 : vector<1x1x32xf32> to vector<1x32xf32>
    %cst_13 = arith.constant dense<0.000000e+00> : vector<16xf32>
    %16 = vector.multi_reduction <add>, %11, %cst_13 [1] : vector<16x32xf32> to vector<16xf32>
    %17 = vector.shape_cast %16 : vector<16xf32> to vector<16x1xf32>
    %cst_14 = arith.constant 3.200000e+01 : f32
    %18 = vector.broadcast %cst_14 : f32 to vector<16x1xf32>
    %19 = arith.divf %17, %18 : vector<16x1xf32>
    %20 = vector.broadcast %19 : vector<16x1xf32> to vector<16x32xf32>
    %21 = arith.subf %11, %20 : vector<16x32xf32>
    %22 = arith.mulf %21, %21 : vector<16x32xf32>
    %cst_15 = arith.constant dense<0.000000e+00> : vector<16xf32>
    %23 = vector.multi_reduction <add>, %22, %cst_15 [1] : vector<16x32xf32> to vector<16xf32>
    %24 = vector.shape_cast %23 : vector<16xf32> to vector<16x1xf32>
    %cst_16 = arith.constant 3.200000e+01 : f32
    %25 = vector.broadcast %cst_16 : f32 to vector<16x1xf32>
    %26 = arith.divf %24, %25 : vector<16x1xf32>
    %27 = vector.broadcast %19 : vector<16x1xf32> to vector<16x32xf32>
    %28 = arith.subf %11, %27 : vector<16x32xf32>
    %cst_17 = arith.constant 9.99999996E-13 : f32
    %29 = vector.broadcast %cst_17 : f32 to vector<16x1xf32>
    %30 = arith.addf %26, %29 : vector<16x1xf32>
    %31 = math.rsqrt %30 : vector<16x1xf32>
    %32 = vector.broadcast %31 : vector<16x1xf32> to vector<16x32xf32>
    %33 = arith.mulf %28, %32 : vector<16x32xf32>
    %34 = vector.broadcast %13 : vector<1x32xf32> to vector<16x32xf32>
    %35 = arith.mulf %33, %34 : vector<16x32xf32>
    %36 = vector.broadcast %15 : vector<1x32xf32> to vector<16x32xf32>
    %37 = arith.addf %35, %36 : vector<16x32xf32>
    %c0_18 = arith.constant 0 : index
    %c0_19 = arith.constant 0 : index
    %38 = vector.load %arg3[%c0_18, %c0_19] : memref<16x16xf32, #tpu.memory_space<vmem>>, vector<16x16xf32>
    %39 = arith.truncf %37 : vector<16x32xf32> to vector<16x32xbf16>
    %c0_20 = arith.constant 0 : index
    %c0_21 = arith.constant 0 : index
    %c0_22 = arith.constant 0 : index
    %c0_23 = arith.constant 0 : index
    %40 = vector.load %arg8[%c0_20, %c0_21, %c0_22, %c0_23] : memref<1x2x32x96xbf16, #tpu.memory_space<vmem>>, vector<1x1x32x96xbf16>
    %41 = vector.shape_cast %40 : vector<1x1x32x96xbf16> to vector<32x96xbf16>
    %cst_24 = arith.constant dense<0.000000e+00> : vector<16x96xf32>
    %42 = tpu.matmul %39, %41, %cst_24 {dimension_numbers = #tpu.dot_dimension_numbers<[1], [0], [0], [1], [0, 0, 1, 1], [], []>} : vector<16x32xbf16>, vector<32x96xbf16>, vector<16x96xf32> -> vector<16x96xf32>
    %c0_25 = arith.constant 0 : index
    %c0_26 = arith.constant 0 : index
    %c0_27 = arith.constant 0 : index
    %c0_28 = arith.constant 0 : index
    %43 = vector.load %arg9[%c0_25, %c0_26, %c0_27, %c0_28] : memref<1x2x1x96xf32, #tpu.memory_space<vmem>>, vector<1x1x1x96xf32>
    %44 = vector.shape_cast %43 : vector<1x1x1x96xf32> to vector<1x96xf32>
    %45 = vector.broadcast %44 : vector<1x96xf32> to vector<16x96xf32>
    %46 = arith.addf %42, %45 : vector<16x96xf32>
    %c0_29 = arith.constant 0 : index
    %c0_30 = arith.constant 0 : index
    %c0_31 = arith.constant 0 : index
    %c0_32 = arith.constant 0 : index
    %47 = vector.load %arg10[%c0_29, %c0_30, %c0_31, %c0_32] : memref<1x2x32x32xbf16, #tpu.memory_space<vmem>>, vector<1x1x32x32xbf16>
    %48 = vector.shape_cast %47 : vector<1x1x32x32xbf16> to vector<32x32xbf16>
    %cst_33 = arith.constant 0.000000e+00 : f32
    %49 = vector.broadcast %cst_33 : f32 to vector<16x32xf32>
    %50 = vector.extract_strided_slice %46 {offsets = [0, 0], sizes = [16, 16], strides = [1, 1]} : vector<16x96xf32> to vector<16x16xf32>
    %51 = arith.truncf %50 : vector<16x16xf32> to vector<16x16xbf16>
    %52 = vector.extract_strided_slice %46 {offsets = [0, 32], sizes = [16, 16], strides = [1, 1]} : vector<16x96xf32> to vector<16x16xf32>
    %53 = arith.truncf %52 : vector<16x16xf32> to vector<16x16xbf16>
    %54 = vector.extract_strided_slice %46 {offsets = [0, 64], sizes = [16, 16], strides = [1, 1]} : vector<16x96xf32> to vector<16x16xf32>
    %55 = arith.truncf %54 : vector<16x16xf32> to vector<16x16xbf16>
    %cst_34 = arith.constant dense<0.000000e+00> : vector<16x16xf32>
    %56 = tpu.matmul %51, %53, %cst_34 {dimension_numbers = #tpu.dot_dimension_numbers<[1], [1], [0], [0], [0, 0, 1, 0], [], []>} : vector<16x16xbf16>, vector<16x16xbf16>, vector<16x16xf32> -> vector<16x16xf32>
    %cst_35 = arith.constant 2.500000e-01 : f32
    %57 = vector.broadcast %cst_35 : f32 to vector<16x16xf32>
    %58 = arith.mulf %56, %57 : vector<16x16xf32>
    %59 = arith.addf %58, %38 : vector<16x16xf32>
    %cst_36 = arith.constant dense<0xFF800000> : vector<16xf32>
    %60 = vector.multi_reduction <maximumf>, %59, %cst_36 [1] : vector<16x16xf32> to vector<16xf32>
    %61 = vector.shape_cast %60 : vector<16xf32> to vector<16x1xf32>
    %62 = vector.broadcast %61 : vector<16x1xf32> to vector<16x16xf32>
    %63 = arith.subf %59, %62 : vector<16x16xf32>
    %64 = math.exp %63 : vector<16x16xf32>
    %cst_37 = arith.constant dense<0.000000e+00> : vector<16xf32>
    %65 = vector.multi_reduction <add>, %64, %cst_37 [1] : vector<16x16xf32> to vector<16xf32>
    %66 = vector.shape_cast %65 : vector<16xf32> to vector<16x1xf32>
    %67 = tpu.reciprocal %66 {approx = true} : vector<16x1xf32> -> vector<16x1xf32>
    %68 = vector.broadcast %67 : vector<16x1xf32> to vector<16x16xf32>
    %69 = arith.mulf %64, %68 : vector<16x16xf32>
    %70 = arith.truncf %69 : vector<16x16xf32> to vector<16x16xbf16>
    %cst_38 = arith.constant dense<0.000000e+00> : vector<16x16xf32>
    %71 = tpu.matmul %70, %55, %cst_38 {dimension_numbers = #tpu.dot_dimension_numbers<[1], [0], [0], [1], [0, 0, 1, 1], [], []>} : vector<16x16xbf16>, vector<16x16xbf16>, vector<16x16xf32> -> vector<16x16xf32>
    %72 = arith.truncf %71 : vector<16x16xf32> to vector<16x16xbf16>
    %73 = vector.extract_strided_slice %48 {offsets = [0, 0], sizes = [16, 32], strides = [1, 1]} : vector<32x32xbf16> to vector<16x32xbf16>
    %cst_39 = arith.constant dense<0.000000e+00> : vector<16x32xf32>
    %74 = tpu.matmul %72, %73, %cst_39 {dimension_numbers = #tpu.dot_dimension_numbers<[1], [0], [0], [1], [0, 0, 1, 1], [], []>} : vector<16x16xbf16>, vector<16x32xbf16>, vector<16x32xf32> -> vector<16x32xf32>
    %75 = arith.addf %49, %74 : vector<16x32xf32>
    %76 = vector.extract_strided_slice %46 {offsets = [0, 16], sizes = [16, 16], strides = [1, 1]} : vector<16x96xf32> to vector<16x16xf32>
    %77 = arith.truncf %76 : vector<16x16xf32> to vector<16x16xbf16>
    %78 = vector.extract_strided_slice %46 {offsets = [0, 48], sizes = [16, 16], strides = [1, 1]} : vector<16x96xf32> to vector<16x16xf32>
    %79 = arith.truncf %78 : vector<16x16xf32> to vector<16x16xbf16>
    %80 = vector.extract_strided_slice %46 {offsets = [0, 80], sizes = [16, 16], strides = [1, 1]} : vector<16x96xf32> to vector<16x16xf32>
    %81 = arith.truncf %80 : vector<16x16xf32> to vector<16x16xbf16>
    %cst_40 = arith.constant dense<0.000000e+00> : vector<16x16xf32>
    %82 = tpu.matmul %77, %79, %cst_40 {dimension_numbers = #tpu.dot_dimension_numbers<[1], [1], [0], [0], [0, 0, 1, 0], [], []>} : vector<16x16xbf16>, vector<16x16xbf16>, vector<16x16xf32> -> vector<16x16xf32>
    %cst_41 = arith.constant 2.500000e-01 : f32
    %83 = vector.broadcast %cst_41 : f32 to vector<16x16xf32>
    %84 = arith.mulf %82, %83 : vector<16x16xf32>
    %85 = arith.addf %84, %38 : vector<16x16xf32>
    %cst_42 = arith.constant dense<0xFF800000> : vector<16xf32>
    %86 = vector.multi_reduction <maximumf>, %85, %cst_42 [1] : vector<16x16xf32> to vector<16xf32>
    %87 = vector.shape_cast %86 : vector<16xf32> to vector<16x1xf32>
    %88 = vector.broadcast %87 : vector<16x1xf32> to vector<16x16xf32>
    %89 = arith.subf %85, %88 : vector<16x16xf32>
    %90 = math.exp %89 : vector<16x16xf32>
    %cst_43 = arith.constant dense<0.000000e+00> : vector<16xf32>
    %91 = vector.multi_reduction <add>, %90, %cst_43 [1] : vector<16x16xf32> to vector<16xf32>
    %92 = vector.shape_cast %91 : vector<16xf32> to vector<16x1xf32>
    %93 = tpu.reciprocal %92 {approx = true} : vector<16x1xf32> -> vector<16x1xf32>
    %94 = vector.broadcast %93 : vector<16x1xf32> to vector<16x16xf32>
    %95 = arith.mulf %90, %94 : vector<16x16xf32>
    %96 = arith.truncf %95 : vector<16x16xf32> to vector<16x16xbf16>
    %cst_44 = arith.constant dense<0.000000e+00> : vector<16x16xf32>
    %97 = tpu.matmul %96, %81, %cst_44 {dimension_numbers = #tpu.dot_dimension_numbers<[1], [0], [0], [1], [0, 0, 1, 1], [], []>} : vector<16x16xbf16>, vector<16x16xbf16>, vector<16x16xf32> -> vector<16x16xf32>
    %98 = arith.truncf %97 : vector<16x16xf32> to vector<16x16xbf16>
    %99 = vector.extract_strided_slice %48 {offsets = [16, 0], sizes = [16, 32], strides = [1, 1]} : vector<32x32xbf16> to vector<16x32xbf16>
    %cst_45 = arith.constant dense<0.000000e+00> : vector<16x32xf32>
    %100 = tpu.matmul %98, %99, %cst_45 {dimension_numbers = #tpu.dot_dimension_numbers<[1], [0], [0], [1], [0, 0, 1, 1], [], []>} : vector<16x16xbf16>, vector<16x32xbf16>, vector<16x32xf32> -> vector<16x32xf32>
    %101 = arith.addf %75, %100 : vector<16x32xf32>
    %c0_46 = arith.constant 0 : index
    %c0_47 = arith.constant 0 : index
    %c0_48 = arith.constant 0 : index
    %c0_49 = arith.constant 0 : index
    %102 = vector.load %arg11[%c0_46, %c0_47, %c0_48, %c0_49] : memref<1x2x1x32xf32, #tpu.memory_space<vmem>>, vector<1x1x1x32xf32>
    %103 = vector.shape_cast %102 : vector<1x1x1x32xf32> to vector<1x32xf32>
    %104 = vector.broadcast %103 : vector<1x32xf32> to vector<16x32xf32>
    %105 = arith.addf %101, %104 : vector<16x32xf32>
    %106 = arith.addf %105, %37 : vector<16x32xf32>
    %c0_50 = arith.constant 0 : index
    %c0_51 = arith.constant 0 : index
    %c0_52 = arith.constant 0 : index
    %c0_53 = arith.constant 0 : index
    %107 = vector.load %arg12[%c0_50, %c0_51, %c0_52, %c0_53] : memref<1x2x1x32xf32, #tpu.memory_space<vmem>>, vector<1x1x1x32xf32>
    %108 = vector.shape_cast %107 : vector<1x1x1x32xf32> to vector<1x32xf32>
    %c0_54 = arith.constant 0 : index
    %c0_55 = arith.constant 0 : index
    %c0_56 = arith.constant 0 : index
    %c0_57 = arith.constant 0 : index
    %109 = vector.load %arg13[%c0_54, %c0_55, %c0_56, %c0_57] : memref<1x2x1x32xf32, #tpu.memory_space<vmem>>, vector<1x1x1x32xf32>
    %110 = vector.shape_cast %109 : vector<1x1x1x32xf32> to vector<1x32xf32>
    %cst_58 = arith.constant dense<0.000000e+00> : vector<16xf32>
    %111 = vector.multi_reduction <add>, %106, %cst_58 [1] : vector<16x32xf32> to vector<16xf32>
    %112 = vector.shape_cast %111 : vector<16xf32> to vector<16x1xf32>
    %cst_59 = arith.constant 3.200000e+01 : f32
    %113 = vector.broadcast %cst_59 : f32 to vector<16x1xf32>
    %114 = arith.divf %112, %113 : vector<16x1xf32>
    %115 = vector.broadcast %114 : vector<16x1xf32> to vector<16x32xf32>
    %116 = arith.subf %106, %115 : vector<16x32xf32>
    %117 = arith.mulf %116, %116 : vector<16x32xf32>
    %cst_60 = arith.constant dense<0.000000e+00> : vector<16xf32>
    %118 = vector.multi_reduction <add>, %117, %cst_60 [1] : vector<16x32xf32> to vector<16xf32>
    %119 = vector.shape_cast %118 : vector<16xf32> to vector<16x1xf32>
    %cst_61 = arith.constant 3.200000e+01 : f32
    %120 = vector.broadcast %cst_61 : f32 to vector<16x1xf32>
    %121 = arith.divf %119, %120 : vector<16x1xf32>
    %122 = vector.broadcast %114 : vector<16x1xf32> to vector<16x32xf32>
    %123 = arith.subf %106, %122 : vector<16x32xf32>
    %cst_62 = arith.constant 9.99999996E-13 : f32
    %124 = vector.broadcast %cst_62 : f32 to vector<16x1xf32>
    %125 = arith.addf %121, %124 : vector<16x1xf32>
    %126 = math.rsqrt %125 : vector<16x1xf32>
    %127 = vector.broadcast %126 : vector<16x1xf32> to vector<16x32xf32>
    %128 = arith.mulf %123, %127 : vector<16x32xf32>
    %129 = vector.broadcast %108 : vector<1x32xf32> to vector<16x32xf32>
    %130 = arith.mulf %128, %129 : vector<16x32xf32>
    %131 = vector.broadcast %110 : vector<1x32xf32> to vector<16x32xf32>
    %132 = arith.addf %130, %131 : vector<16x32xf32>
    %133 = arith.truncf %132 : vector<16x32xf32> to vector<16x32xbf16>
    %c0_63 = arith.constant 0 : index
    %c0_64 = arith.constant 0 : index
    %c0_65 = arith.constant 0 : index
    %c0_66 = arith.constant 0 : index
    %134 = vector.load %arg14[%c0_63, %c0_64, %c0_65, %c0_66] : memref<1x2x32x64xbf16, #tpu.memory_space<vmem>>, vector<1x1x32x64xbf16>
    %135 = vector.shape_cast %134 : vector<1x1x32x64xbf16> to vector<32x64xbf16>
    %cst_67 = arith.constant dense<0.000000e+00> : vector<16x64xf32>
    %136 = tpu.matmul %133, %135, %cst_67 {dimension_numbers = #tpu.dot_dimension_numbers<[1], [0], [0], [1], [0, 0, 1, 1], [], []>} : vector<16x32xbf16>, vector<32x64xbf16>, vector<16x64xf32> -> vector<16x64xf32>
    %c0_68 = arith.constant 0 : index
    %c0_69 = arith.constant 0 : index
    %c0_70 = arith.constant 0 : index
    %c0_71 = arith.constant 0 : index
    %137 = vector.load %arg15[%c0_68, %c0_69, %c0_70, %c0_71] : memref<1x2x1x64xf32, #tpu.memory_space<vmem>>, vector<1x1x1x64xf32>
    %138 = vector.shape_cast %137 : vector<1x1x1x64xf32> to vector<1x64xf32>
    %139 = vector.broadcast %138 : vector<1x64xf32> to vector<16x64xf32>
    %140 = arith.addf %136, %139 : vector<16x64xf32>
    %cst_72 = arith.constant 5.000000e-01 : f32
    %141 = vector.broadcast %cst_72 : f32 to vector<16x64xf32>
    %142 = arith.mulf %141, %140 : vector<16x64xf32>
    %cst_73 = arith.constant 4.471500e-02 : f32
    %143 = vector.broadcast %cst_73 : f32 to vector<16x64xf32>
    %144 = arith.mulf %143, %140 : vector<16x64xf32>
    %145 = arith.mulf %144, %140 : vector<16x64xf32>
    %146 = arith.mulf %145, %140 : vector<16x64xf32>
    %147 = arith.addf %140, %146 : vector<16x64xf32>
    %cst_74 = arith.constant 0.797884583 : f32
    %148 = vector.broadcast %cst_74 : f32 to vector<16x64xf32>
    %149 = arith.mulf %148, %147 : vector<16x64xf32>
    %150 = math.tanh %149 : vector<16x64xf32>
    %cst_75 = arith.constant 1.000000e+00 : f32
    %151 = vector.broadcast %cst_75 : f32 to vector<16x64xf32>
    %152 = arith.addf %151, %150 : vector<16x64xf32>
    %153 = arith.mulf %142, %152 : vector<16x64xf32>
    %154 = arith.truncf %153 : vector<16x64xf32> to vector<16x64xbf16>
    %c0_76 = arith.constant 0 : index
    %c0_77 = arith.constant 0 : index
    %c0_78 = arith.constant 0 : index
    %c0_79 = arith.constant 0 : index
    %155 = vector.load %arg16[%c0_76, %c0_77, %c0_78, %c0_79] : memref<1x2x64x32xbf16, #tpu.memory_space<vmem>>, vector<1x1x64x32xbf16>
    %156 = vector.shape_cast %155 : vector<1x1x64x32xbf16> to vector<64x32xbf16>
    %cst_80 = arith.constant dense<0.000000e+00> : vector<16x32xf32>
    %157 = tpu.matmul %154, %156, %cst_80 {dimension_numbers = #tpu.dot_dimension_numbers<[1], [0], [0], [1], [0, 0, 1, 1], [], []>} : vector<16x64xbf16>, vector<64x32xbf16>, vector<16x32xf32> -> vector<16x32xf32>
    %c0_81 = arith.constant 0 : index
    %c0_82 = arith.constant 0 : index
    %c0_83 = arith.constant 0 : index
    %c0_84 = arith.constant 0 : index
    %158 = vector.load %arg17[%c0_81, %c0_82, %c0_83, %c0_84] : memref<1x2x1x32xf32, #tpu.memory_space<vmem>>, vector<1x1x1x32xf32>
    %159 = vector.shape_cast %158 : vector<1x1x1x32xf32> to vector<1x32xf32>
    %160 = vector.broadcast %159 : vector<1x32xf32> to vector<16x32xf32>
    %161 = arith.addf %157, %160 : vector<16x32xf32>
    %162 = arith.addf %161, %132 : vector<16x32xf32>
    %c0_85 = arith.constant 0 : index
    %c0_86 = arith.constant 0 : index
    %c0_87 = arith.constant 0 : index
    %c0_88 = arith.constant 0 : index
    %163 = vector.load %arg18[%c0_85, %c0_86, %c0_87, %c0_88] : memref<1x2x1x32xf32, #tpu.memory_space<vmem>>, vector<1x1x1x32xf32>
    %164 = vector.shape_cast %163 : vector<1x1x1x32xf32> to vector<1x32xf32>
    %c0_89 = arith.constant 0 : index
    %c0_90 = arith.constant 0 : index
    %c0_91 = arith.constant 0 : index
    %c0_92 = arith.constant 0 : index
    %165 = vector.load %arg19[%c0_89, %c0_90, %c0_91, %c0_92] : memref<1x2x1x32xf32, #tpu.memory_space<vmem>>, vector<1x1x1x32xf32>
    %166 = vector.shape_cast %165 : vector<1x1x1x32xf32> to vector<1x32xf32>
    %cst_93 = arith.constant dense<0.000000e+00> : vector<16xf32>
    %167 = vector.multi_reduction <add>, %162, %cst_93 [1] : vector<16x32xf32> to vector<16xf32>
    %168 = vector.shape_cast %167 : vector<16xf32> to vector<16x1xf32>
    %cst_94 = arith.constant 3.200000e+01 : f32
    %169 = vector.broadcast %cst_94 : f32 to vector<16x1xf32>
    %170 = arith.divf %168, %169 : vector<16x1xf32>
    %171 = vector.broadcast %170 : vector<16x1xf32> to vector<16x32xf32>
    %172 = arith.subf %162, %171 : vector<16x32xf32>
    %173 = arith.mulf %172, %172 : vector<16x32xf32>
    %cst_95 = arith.constant dense<0.000000e+00> : vector<16xf32>
    %174 = vector.multi_reduction <add>, %173, %cst_95 [1] : vector<16x32xf32> to vector<16xf32>
    %175 = vector.shape_cast %174 : vector<16xf32> to vector<16x1xf32>
    %cst_96 = arith.constant 3.200000e+01 : f32
    %176 = vector.broadcast %cst_96 : f32 to vector<16x1xf32>
    %177 = arith.divf %175, %176 : vector<16x1xf32>
    %178 = vector.broadcast %170 : vector<16x1xf32> to vector<16x32xf32>
    %179 = arith.subf %162, %178 : vector<16x32xf32>
    %cst_97 = arith.constant 9.99999996E-13 : f32
    %180 = vector.broadcast %cst_97 : f32 to vector<16x1xf32>
    %181 = arith.addf %177, %180 : vector<16x1xf32>
    %182 = math.rsqrt %181 : vector<16x1xf32>
    %183 = vector.broadcast %182 : vector<16x1xf32> to vector<16x32xf32>
    %184 = arith.mulf %179, %183 : vector<16x32xf32>
    %185 = vector.broadcast %164 : vector<1x32xf32> to vector<16x32xf32>
    %186 = arith.mulf %184, %185 : vector<16x32xf32>
    %187 = vector.broadcast %166 : vector<1x32xf32> to vector<16x32xf32>
    %188 = arith.addf %186, %187 : vector<16x32xf32>
    %189 = arith.truncf %188 : vector<16x32xf32> to vector<16x32xbf16>
    %c0_98 = arith.constant 0 : index
    %c1 = arith.constant 1 : index
    %c0_99 = arith.constant 0 : index
    %c0_100 = arith.constant 0 : index
    %190 = vector.load %arg8[%c0_98, %c1, %c0_99, %c0_100] : memref<1x2x32x96xbf16, #tpu.memory_space<vmem>>, vector<1x1x32x96xbf16>
    %191 = vector.shape_cast %190 : vector<1x1x32x96xbf16> to vector<32x96xbf16>
    %cst_101 = arith.constant dense<0.000000e+00> : vector<16x96xf32>
    %192 = tpu.matmul %189, %191, %cst_101 {dimension_numbers = #tpu.dot_dimension_numbers<[1], [0], [0], [1], [0, 0, 1, 1], [], []>} : vector<16x32xbf16>, vector<32x96xbf16>, vector<16x96xf32> -> vector<16x96xf32>
    %c0_102 = arith.constant 0 : index
    %c1_103 = arith.constant 1 : index
    %c0_104 = arith.constant 0 : index
    %c0_105 = arith.constant 0 : index
    %193 = vector.load %arg9[%c0_102, %c1_103, %c0_104, %c0_105] : memref<1x2x1x96xf32, #tpu.memory_space<vmem>>, vector<1x1x1x96xf32>
    %194 = vector.shape_cast %193 : vector<1x1x1x96xf32> to vector<1x96xf32>
    %195 = vector.broadcast %194 : vector<1x96xf32> to vector<16x96xf32>
    %196 = arith.addf %192, %195 : vector<16x96xf32>
    %c0_106 = arith.constant 0 : index
    %c1_107 = arith.constant 1 : index
    %c0_108 = arith.constant 0 : index
    %c0_109 = arith.constant 0 : index
    %197 = vector.load %arg10[%c0_106, %c1_107, %c0_108, %c0_109] : memref<1x2x32x32xbf16, #tpu.memory_space<vmem>>, vector<1x1x32x32xbf16>
    %198 = vector.shape_cast %197 : vector<1x1x32x32xbf16> to vector<32x32xbf16>
    %cst_110 = arith.constant 0.000000e+00 : f32
    %199 = vector.broadcast %cst_110 : f32 to vector<16x32xf32>
    %200 = vector.extract_strided_slice %196 {offsets = [0, 0], sizes = [16, 16], strides = [1, 1]} : vector<16x96xf32> to vector<16x16xf32>
    %201 = arith.truncf %200 : vector<16x16xf32> to vector<16x16xbf16>
    %202 = vector.extract_strided_slice %196 {offsets = [0, 32], sizes = [16, 16], strides = [1, 1]} : vector<16x96xf32> to vector<16x16xf32>
    %203 = arith.truncf %202 : vector<16x16xf32> to vector<16x16xbf16>
    %204 = vector.extract_strided_slice %196 {offsets = [0, 64], sizes = [16, 16], strides = [1, 1]} : vector<16x96xf32> to vector<16x16xf32>
    %205 = arith.truncf %204 : vector<16x16xf32> to vector<16x16xbf16>
    %cst_111 = arith.constant dense<0.000000e+00> : vector<16x16xf32>
    %206 = tpu.matmul %201, %203, %cst_111 {dimension_numbers = #tpu.dot_dimension_numbers<[1], [1], [0], [0], [0, 0, 1, 0], [], []>} : vector<16x16xbf16>, vector<16x16xbf16>, vector<16x16xf32> -> vector<16x16xf32>
    %cst_112 = arith.constant 2.500000e-01 : f32
    %207 = vector.broadcast %cst_112 : f32 to vector<16x16xf32>
    %208 = arith.mulf %206, %207 : vector<16x16xf32>
    %209 = arith.addf %208, %38 : vector<16x16xf32>
    %cst_113 = arith.constant dense<0xFF800000> : vector<16xf32>
    %210 = vector.multi_reduction <maximumf>, %209, %cst_113 [1] : vector<16x16xf32> to vector<16xf32>
    %211 = vector.shape_cast %210 : vector<16xf32> to vector<16x1xf32>
    %212 = vector.broadcast %211 : vector<16x1xf32> to vector<16x16xf32>
    %213 = arith.subf %209, %212 : vector<16x16xf32>
    %214 = math.exp %213 : vector<16x16xf32>
    %cst_114 = arith.constant dense<0.000000e+00> : vector<16xf32>
    %215 = vector.multi_reduction <add>, %214, %cst_114 [1] : vector<16x16xf32> to vector<16xf32>
    %216 = vector.shape_cast %215 : vector<16xf32> to vector<16x1xf32>
    %217 = tpu.reciprocal %216 {approx = true} : vector<16x1xf32> -> vector<16x1xf32>
    %218 = vector.broadcast %217 : vector<16x1xf32> to vector<16x16xf32>
    %219 = arith.mulf %214, %218 : vector<16x16xf32>
    %220 = arith.truncf %219 : vector<16x16xf32> to vector<16x16xbf16>
    %cst_115 = arith.constant dense<0.000000e+00> : vector<16x16xf32>
    %221 = tpu.matmul %220, %205, %cst_115 {dimension_numbers = #tpu.dot_dimension_numbers<[1], [0], [0], [1], [0, 0, 1, 1], [], []>} : vector<16x16xbf16>, vector<16x16xbf16>, vector<16x16xf32> -> vector<16x16xf32>
    %222 = arith.truncf %221 : vector<16x16xf32> to vector<16x16xbf16>
    %223 = vector.extract_strided_slice %198 {offsets = [0, 0], sizes = [16, 32], strides = [1, 1]} : vector<32x32xbf16> to vector<16x32xbf16>
    %cst_116 = arith.constant dense<0.000000e+00> : vector<16x32xf32>
    %224 = tpu.matmul %222, %223, %cst_116 {dimension_numbers = #tpu.dot_dimension_numbers<[1], [0], [0], [1], [0, 0, 1, 1], [], []>} : vector<16x16xbf16>, vector<16x32xbf16>, vector<16x32xf32> -> vector<16x32xf32>
    %225 = arith.addf %199, %224 : vector<16x32xf32>
    %226 = vector.extract_strided_slice %196 {offsets = [0, 16], sizes = [16, 16], strides = [1, 1]} : vector<16x96xf32> to vector<16x16xf32>
    %227 = arith.truncf %226 : vector<16x16xf32> to vector<16x16xbf16>
    %228 = vector.extract_strided_slice %196 {offsets = [0, 48], sizes = [16, 16], strides = [1, 1]} : vector<16x96xf32> to vector<16x16xf32>
    %229 = arith.truncf %228 : vector<16x16xf32> to vector<16x16xbf16>
    %230 = vector.extract_strided_slice %196 {offsets = [0, 80], sizes = [16, 16], strides = [1, 1]} : vector<16x96xf32> to vector<16x16xf32>
    %231 = arith.truncf %230 : vector<16x16xf32> to vector<16x16xbf16>
    %cst_117 = arith.constant dense<0.000000e+00> : vector<16x16xf32>
    %232 = tpu.matmul %227, %229, %cst_117 {dimension_numbers = #tpu.dot_dimension_numbers<[1], [1], [0], [0], [0, 0, 1, 0], [], []>} : vector<16x16xbf16>, vector<16x16xbf16>, vector<16x16xf32> -> vector<16x16xf32>
    %cst_118 = arith.constant 2.500000e-01 : f32
    %233 = vector.broadcast %cst_118 : f32 to vector<16x16xf32>
    %234 = arith.mulf %232, %233 : vector<16x16xf32>
    %235 = arith.addf %234, %38 : vector<16x16xf32>
    %cst_119 = arith.constant dense<0xFF800000> : vector<16xf32>
    %236 = vector.multi_reduction <maximumf>, %235, %cst_119 [1] : vector<16x16xf32> to vector<16xf32>
    %237 = vector.shape_cast %236 : vector<16xf32> to vector<16x1xf32>
    %238 = vector.broadcast %237 : vector<16x1xf32> to vector<16x16xf32>
    %239 = arith.subf %235, %238 : vector<16x16xf32>
    %240 = math.exp %239 : vector<16x16xf32>
    %cst_120 = arith.constant dense<0.000000e+00> : vector<16xf32>
    %241 = vector.multi_reduction <add>, %240, %cst_120 [1] : vector<16x16xf32> to vector<16xf32>
    %242 = vector.shape_cast %241 : vector<16xf32> to vector<16x1xf32>
    %243 = tpu.reciprocal %242 {approx = true} : vector<16x1xf32> -> vector<16x1xf32>
    %244 = vector.broadcast %243 : vector<16x1xf32> to vector<16x16xf32>
    %245 = arith.mulf %240, %244 : vector<16x16xf32>
    %246 = arith.truncf %245 : vector<16x16xf32> to vector<16x16xbf16>
    %cst_121 = arith.constant dense<0.000000e+00> : vector<16x16xf32>
    %247 = tpu.matmul %246, %231, %cst_121 {dimension_numbers = #tpu.dot_dimension_numbers<[1], [0], [0], [1], [0, 0, 1, 1], [], []>} : vector<16x16xbf16>, vector<16x16xbf16>, vector<16x16xf32> -> vector<16x16xf32>
    %248 = arith.truncf %247 : vector<16x16xf32> to vector<16x16xbf16>
    %249 = vector.extract_strided_slice %198 {offsets = [16, 0], sizes = [16, 32], strides = [1, 1]} : vector<32x32xbf16> to vector<16x32xbf16>
    %cst_122 = arith.constant dense<0.000000e+00> : vector<16x32xf32>
    %250 = tpu.matmul %248, %249, %cst_122 {dimension_numbers = #tpu.dot_dimension_numbers<[1], [0], [0], [1], [0, 0, 1, 1], [], []>} : vector<16x16xbf16>, vector<16x32xbf16>, vector<16x32xf32> -> vector<16x32xf32>
    %251 = arith.addf %225, %250 : vector<16x32xf32>
    %c0_123 = arith.constant 0 : index
    %c1_124 = arith.constant 1 : index
    %c0_125 = arith.constant 0 : index
    %c0_126 = arith.constant 0 : index
    %252 = vector.load %arg11[%c0_123, %c1_124, %c0_125, %c0_126] : memref<1x2x1x32xf32, #tpu.memory_space<vmem>>, vector<1x1x1x32xf32>
    %253 = vector.shape_cast %252 : vector<1x1x1x32xf32> to vector<1x32xf32>
    %254 = vector.broadcast %253 : vector<1x32xf32> to vector<16x32xf32>
    %255 = arith.addf %251, %254 : vector<16x32xf32>
    %256 = arith.addf %255, %188 : vector<16x32xf32>
    %c0_127 = arith.constant 0 : index
    %c1_128 = arith.constant 1 : index
    %c0_129 = arith.constant 0 : index
    %c0_130 = arith.constant 0 : index
    %257 = vector.load %arg12[%c0_127, %c1_128, %c0_129, %c0_130] : memref<1x2x1x32xf32, #tpu.memory_space<vmem>>, vector<1x1x1x32xf32>
    %258 = vector.shape_cast %257 : vector<1x1x1x32xf32> to vector<1x32xf32>
    %c0_131 = arith.constant 0 : index
    %c1_132 = arith.constant 1 : index
    %c0_133 = arith.constant 0 : index
    %c0_134 = arith.constant 0 : index
    %259 = vector.load %arg13[%c0_131, %c1_132, %c0_133, %c0_134] : memref<1x2x1x32xf32, #tpu.memory_space<vmem>>, vector<1x1x1x32xf32>
    %260 = vector.shape_cast %259 : vector<1x1x1x32xf32> to vector<1x32xf32>
    %cst_135 = arith.constant dense<0.000000e+00> : vector<16xf32>
    %261 = vector.multi_reduction <add>, %256, %cst_135 [1] : vector<16x32xf32> to vector<16xf32>
    %262 = vector.shape_cast %261 : vector<16xf32> to vector<16x1xf32>
    %cst_136 = arith.constant 3.200000e+01 : f32
    %263 = vector.broadcast %cst_136 : f32 to vector<16x1xf32>
    %264 = arith.divf %262, %263 : vector<16x1xf32>
    %265 = vector.broadcast %264 : vector<16x1xf32> to vector<16x32xf32>
    %266 = arith.subf %256, %265 : vector<16x32xf32>
    %267 = arith.mulf %266, %266 : vector<16x32xf32>
    %cst_137 = arith.constant dense<0.000000e+00> : vector<16xf32>
    %268 = vector.multi_reduction <add>, %267, %cst_137 [1] : vector<16x32xf32> to vector<16xf32>
    %269 = vector.shape_cast %268 : vector<16xf32> to vector<16x1xf32>
    %cst_138 = arith.constant 3.200000e+01 : f32
    %270 = vector.broadcast %cst_138 : f32 to vector<16x1xf32>
    %271 = arith.divf %269, %270 : vector<16x1xf32>
    %272 = vector.broadcast %264 : vector<16x1xf32> to vector<16x32xf32>
    %273 = arith.subf %256, %272 : vector<16x32xf32>
    %cst_139 = arith.constant 9.99999996E-13 : f32
    %274 = vector.broadcast %cst_139 : f32 to vector<16x1xf32>
    %275 = arith.addf %271, %274 : vector<16x1xf32>
    %276 = math.rsqrt %275 : vector<16x1xf32>
    %277 = vector.broadcast %276 : vector<16x1xf32> to vector<16x32xf32>
    %278 = arith.mulf %273, %277 : vector<16x32xf32>
    %279 = vector.broadcast %258 : vector<1x32xf32> to vector<16x32xf32>
    %280 = arith.mulf %278, %279 : vector<16x32xf32>
    %281 = vector.broadcast %260 : vector<1x32xf32> to vector<16x32xf32>
    %282 = arith.addf %280, %281 : vector<16x32xf32>
    %283 = arith.truncf %282 : vector<16x32xf32> to vector<16x32xbf16>
    %c0_140 = arith.constant 0 : index
    %c1_141 = arith.constant 1 : index
    %c0_142 = arith.constant 0 : index
    %c0_143 = arith.constant 0 : index
    %284 = vector.load %arg14[%c0_140, %c1_141, %c0_142, %c0_143] : memref<1x2x32x64xbf16, #tpu.memory_space<vmem>>, vector<1x1x32x64xbf16>
    %285 = vector.shape_cast %284 : vector<1x1x32x64xbf16> to vector<32x64xbf16>
    %cst_144 = arith.constant dense<0.000000e+00> : vector<16x64xf32>
    %286 = tpu.matmul %283, %285, %cst_144 {dimension_numbers = #tpu.dot_dimension_numbers<[1], [0], [0], [1], [0, 0, 1, 1], [], []>} : vector<16x32xbf16>, vector<32x64xbf16>, vector<16x64xf32> -> vector<16x64xf32>
    %c0_145 = arith.constant 0 : index
    %c1_146 = arith.constant 1 : index
    %c0_147 = arith.constant 0 : index
    %c0_148 = arith.constant 0 : index
    %287 = vector.load %arg15[%c0_145, %c1_146, %c0_147, %c0_148] : memref<1x2x1x64xf32, #tpu.memory_space<vmem>>, vector<1x1x1x64xf32>
    %288 = vector.shape_cast %287 : vector<1x1x1x64xf32> to vector<1x64xf32>
    %289 = vector.broadcast %288 : vector<1x64xf32> to vector<16x64xf32>
    %290 = arith.addf %286, %289 : vector<16x64xf32>
    %cst_149 = arith.constant 5.000000e-01 : f32
    %291 = vector.broadcast %cst_149 : f32 to vector<16x64xf32>
    %292 = arith.mulf %291, %290 : vector<16x64xf32>
    %cst_150 = arith.constant 4.471500e-02 : f32
    %293 = vector.broadcast %cst_150 : f32 to vector<16x64xf32>
    %294 = arith.mulf %293, %290 : vector<16x64xf32>
    %295 = arith.mulf %294, %290 : vector<16x64xf32>
    %296 = arith.mulf %295, %290 : vector<16x64xf32>
    %297 = arith.addf %290, %296 : vector<16x64xf32>
    %cst_151 = arith.constant 0.797884583 : f32
    %298 = vector.broadcast %cst_151 : f32 to vector<16x64xf32>
    %299 = arith.mulf %298, %297 : vector<16x64xf32>
    %300 = math.tanh %299 : vector<16x64xf32>
    %cst_152 = arith.constant 1.000000e+00 : f32
    %301 = vector.broadcast %cst_152 : f32 to vector<16x64xf32>
    %302 = arith.addf %301, %300 : vector<16x64xf32>
    %303 = arith.mulf %292, %302 : vector<16x64xf32>
    %304 = arith.truncf %303 : vector<16x64xf32> to vector<16x64xbf16>
    %c0_153 = arith.constant 0 : index
    %c1_154 = arith.constant 1 : index
    %c0_155 = arith.constant 0 : index
    %c0_156 = arith.constant 0 : index
    %305 = vector.load %arg16[%c0_153, %c1_154, %c0_155, %c0_156] : memref<1x2x64x32xbf16, #tpu.memory_space<vmem>>, vector<1x1x64x32xbf16>
    %306 = vector.shape_cast %305 : vector<1x1x64x32xbf16> to vector<64x32xbf16>
    %cst_157 = arith.constant dense<0.000000e+00> : vector<16x32xf32>
    %307 = tpu.matmul %304, %306, %cst_157 {dimension_numbers = #tpu.dot_dimension_numbers<[1], [0], [0], [1], [0, 0, 1, 1], [], []>} : vector<16x64xbf16>, vector<64x32xbf16>, vector<16x32xf32> -> vector<16x32xf32>
    %c0_158 = arith.constant 0 : index
    %c1_159 = arith.constant 1 : index
    %c0_160 = arith.constant 0 : index
    %c0_161 = arith.constant 0 : index
    %308 = vector.load %arg17[%c0_158, %c1_159, %c0_160, %c0_161] : memref<1x2x1x32xf32, #tpu.memory_space<vmem>>, vector<1x1x1x32xf32>
    %309 = vector.shape_cast %308 : vector<1x1x1x32xf32> to vector<1x32xf32>
    %310 = vector.broadcast %309 : vector<1x32xf32> to vector<16x32xf32>
    %311 = arith.addf %307, %310 : vector<16x32xf32>
    %312 = arith.addf %311, %282 : vector<16x32xf32>
    %c0_162 = arith.constant 0 : index
    %c1_163 = arith.constant 1 : index
    %c0_164 = arith.constant 0 : index
    %c0_165 = arith.constant 0 : index
    %313 = vector.load %arg18[%c0_162, %c1_163, %c0_164, %c0_165] : memref<1x2x1x32xf32, #tpu.memory_space<vmem>>, vector<1x1x1x32xf32>
    %314 = vector.shape_cast %313 : vector<1x1x1x32xf32> to vector<1x32xf32>
    %c0_166 = arith.constant 0 : index
    %c1_167 = arith.constant 1 : index
    %c0_168 = arith.constant 0 : index
    %c0_169 = arith.constant 0 : index
    %315 = vector.load %arg19[%c0_166, %c1_167, %c0_168, %c0_169] : memref<1x2x1x32xf32, #tpu.memory_space<vmem>>, vector<1x1x1x32xf32>
    %316 = vector.shape_cast %315 : vector<1x1x1x32xf32> to vector<1x32xf32>
    %cst_170 = arith.constant dense<0.000000e+00> : vector<16xf32>
    %317 = vector.multi_reduction <add>, %312, %cst_170 [1] : vector<16x32xf32> to vector<16xf32>
    %318 = vector.shape_cast %317 : vector<16xf32> to vector<16x1xf32>
    %cst_171 = arith.constant 3.200000e+01 : f32
    %319 = vector.broadcast %cst_171 : f32 to vector<16x1xf32>
    %320 = arith.divf %318, %319 : vector<16x1xf32>
    %321 = vector.broadcast %320 : vector<16x1xf32> to vector<16x32xf32>
    %322 = arith.subf %312, %321 : vector<16x32xf32>
    %323 = arith.mulf %322, %322 : vector<16x32xf32>
    %cst_172 = arith.constant dense<0.000000e+00> : vector<16xf32>
    %324 = vector.multi_reduction <add>, %323, %cst_172 [1] : vector<16x32xf32> to vector<16xf32>
    %325 = vector.shape_cast %324 : vector<16xf32> to vector<16x1xf32>
    %cst_173 = arith.constant 3.200000e+01 : f32
    %326 = vector.broadcast %cst_173 : f32 to vector<16x1xf32>
    %327 = arith.divf %325, %326 : vector<16x1xf32>
    %328 = vector.broadcast %320 : vector<16x1xf32> to vector<16x32xf32>
    %329 = arith.subf %312, %328 : vector<16x32xf32>
    %cst_174 = arith.constant 9.99999996E-13 : f32
    %330 = vector.broadcast %cst_174 : f32 to vector<16x1xf32>
    %331 = arith.addf %327, %330 : vector<16x1xf32>
    %332 = math.rsqrt %331 : vector<16x1xf32>
    %333 = vector.broadcast %332 : vector<16x1xf32> to vector<16x32xf32>
    %334 = arith.mulf %329, %333 : vector<16x32xf32>
    %335 = vector.broadcast %314 : vector<1x32xf32> to vector<16x32xf32>
    %336 = arith.mulf %334, %335 : vector<16x32xf32>
    %337 = vector.broadcast %316 : vector<1x32xf32> to vector<16x32xf32>
    %338 = arith.addf %336, %337 : vector<16x32xf32>
    %c0_175 = arith.constant 0 : index
    %c0_176 = arith.constant 0 : index
    %339 = vector.load %arg2[%c0_175, %c0_176] : memref<2x1xi32, #tpu.memory_space<vmem>>, vector<2x1xi32>
    %340 = tpu.iota {dimensions = array<i32: 0>} : vector<2x1xi32>
    %c8_i32 = arith.constant 8 : i32
    %341 = vector.broadcast %c8_i32 : i32 to vector<2x1xi32>
    %342 = arith.muli %340, %341 : vector<2x1xi32>
    %343 = arith.addi %339, %342 : vector<2x1xi32>
    %344 = tpu.iota {dimensions = array<i32: 1>} : vector<2x16xi32>
    %345 = vector.broadcast %343 : vector<2x1xi32> to vector<2x16xi32>
    %346 = arith.cmpi eq, %344, %345 : vector<2x16xi32>
    %347 = arith.extui %346 : vector<2x16xi1> to vector<2x16xi32>
    %348 = arith.sitofp %347 : vector<2x16xi32> to vector<2x16xf32>
    %cst_177 = arith.constant dense<0.000000e+00> : vector<2x32xf32>
    %349 = tpu.matmul %348, %338, %cst_177 {dimension_numbers = #tpu.dot_dimension_numbers<[1], [0], [0], [1], [0, 0, 1, 1], [], []>} : vector<2x16xf32>, vector<16x32xf32>, vector<2x32xf32> -> vector<2x32xf32>
    %350 = arith.truncf %349 : vector<2x32xf32> to vector<2x32xbf16>
    %c0_178 = arith.constant 0 : index
    %c0_179 = arith.constant 0 : index
    %c0_180 = arith.constant 0 : index
    %351 = vector.load %arg20[%c0_178, %c0_179, %c0_180] : memref<1x32x128xbf16, #tpu.memory_space<vmem>>, vector<1x32x128xbf16>
    %352 = vector.shape_cast %351 : vector<1x32x128xbf16> to vector<32x128xbf16>
    %cst_181 = arith.constant dense<0.000000e+00> : vector<2x128xf32>
    %353 = tpu.matmul %350, %352, %cst_181 {dimension_numbers = #tpu.dot_dimension_numbers<[1], [0], [0], [1], [0, 0, 1, 1], [], []>} : vector<2x32xbf16>, vector<32x128xbf16>, vector<2x128xf32> -> vector<2x128xf32>
    %c0_182 = arith.constant 0 : index
    %c0_183 = arith.constant 0 : index
    %c0_184 = arith.constant 0 : index
    %354 = vector.load %arg21[%c0_182, %c0_183, %c0_184] : memref<1x1x128xf32, #tpu.memory_space<vmem>>, vector<1x1x128xf32>
    %355 = vector.shape_cast %354 : vector<1x1x128xf32> to vector<1x128xf32>
    %356 = vector.broadcast %355 : vector<1x128xf32> to vector<2x128xf32>
    %357 = arith.addf %353, %356 : vector<2x128xf32>
    %c0_185 = arith.constant 0 : index
    %c0_186 = arith.constant 0 : index
    %c0_187 = arith.constant 0 : index
    %358 = vector.load %arg22[%c0_185, %c0_186, %c0_187] : memref<1x2x128xf32, #tpu.memory_space<vmem>>, vector<1x2x128xf32>
    %359 = vector.shape_cast %358 : vector<1x2x128xf32> to vector<2x128xf32>
    %360 = vector.shape_cast %357 : vector<2x128xf32> to vector<1x2x128xf32>
    tpu.vector_store %arg22[%c0_185, %c0_186, %c0_187], %360 {strides = array<i32>} : memref<1x2x128xf32, #tpu.memory_space<vmem>>, vector<1x2x128xf32>,
    return
  }
  func.func @transform_0(%arg0: i32) -> (i32, i32) {
    %c0_i32 = arith.constant 0 : i32
    %c0_i32_0 = arith.constant 0 : i32
    %c0_i32_1 = arith.constant 0 : i32
    return %c0_i32, %c0_i32_0 : i32, i32
  }
  func.func @transform_1(%arg0: i32) -> (i32, i32) {
    %c0_i32 = arith.constant 0 : i32
    %c0_i32_0 = arith.constant 0 : i32
    %c0_i32_1 = arith.constant 0 : i32
    return %c0_i32, %c0_i32_0 : i32, i32
  }
  func.func @transform_2(%arg0: i32) -> (i32, i32) {
    %c0_i32 = arith.constant 0 : i32
    %c0_i32_0 = arith.constant 0 : i32
    %c0_i32_1 = arith.constant 0 : i32
    return %c0_i32, %c0_i32_0 : i32, i32
  }
  func.func @transform_3(%arg0: i32) -> (i32, i32, i32) {
    %c0_i32 = arith.constant 0 : i32
    %c0_i32_0 = arith.constant 0 : i32
    %c0_i32_1 = arith.constant 0 : i32
    return %arg0, %c0_i32, %c0_i32_0 : i32, i32, i32
  }
  func.func @transform_4(%arg0: i32) -> (i32, i32, i32) {
    %c0_i32 = arith.constant 0 : i32
    %c0_i32_0 = arith.constant 0 : i32
    %c0_i32_1 = arith.constant 0 : i32
    return %arg0, %c0_i32, %c0_i32_0 : i32, i32, i32
  }
  func.func @transform_5(%arg0: i32) -> (i32, i32, i32) {
    %c0_i32 = arith.constant 0 : i32
    %c0_i32_0 = arith.constant 0 : i32
    %c0_i32_1 = arith.constant 0 : i32
    return %arg0, %c0_i32, %c0_i32_0 : i32, i32, i32
  }
  func.func @transform_6(%arg0: i32) -> (i32, i32, i32) {
    %c0_i32 = arith.constant 0 : i32
    %c0_i32_0 = arith.constant 0 : i32
    %c0_i32_1 = arith.constant 0 : i32
    return %arg0, %c0_i32, %c0_i32_0 : i32, i32, i32
  }
  func.func @transform_7(%arg0: i32) -> (i32, i32, i32, i32) {
    %c0_i32 = arith.constant 0 : i32
    %c0_i32_0 = arith.constant 0 : i32
    %c0_i32_1 = arith.constant 0 : i32
    %c0_i32_2 = arith.constant 0 : i32
    return %arg0, %c0_i32, %c0_i32_0, %c0_i32_1 : i32, i32, i32, i32
  }
  func.func @transform_8(%arg0: i32) -> (i32, i32, i32, i32) {
    %c0_i32 = arith.constant 0 : i32
    %c0_i32_0 = arith.constant 0 : i32
    %c0_i32_1 = arith.constant 0 : i32
    %c0_i32_2 = arith.constant 0 : i32
    return %arg0, %c0_i32, %c0_i32_0, %c0_i32_1 : i32, i32, i32, i32
  }
  func.func @transform_9(%arg0: i32) -> (i32, i32, i32, i32) {
    %c0_i32 = arith.constant 0 : i32
    %c0_i32_0 = arith.constant 0 : i32
    %c0_i32_1 = arith.constant 0 : i32
    %c0_i32_2 = arith.constant 0 : i32
    return %arg0, %c0_i32, %c0_i32_0, %c0_i32_1 : i32, i32, i32, i32
  }
  func.func @transform_10(%arg0: i32) -> (i32, i32, i32, i32) {
    %c0_i32 = arith.constant 0 : i32
    %c0_i32_0 = arith.constant 0 : i32
    %c0_i32_1 = arith.constant 0 : i32
    %c0_i32_2 = arith.constant 0 : i32
    return %arg0, %c0_i32, %c0_i32_0, %c0_i32_1 : i32, i32, i32, i32
  }
  func.func @transform_11(%arg0: i32) -> (i32, i32, i32, i32) {
    %c0_i32 = arith.constant 0 : i32
    %c0_i32_0 = arith.constant 0 : i32
    %c0_i32_1 = arith.constant 0 : i32
    %c0_i32_2 = arith.constant 0 : i32
    return %arg0, %c0_i32, %c0_i32_0, %c0_i32_1 : i32, i32, i32, i32
  }
  func.func @transform_12(%arg0: i32) -> (i32, i32, i32, i32) {
    %c0_i32 = arith.constant 0 : i32
    %c0_i32_0 = arith.constant 0 : i32
    %c0_i32_1 = arith.constant 0 : i32
    %c0_i32_2 = arith.constant 0 : i32
    return %arg0, %c0_i32, %c0_i32_0, %c0_i32_1 : i32, i32, i32, i32
  }
  func.func @transform_13(%arg0: i32) -> (i32, i32, i32, i32) {
    %c0_i32 = arith.constant 0 : i32
    %c0_i32_0 = arith.constant 0 : i32
    %c0_i32_1 = arith.constant 0 : i32
    %c0_i32_2 = arith.constant 0 : i32
    return %arg0, %c0_i32, %c0_i32_0, %c0_i32_1 : i32, i32, i32, i32
  }
  func.func @transform_14(%arg0: i32) -> (i32, i32, i32, i32) {
    %c0_i32 = arith.constant 0 : i32
    %c0_i32_0 = arith.constant 0 : i32
    %c0_i32_1 = arith.constant 0 : i32
    %c0_i32_2 = arith.constant 0 : i32
    return %arg0, %c0_i32, %c0_i32_0, %c0_i32_1 : i32, i32, i32, i32
  }
  func.func @transform_15(%arg0: i32) -> (i32, i32, i32, i32) {
    %c0_i32 = arith.constant 0 : i32
    %c0_i32_0 = arith.constant 0 : i32
    %c0_i32_1 = arith.constant 0 : i32
    %c0_i32_2 = arith.constant 0 : i32
    return %arg0, %c0_i32, %c0_i32_0, %c0_i32_1 : i32, i32, i32, i32
  }
  func.func @transform_16(%arg0: i32) -> (i32, i32, i32, i32) {
    %c0_i32 = arith.constant 0 : i32
    %c0_i32_0 = arith.constant 0 : i32
    %c0_i32_1 = arith.constant 0 : i32
    %c0_i32_2 = arith.constant 0 : i32
    return %arg0, %c0_i32, %c0_i32_0, %c0_i32_1 : i32, i32, i32, i32
  }
  func.func @transform_17(%arg0: i32) -> (i32, i32, i32, i32) {
    %c0_i32 = arith.constant 0 : i32
    %c0_i32_0 = arith.constant 0 : i32
    %c0_i32_1 = arith.constant 0 : i32
    %c0_i32_2 = arith.constant 0 : i32
    return %arg0, %c0_i32, %c0_i32_0, %c0_i32_1 : i32, i32, i32, i32
  }
  func.func @transform_18(%arg0: i32) -> (i32, i32, i32, i32) {
    %c0_i32 = arith.constant 0 : i32
    %c0_i32_0 = arith.constant 0 : i32
    %c0_i32_1 = arith.constant 0 : i32
    %c0_i32_2 = arith.constant 0 : i32
    return %arg0, %c0_i32, %c0_i32_0, %c0_i32_1 : i32, i32, i32, i32
  }
  func.func @transform_19(%arg0: i32) -> (i32, i32, i32) {
    %c0_i32 = arith.constant 0 : i32
    %c0_i32_0 = arith.constant 0 : i32
    %c0_i32_1 = arith.constant 0 : i32
    return %arg0, %c0_i32, %c0_i32_0 : i32, i32, i32
  }
  func.func @transform_20(%arg0: i32) -> (i32, i32, i32) {
    %c0_i32 = arith.constant 0 : i32
    %c0_i32_0 = arith.constant 0 : i32
    %c0_i32_1 = arith.constant 0 : i32
    return %arg0, %c0_i32, %c0_i32_0 : i32, i32, i32
  }
  func.func @transform_21(%arg0: i32) -> (i32, i32, i32) {
    %c0_i32 = arith.constant 0 : i32
    %c0_i32_0 = arith.constant 0 : i32
    %c0_i32_1 = arith.constant 0 : i32
    return %arg0, %c0_i32, %c0_i32_0 : i32, i32, i32
  }
}

</mosaic_0001>

<llo_original>
// kernel: eq.8
$region0: #{eq.8}
  %s0 = inlined_call_operand.vmem [shape: s32[2,8], index: 0, kind: input, shape index: {}]
  %s1 = inlined_call_operand.vmem [shape: s32[16], index: 1, kind: output, shape index: {}]
  $region1: #{eq.8} parent=0
    #allocation0 [shape = 'u8[4096]{0}', space=vmem, size = 0x1000, scoped, tag = 'scoped mem for output reshape']
    #allocation1 [shape = 'u8[4096]{0}', space=vmem, size = 0x1000, scoped, tag = 'scoped mem for input reshape']
    %s3 = sshllo.u32 0, 2
    %v4 = vld [vmem:[%s0] sm:%s3]
    %5 = vst [vmem:[#allocation1] sm:%s3] %v4
    %v6 = vld [vmem:[#allocation1] sm:$0x1]
    %vm7 = vcmask 64512
    %8 = vst.msk [vmem:[#allocation0] sm:$0x1] %vm7, %v6
    %s9 = scalar_lea.vmem [#allocation1], 1
    %v10 = vld [vmem:[%s9] sm:$0x1]
    %11 = vrot.lane.b32.xlu0 %v10, 8
    %v12 = vpop.permute.xlu0 %11
    %vm13 = vcmask 130112
    %14 = vst.msk [vmem:[#allocation0] sm:$0x1] %vm13, %v12
    %s16 = sshllo.u32 0, 1
    %v18 = vld [vmem:[#allocation0] sm:%s16]
    %s19 = sshllo.u32 0, 1
    %20 = vst [vmem:[%s1] sm:%s19] %v18

// kernel: bert_combined_forward.1
$region0: #{bert_combined_forward.1}
  #allocation0 [shape = 'u32[]', space=smem, size = 0x4, offset = 0x4, fixed_abs, tag = 'smem constant byte address 0x4 - core index']
  #allocation1 [shape = 'u32[144,128]{1,0:T(1,128)}', space=vmem, size = 0x12000, scoped, tag = 'internal scratch']
  %s0 = inlined_call_operand.vmem [shape: s32[16,1], index: 0, kind: input, shape index: {}]
  %s1 = inlined_call_operand.vmem [shape: s32[2,1], index: 1, kind: input, shape index: {}]
  %s2 = inlined_call_operand.vmem [shape: f32[16,16], index: 2, kind: input, shape index: {}]
  %s3 = inlined_call_operand.vmem [shape: f32[2,64,32], index: 3, kind: input, shape index: {}]
  %s4 = inlined_call_operand.vmem [shape: f32[2,16,32], index: 4, kind: input, shape index: {}]
  %s5 = inlined_call_operand.vmem [shape: f32[2,1,32], index: 5, kind: input, shape index: {}]
  %s6 = inlined_call_operand.vmem [shape: f32[2,1,32], index: 6, kind: input, shape index: {}]
  %s7 = inlined_call_operand.vmem [shape: bf16[2,2,32,96], index: 7, kind: input, shape index: {}]
  %s8 = inlined_call_operand.vmem [shape: f32[2,2,1,96], index: 8, kind: input, shape index: {}]
  %s9 = inlined_call_operand.vmem [shape: bf16[2,2,32,32], index: 9, kind: input, shape index: {}]
  %s10 = inlined_call_operand.vmem [shape: f32[2,2,1,32], index: 10, kind: input, shape index: {}]
  %s11 = inlined_call_operand.vmem [shape: f32[2,2,1,32], index: 11, kind: input, shape index: {}]
  %s12 = inlined_call_operand.vmem [shape: f32[2,2,1,32], index: 12, kind: input, shape index: {}]
  %s13 = inlined_call_operand.vmem [shape: bf16[2,2,32,64], index: 13, kind: input, shape index: {}]
  %s14 = inlined_call_operand.vmem [shape: f32[2,2,1,64], index: 14, kind: input, shape index: {}]
  %s15 = inlined_call_operand.vmem [shape: bf16[2,2,64,32], index: 15, kind: input, shape index: {}]
  %s16 = inlined_call_operand.vmem [shape: f32[2,2,1,32], index: 16, kind: input, shape index: {}]
  %s17 = inlined_call_operand.vmem [shape: f32[2,2,1,32], index: 17, kind: input, shape index: {}]
  %s18 = inlined_call_operand.vmem [shape: f32[2,2,1,32], index: 18, kind: input, shape index: {}]
  %s19 = inlined_call_operand.vmem [shape: bf16[2,32,128], index: 19, kind: input, shape index: {}]
  %s20 = inlined_call_operand.vmem [shape: f32[2,1,128], index: 20, kind: input, shape index: {}]
  %s21 = inlined_call_operand.vmem [shape: f32[2,2,128], index: 21, kind: output, shape index: {}]
  %s22 = sld [smem:[#allocation0]]
  $region117: #{bert_combined_forward.1} parent=0
    _
  %s24 = ssub.s32 1, %s22
  %s25 = scalar_select 0, %s24, %s22
  loop: start=0, step=1, limit=4
  $region2: #{bert_combined_forward.1} parent=0 // loop_pre_header
    _
  $region3: #{bert_combined_forward.1} parent=0 // loop_header
    %s27 = sphi 0, %s31
    %p28 = scmp.ge.s32.totalorder %s27, 4
    %s35 = sphi 0, %s35
    %s37 = sphi 0, %s35
    %s38 = sphi 0, %s37
    %s52 = sphi 0, %s38
    %s56 = sphi 0, %s56
    %s58 = sphi 0, %s56
    %s59 = sphi 0, %s58
    %s73 = sphi 0, %s59
    %s77 = sphi 0, %s77
    %s79 = sphi 0, %s77
    %s80 = sphi 0, %s79
    %s94 = sphi 0, %s80
    %s100 = sphi 0, %s102
    %s103 = sphi 0, %s100
    %s104 = sphi 0, %s103
    %s120 = sphi 0, %s104
    %s126 = sphi 0, %s128
    %s129 = sphi 0, %s126
    %s130 = sphi 0, %s129
    %s146 = sphi 0, %s130
    %s152 = sphi 0, %s154
    %s155 = sphi 0, %s152
    %s156 = sphi 0, %s155
    %s172 = sphi 0, %s156
    %s178 = sphi 0, %s180
    %s181 = sphi 0, %s178
    %s182 = sphi 0, %s181
    %s198 = sphi 0, %s182
    %s204 = sphi 0, %s206
    %s207 = sphi 0, %s204
    %s208 = sphi 0, %s207
    %s224 = sphi 0, %s208
    %s230 = sphi 0, %s232
    %s233 = sphi 0, %s230
    %s234 = sphi 0, %s233
    %s250 = sphi 0, %s234
    %s256 = sphi 0, %s258
    %s259 = sphi 0, %s256
    %s260 = sphi 0, %s259
    %s276 = sphi 0, %s260
    %s282 = sphi 0, %s284
    %s285 = sphi 0, %s282
    %s286 = sphi 0, %s285
    %s302 = sphi 0, %s286
    %s308 = sphi 0, %s310
    %s311 = sphi 0, %s308
    %s312 = sphi 0, %s311
    %s328 = sphi 0, %s312
    %s334 = sphi 0, %s336
    %s337 = sphi 0, %s334
    %s338 = sphi 0, %s337
    %s354 = sphi 0, %s338
    %s360 = sphi 0, %s362
    %s363 = sphi 0, %s360
    %s364 = sphi 0, %s363
    %s380 = sphi 0, %s364
    %s386 = sphi 0, %s388
    %s389 = sphi 0, %s386
    %s390 = sphi 0, %s389
    %s406 = sphi 0, %s390
    %s412 = sphi 0, %s414
    %s415 = sphi 0, %s412
    %s416 = sphi 0, %s415
    %s432 = sphi 0, %s416
    %s438 = sphi 0, %s440
    %s441 = sphi 0, %s438
    %s442 = sphi 0, %s441
    %s458 = sphi 0, %s442
    %s464 = sphi 0, %s466
    %s467 = sphi 0, %s464
    %s468 = sphi 0, %s467
    %s484 = sphi 0, %s468
    %s490 = sphi 0, %s492
    %s493 = sphi 0, %s490
    %s494 = sphi 0, %s493
    %s510 = sphi 0, %s494
    %s516 = sphi 0, %s518
    %s519 = sphi 0, %s516
    %s520 = sphi 0, %s519
    %s536 = sphi 0, %s520
    %s542 = sphi 0, %s544
    %s545 = sphi 0, %s542
    %s546 = sphi 0, %s545
    %s562 = sphi 0, %s546
    %s568 = sphi 0, %s570
    %s571 = sphi 0, %s568
    %s572 = sphi 0, %s571
    %s588 = sphi 0, %s572
  $region4: #{bert_combined_forward.1} parent=0 // loop_header_branch
    %30 = sbr.rel (%p28) target = $region8
  $region5: #{bert_combined_forward.1} parent=0 // loop_body
    %s32 = ssub.s32 %s27, 1
    %s33 = ssub.s32 %s27, 2
    %s34 = sadd.s32 %s27, 1
    %s36 = sadd.s32 %s35, 1
    %p39 = scmp.eq.s32.totalorder %s27, 1
    %p40 = scmp.ne.s32.totalorder %s35, %s37
    %p41 = scmp.eq.s32.totalorder %s27, 0
    %p42 = por %p40, %p41
    %p43 = scmp.ne.s32.totalorder %s35, %s37
    %p44 = scmp.eq.s32.totalorder %s32, 1
    %p45 = por %p43, %p44
    %p46 = scmp.ne.s32.totalorder %s37, %s38
    %p47 = scmp.eq.s32.totalorder %s32, 0
    %p48 = por %p46, %p47
    %p49 = scmp.ne.s32.totalorder %s37, %s38
    %p50 = scmp.eq.s32.totalorder %s33, 1
    %p51 = por %p49, %p50
    %p53 = scmp.ne.s32.totalorder %s38, %s52
    %p54 = scmp.eq.s32.totalorder %s33, 0
    %p55 = por %p53, %p54
    %s57 = sadd.s32 %s56, 1
    %p60 = scmp.eq.s32.totalorder %s27, 1
    %p61 = scmp.ne.s32.totalorder %s56, %s58
    %p62 = scmp.eq.s32.totalorder %s27, 0
    %p63 = por %p61, %p62
    %p64 = scmp.ne.s32.totalorder %s56, %s58
    %p65 = scmp.eq.s32.totalorder %s32, 1
    %p66 = por %p64, %p65
    %p67 = scmp.ne.s32.totalorder %s58, %s59
    %p68 = scmp.eq.s32.totalorder %s32, 0
    %p69 = por %p67, %p68
    %p70 = scmp.ne.s32.totalorder %s58, %s59
    %p71 = scmp.eq.s32.totalorder %s33, 1
    %p72 = por %p70, %p71
    %p74 = scmp.ne.s32.totalorder %s59, %s73
    %p75 = scmp.eq.s32.totalorder %s33, 0
    %p76 = por %p74, %p75
    %s78 = sadd.s32 %s77, 1
    %p81 = scmp.eq.s32.totalorder %s27, 1
    %p82 = scmp.ne.s32.totalorder %s77, %s79
    %p83 = scmp.eq.s32.totalorder %s27, 0
    %p84 = por %p82, %p83
    %p85 = scmp.ne.s32.totalorder %s77, %s79
    %p86 = scmp.eq.s32.totalorder %s32, 1
    %p87 = por %p85, %p86
    %p88 = scmp.ne.s32.totalorder %s79, %s80
    %p89 = scmp.eq.s32.totalorder %s32, 0
    %p90 = por %p88, %p89
    %p91 = scmp.ne.s32.totalorder %s79, %s80
    %p92 = scmp.eq.s32.totalorder %s33, 1
    %p93 = por %p91, %p92
    %p95 = scmp.ne.s32.totalorder %s80, %s94
    %p96 = scmp.eq.s32.totalorder %s33, 0
    %p97 = por %p95, %p96
    %s98 = ssub.s32 %s27, %s34
    %p99 = scmp.eq.s32.totalorder %s98, 0
    %s101 = sadd.s32 %s100, 1
    %s102 = scalar_select %p99, %s100, %s101
    %p105 = pneg %p99
    %p106 = scmp.eq.s32.totalorder %s27, 1
    %p107 = por %p105, %p106
    %p108 = scmp.ne.s32.totalorder %s100, %s103
    %p109 = scmp.eq.s32.totalorder %s27, 0
    %p110 = por %p108, %p109
    %p111 = scmp.ne.s32.totalorder %s100, %s103
    %p112 = scmp.eq.s32.totalorder %s32, 1
    %p113 = por %p111, %p112
    %p114 = scmp.ne.s32.totalorder %s103, %s104
    %p115 = scmp.eq.s32.totalorder %s32, 0
    %p116 = por %p114, %p115
    %p117 = scmp.ne.s32.totalorder %s103, %s104
    %p118 = scmp.eq.s32.totalorder %s33, 1
    %p119 = por %p117, %p118
    %p121 = scmp.ne.s32.totalorder %s104, %s120
    %p122 = scmp.eq.s32.totalorder %s33, 0
    %p123 = por %p121, %p122
    %s124 = ssub.s32 %s27, %s34
    %p125 = scmp.eq.s32.totalorder %s124, 0
    %s127 = sadd.s32 %s126, 1
    %s128 = scalar_select %p125, %s126, %s127
    %p131 = pneg %p125
    %p132 = scmp.eq.s32.totalorder %s27, 1
    %p133 = por %p131, %p132
    %p134 = scmp.ne.s32.totalorder %s126, %s129
    %p135 = scmp.eq.s32.totalorder %s27, 0
    %p136 = por %p134, %p135
    %p137 = scmp.ne.s32.totalorder %s126, %s129
    %p138 = scmp.eq.s32.totalorder %s32, 1
    %p139 = por %p137, %p138
    %p140 = scmp.ne.s32.totalorder %s129, %s130
    %p141 = scmp.eq.s32.totalorder %s32, 0
    %p142 = por %p140, %p141
    %p143 = scmp.ne.s32.totalorder %s129, %s130
    %p144 = scmp.eq.s32.totalorder %s33, 1
    %p145 = por %p143, %p144
    %p147 = scmp.ne.s32.totalorder %s130, %s146
    %p148 = scmp.eq.s32.totalorder %s33, 0
    %p149 = por %p147, %p148
    %s150 = ssub.s32 %s27, %s34
    %p151 = scmp.eq.s32.totalorder %s150, 0
    %s153 = sadd.s32 %s152, 1
    %s154 = scalar_select %p151, %s152, %s153
    %p157 = pneg %p151
    %p158 = scmp.eq.s32.totalorder %s27, 1
    %p159 = por %p157, %p158
    %p160 = scmp.ne.s32.totalorder %s152, %s155
    %p161 = scmp.eq.s32.totalorder %s27, 0
    %p162 = por %p160, %p161
    %p163 = scmp.ne.s32.totalorder %s152, %s155
    %p164 = scmp.eq.s32.totalorder %s32, 1
    %p165 = por %p163, %p164
    %p166 = scmp.ne.s32.totalorder %s155, %s156
    %p167 = scmp.eq.s32.totalorder %s32, 0
    %p168 = por %p166, %p167
    %p169 = scmp.ne.s32.totalorder %s155, %s156
    %p170 = scmp.eq.s32.totalorder %s33, 1
    %p171 = por %p169, %p170
    %p173 = scmp.ne.s32.totalorder %s156, %s172
    %p174 = scmp.eq.s32.totalorder %s33, 0
    %p175 = por %p173, %p174
    %s176 = ssub.s32 %s27, %s34
    %p177 = scmp.eq.s32.totalorder %s176, 0
    %s179 = sadd.s32 %s178, 1
    %s180 = scalar_select %p177, %s178, %s179
    %p183 = pneg %p177
    %p184 = scmp.eq.s32.totalorder %s27, 1
    %p185 = por %p183, %p184
    %p186 = scmp.ne.s32.totalorder %s178, %s181
    %p187 = scmp.eq.s32.totalorder %s27, 0
    %p188 = por %p186, %p187
    %p189 = scmp.ne.s32.totalorder %s178, %s181
    %p190 = scmp.eq.s32.totalorder %s32, 1
    %p191 = por %p189, %p190
    %p192 = scmp.ne.s32.totalorder %s181, %s182
    %p193 = scmp.eq.s32.totalorder %s32, 0
    %p194 = por %p192, %p193
    %p195 = scmp.ne.s32.totalorder %s181, %s182
    %p196 = scmp.eq.s32.totalorder %s33, 1
    %p197 = por %p195, %p196
    %p199 = scmp.ne.s32.totalorder %s182, %s198
    %p200 = scmp.eq.s32.totalorder %s33, 0
    %p201 = por %p199, %p200
    %s202 = ssub.s32 %s27, %s34
    %p203 = scmp.eq.s32.totalorder %s202, 0
    %s205 = sadd.s32 %s204, 1
    %s206 = scalar_select %p203, %s204, %s205
    %p209 = pneg %p203
    %p210 = scmp.eq.s32.totalorder %s27, 1
    %p211 = por %p209, %p210
    %p212 = scmp.ne.s32.totalorder %s204, %s207
    %p213 = scmp.eq.s32.totalorder %s27, 0
    %p214 = por %p212, %p213
    %p215 = scmp.ne.s32.totalorder %s204, %s207
    %p216 = scmp.eq.s32.totalorder %s32, 1
    %p217 = por %p215, %p216
    %p218 = scmp.ne.s32.totalorder %s207, %s208
    %p219 = scmp.eq.s32.totalorder %s32, 0
    %p220 = por %p218, %p219
    %p221 = scmp.ne.s32.totalorder %s207, %s208
    %p222 = scmp.eq.s32.totalorder %s33, 1
    %p223 = por %p221, %p222
    %p225 = scmp.ne.s32.totalorder %s208, %s224
    %p226 = scmp.eq.s32.totalorder %s33, 0
    %p227 = por %p225, %p226
    %s228 = ssub.s32 %s27, %s34
    %p229 = scmp.eq.s32.totalorder %s228, 0
    %s231 = sadd.s32 %s230, 1
    %s232 = scalar_select %p229, %s230, %s231
    %p235 = pneg %p229
    %p236 = scmp.eq.s32.totalorder %s27, 1
    %p237 = por %p235, %p236
    %p238 = scmp.ne.s32.totalorder %s230, %s233
    %p239 = scmp.eq.s32.totalorder %s27, 0
    %p240 = por %p238, %p239
    %p241 = scmp.ne.s32.totalorder %s230, %s233
    %p242 = scmp.eq.s32.totalorder %s32, 1
    %p243 = por %p241, %p242
    %p244 = scmp.ne.s32.totalorder %s233, %s234
    %p245 = scmp.eq.s32.totalorder %s32, 0
    %p246 = por %p244, %p245
    %p247 = scmp.ne.s32.totalorder %s233, %s234
    %p248 = scmp.eq.s32.totalorder %s33, 1
    %p249 = por %p247, %p248
    %p251 = scmp.ne.s32.totalorder %s234, %s250
    %p252 = scmp.eq.s32.totalorder %s33, 0
    %p253 = por %p251, %p252
    %s254 = ssub.s32 %s27, %s34
    %p255 = scmp.eq.s32.totalorder %s254, 0
    %s257 = sadd.s32 %s256, 1
    %s258 = scalar_select %p255, %s256, %s257
    %p261 = pneg %p255
    %p262 = scmp.eq.s32.totalorder %s27, 1
    %p263 = por %p261, %p262
    %p264 = scmp.ne.s32.totalorder %s256, %s259
    %p265 = scmp.eq.s32.totalorder %s27, 0
    %p266 = por %p264, %p265
    %p267 = scmp.ne.s32.totalorder %s256, %s259
    %p268 = scmp.eq.s32.totalorder %s32, 1
    %p269 = por %p267, %p268
    %p270 = scmp.ne.s32.totalorder %s259, %s260
    %p271 = scmp.eq.s32.totalorder %s32, 0
    %p272 = por %p270, %p271
    %p273 = scmp.ne.s32.totalorder %s259, %s260
    %p274 = scmp.eq.s32.totalorder %s33, 1
    %p275 = por %p273, %p274
    %p277 = scmp.ne.s32.totalorder %s260, %s276
    %p278 = scmp.eq.s32.totalorder %s33, 0
    %p279 = por %p277, %p278
    %s280 = ssub.s32 %s27, %s34
    %p281 = scmp.eq.s32.totalorder %s280, 0
    %s283 = sadd.s32 %s282, 1
    %s284 = scalar_select %p281, %s282, %s283
    %p287 = pneg %p281
    %p288 = scmp.eq.s32.totalorder %s27, 1
    %p289 = por %p287, %p288
    %p290 = scmp.ne.s32.totalorder %s282, %s285
    %p291 = scmp.eq.s32.totalorder %s27, 0
    %p292 = por %p290, %p291
    %p293 = scmp.ne.s32.totalorder %s282, %s285
    %p294 = scmp.eq.s32.totalorder %s32, 1
    %p295 = por %p293, %p294
    %p296 = scmp.ne.s32.totalorder %s285, %s286
    %p297 = scmp.eq.s32.totalorder %s32, 0
    %p298 = por %p296, %p297
    %p299 = scmp.ne.s32.totalorder %s285, %s286
    %p300 = scmp.eq.s32.totalorder %s33, 1
    %p301 = por %p299, %p300
    %p303 = scmp.ne.s32.totalorder %s286, %s302
    %p304 = scmp.eq.s32.totalorder %s33, 0
    %p305 = por %p303, %p304
    %s306 = ssub.s32 %s27, %s34
    %p307 = scmp.eq.s32.totalorder %s306, 0
    %s309 = sadd.s32 %s308, 1
    %s310 = scalar_select %p307, %s308, %s309
    %p313 = pneg %p307
    %p314 = scmp.eq.s32.totalorder %s27, 1
    %p315 = por %p313, %p314
    %p316 = scmp.ne.s32.totalorder %s308, %s311
    %p317 = scmp.eq.s32.totalorder %s27, 0
    %p318 = por %p316, %p317
    %p319 = scmp.ne.s32.totalorder %s308, %s311
    %p320 = scmp.eq.s32.totalorder %s32, 1
    %p321 = por %p319, %p320
    %p322 = scmp.ne.s32.totalorder %s311, %s312
    %p323 = scmp.eq.s32.totalorder %s32, 0
    %p324 = por %p322, %p323
    %p325 = scmp.ne.s32.totalorder %s311, %s312
    %p326 = scmp.eq.s32.totalorder %s33, 1
    %p327 = por %p325, %p326
    %p329 = scmp.ne.s32.totalorder %s312, %s328
    %p330 = scmp.eq.s32.totalorder %s33, 0
    %p331 = por %p329, %p330
    %s332 = ssub.s32 %s27, %s34
    %p333 = scmp.eq.s32.totalorder %s332, 0
    %s335 = sadd.s32 %s334, 1
    %s336 = scalar_select %p333, %s334, %s335
    %p339 = pneg %p333
    %p340 = scmp.eq.s32.totalorder %s27, 1
    %p341 = por %p339, %p340
    %p342 = scmp.ne.s32.totalorder %s334, %s337
    %p343 = scmp.eq.s32.totalorder %s27, 0
    %p344 = por %p342, %p343
    %p345 = scmp.ne.s32.totalorder %s334, %s337
    %p346 = scmp.eq.s32.totalorder %s32, 1
    %p347 = por %p345, %p346
    %p348 = scmp.ne.s32.totalorder %s337, %s338
    %p349 = scmp.eq.s32.totalorder %s32, 0
    %p350 = por %p348, %p349
    %p351 = scmp.ne.s32.totalorder %s337, %s338
    %p352 = scmp.eq.s32.totalorder %s33, 1
    %p353 = por %p351, %p352
    %p355 = scmp.ne.s32.totalorder %s338, %s354
    %p356 = scmp.eq.s32.totalorder %s33, 0
    %p357 = por %p355, %p356
    %s358 = ssub.s32 %s27, %s34
    %p359 = scmp.eq.s32.totalorder %s358, 0
    %s361 = sadd.s32 %s360, 1
    %s362 = scalar_select %p359, %s360, %s361
    %p365 = pneg %p359
    %p366 = scmp.eq.s32.totalorder %s27, 1
    %p367 = por %p365, %p366
    %p368 = scmp.ne.s32.totalorder %s360, %s363
    %p369 = scmp.eq.s32.totalorder %s27, 0
    %p370 = por %p368, %p369
    %p371 = scmp.ne.s32.totalorder %s360, %s363
    %p372 = scmp.eq.s32.totalorder %s32, 1
    %p373 = por %p371, %p372
    %p374 = scmp.ne.s32.totalorder %s363, %s364
    %p375 = scmp.eq.s32.totalorder %s32, 0
    %p376 = por %p374, %p375
    %p377 = scmp.ne.s32.totalorder %s363, %s364
    %p378 = scmp.eq.s32.totalorder %s33, 1
    %p379 = por %p377, %p378
    %p381 = scmp.ne.s32.totalorder %s364, %s380
    %p382 = scmp.eq.s32.totalorder %s33, 0
    %p383 = por %p381, %p382
    %s384 = ssub.s32 %s27, %s34
    %p385 = scmp.eq.s32.totalorder %s384, 0
    %s387 = sadd.s32 %s386, 1
    %s388 = scalar_select %p385, %s386, %s387
    %p391 = pneg %p385
    %p392 = scmp.eq.s32.totalorder %s27, 1
    %p393 = por %p391, %p392
    %p394 = scmp.ne.s32.totalorder %s386, %s389
    %p395 = scmp.eq.s32.totalorder %s27, 0
    %p396 = por %p394, %p395
    %p397 = scmp.ne.s32.totalorder %s386, %s389
    %p398 = scmp.eq.s32.totalorder %s32, 1
    %p399 = por %p397, %p398
    %p400 = scmp.ne.s32.totalorder %s389, %s390
    %p401 = scmp.eq.s32.totalorder %s32, 0
    %p402 = por %p400, %p401
    %p403 = scmp.ne.s32.totalorder %s389, %s390
    %p404 = scmp.eq.s32.totalorder %s33, 1
    %p405 = por %p403, %p404
    %p407 = scmp.ne.s32.totalorder %s390, %s406
    %p408 = scmp.eq.s32.totalorder %s33, 0
    %p409 = por %p407, %p408
    %s410 = ssub.s32 %s27, %s34
    %p411 = scmp.eq.s32.totalorder %s410, 0
    %s413 = sadd.s32 %s412, 1
    %s414 = scalar_select %p411, %s412, %s413
    %p417 = pneg %p411
    %p418 = scmp.eq.s32.totalorder %s27, 1
    %p419 = por %p417, %p418
    %p420 = scmp.ne.s32.totalorder %s412, %s415
    %p421 = scmp.eq.s32.totalorder %s27, 0
    %p422 = por %p420, %p421
    %p423 = scmp.ne.s32.totalorder %s412, %s415
    %p424 = scmp.eq.s32.totalorder %s32, 1
    %p425 = por %p423, %p424
    %p426 = scmp.ne.s32.totalorder %s415, %s416
    %p427 = scmp.eq.s32.totalorder %s32, 0
    %p428 = por %p426, %p427
    %p429 = scmp.ne.s32.totalorder %s415, %s416
    %p430 = scmp.eq.s32.totalorder %s33, 1
    %p431 = por %p429, %p430
    %p433 = scmp.ne.s32.totalorder %s416, %s432
    %p434 = scmp.eq.s32.totalorder %s33, 0
    %p435 = por %p433, %p434
    %s436 = ssub.s32 %s27, %s34
    %p437 = scmp.eq.s32.totalorder %s436, 0
    %s439 = sadd.s32 %s438, 1
    %s440 = scalar_select %p437, %s438, %s439
    %p443 = pneg %p437
    %p444 = scmp.eq.s32.totalorder %s27, 1
    %p445 = por %p443, %p444
    %p446 = scmp.ne.s32.totalorder %s438, %s441
    %p447 = scmp.eq.s32.totalorder %s27, 0
    %p448 = por %p446, %p447
    %p449 = scmp.ne.s32.totalorder %s438, %s441
    %p450 = scmp.eq.s32.totalorder %s32, 1
    %p451 = por %p449, %p450
    %p452 = scmp.ne.s32.totalorder %s441, %s442
    %p453 = scmp.eq.s32.totalorder %s32, 0
    %p454 = por %p452, %p453
    %p455 = scmp.ne.s32.totalorder %s441, %s442
    %p456 = scmp.eq.s32.totalorder %s33, 1
    %p457 = por %p455, %p456
    %p459 = scmp.ne.s32.totalorder %s442, %s458
    %p460 = scmp.eq.s32.totalorder %s33, 0
    %p461 = por %p459, %p460
    %s462 = ssub.s32 %s27, %s34
    %p463 = scmp.eq.s32.totalorder %s462, 0
    %s465 = sadd.s32 %s464, 1
    %s466 = scalar_select %p463, %s464, %s465
    %p469 = pneg %p463
    %p470 = scmp.eq.s32.totalorder %s27, 1
    %p471 = por %p469, %p470
    %p472 = scmp.ne.s32.totalorder %s464, %s467
    %p473 = scmp.eq.s32.totalorder %s27, 0
    %p474 = por %p472, %p473
    %p475 = scmp.ne.s32.totalorder %s464, %s467
    %p476 = scmp.eq.s32.totalorder %s32, 1
    %p477 = por %p475, %p476
    %p478 = scmp.ne.s32.totalorder %s467, %s468
    %p479 = scmp.eq.s32.totalorder %s32, 0
    %p480 = por %p478, %p479
    %p481 = scmp.ne.s32.totalorder %s467, %s468
    %p482 = scmp.eq.s32.totalorder %s33, 1
    %p483 = por %p481, %p482
    %p485 = scmp.ne.s32.totalorder %s468, %s484
    %p486 = scmp.eq.s32.totalorder %s33, 0
    %p487 = por %p485, %p486
    %s488 = ssub.s32 %s27, %s34
    %p489 = scmp.eq.s32.totalorder %s488, 0
    %s491 = sadd.s32 %s490, 1
    %s492 = scalar_select %p489, %s490, %s491
    %p495 = pneg %p489
    %p496 = scmp.eq.s32.totalorder %s27, 1
    %p497 = por %p495, %p496
    %p498 = scmp.ne.s32.totalorder %s490, %s493
    %p499 = scmp.eq.s32.totalorder %s27, 0
    %p500 = por %p498, %p499
    %p501 = scmp.ne.s32.totalorder %s490, %s493
    %p502 = scmp.eq.s32.totalorder %s32, 1
    %p503 = por %p501, %p502
    %p504 = scmp.ne.s32.totalorder %s493, %s494
    %p505 = scmp.eq.s32.totalorder %s32, 0
    %p506 = por %p504, %p505
    %p507 = scmp.ne.s32.totalorder %s493, %s494
    %p508 = scmp.eq.s32.totalorder %s33, 1
    %p509 = por %p507, %p508
    %p511 = scmp.ne.s32.totalorder %s494, %s510
    %p512 = scmp.eq.s32.totalorder %s33, 0
    %p513 = por %p511, %p512
    %s514 = ssub.s32 %s27, %s34
    %p515 = scmp.eq.s32.totalorder %s514, 0
    %s517 = sadd.s32 %s516, 1
    %s518 = scalar_select %p515, %s516, %s517
    %p521 = pneg %p515
    %p522 = scmp.eq.s32.totalorder %s27, 1
    %p523 = por %p521, %p522
    %p524 = scmp.ne.s32.totalorder %s516, %s519
    %p525 = scmp.eq.s32.totalorder %s27, 0
    %p526 = por %p524, %p525
    %p527 = scmp.ne.s32.totalorder %s516, %s519
    %p528 = scmp.eq.s32.totalorder %s32, 1
    %p529 = por %p527, %p528
    %p530 = scmp.ne.s32.totalorder %s519, %s520
    %p531 = scmp.eq.s32.totalorder %s32, 0
    %p532 = por %p530, %p531
    %p533 = scmp.ne.s32.totalorder %s519, %s520
    %p534 = scmp.eq.s32.totalorder %s33, 1
    %p535 = por %p533, %p534
    %p537 = scmp.ne.s32.totalorder %s520, %s536
    %p538 = scmp.eq.s32.totalorder %s33, 0
    %p539 = por %p537, %p538
    %s540 = ssub.s32 %s27, %s34
    %p541 = scmp.eq.s32.totalorder %s540, 0
    %s543 = sadd.s32 %s542, 1
    %s544 = scalar_select %p541, %s542, %s543
    %p547 = pneg %p541
    %p548 = scmp.eq.s32.totalorder %s27, 1
    %p549 = por %p547, %p548
    %p550 = scmp.ne.s32.totalorder %s542, %s545
    %p551 = scmp.eq.s32.totalorder %s27, 0
    %p552 = por %p550, %p551
    %p553 = scmp.ne.s32.totalorder %s542, %s545
    %p554 = scmp.eq.s32.totalorder %s32, 1
    %p555 = por %p553, %p554
    %p556 = scmp.ne.s32.totalorder %s545, %s546
    %p557 = scmp.eq.s32.totalorder %s32, 0
    %p558 = por %p556, %p557
    %p559 = scmp.ne.s32.totalorder %s545, %s546
    %p560 = scmp.eq.s32.totalorder %s33, 1
    %p561 = por %p559, %p560
    %p563 = scmp.ne.s32.totalorder %s546, %s562
    %p564 = scmp.eq.s32.totalorder %s33, 0
    %p565 = por %p563, %p564
    %s566 = ssub.s32 %s27, %s34
    %p567 = scmp.eq.s32.totalorder %s566, 0
    %s569 = sadd.s32 %s568, 1
    %s570 = scalar_select %p567, %s568, %s569
    %p573 = pneg %p567
    %p574 = scmp.eq.s32.totalorder %s27, 1
    %p575 = por %p573, %p574
    %p576 = scmp.ne.s32.totalorder %s568, %s571
    %p577 = scmp.eq.s32.totalorder %s27, 0
    %p578 = por %p576, %p577
    %p579 = scmp.ne.s32.totalorder %s568, %s571
    %p580 = scmp.eq.s32.totalorder %s32, 1
    %p581 = por %p579, %p580
    %p582 = scmp.ne.s32.totalorder %s571, %s572
    %p583 = scmp.eq.s32.totalorder %s32, 0
    %p584 = por %p582, %p583
    %p585 = scmp.ne.s32.totalorder %s571, %s572
    %p586 = scmp.eq.s32.totalorder %s33, 1
    %p587 = por %p585, %p586
    %p589 = scmp.ne.s32.totalorder %s572, %s588
    %p590 = scmp.eq.s32.totalorder %s33, 0
    %p591 = por %p589, %p590
    %p592 = scmp.le.s32.totalorder 1, %s27
    %p593 = scmp.lt.s32.totalorder %s27, 3
    %p594 = pnand %p592, %p593
    %p595 = pneg %p594
    // Predicated region
    $region9: #{bert_combined_forward.1} parent=5 // pred_check
      _
    $region10: #{bert_combined_forward.1} parent=5 // pred_check_branch
      %597 = sbr.rel (%p594) target = $region12
    $region11: #{bert_combined_forward.1} parent=5 // pred_region
      %s598 = ssub.s32 %s27, 1
      // Predicated region
      $region13: #{bert_combined_forward.1} parent=11 // pred_check
        %p599 = pneg %p48
      $region14: #{bert_combined_forward.1} parent=11 // pred_check_branch
        %601 = sbr.rel (%p599) target = $region16
      $region15: #{bert_combined_forward.1} parent=11 // pred_region
        _
      $region16: #{bert_combined_forward.1} parent=11 // pred_fallthru
        _
      // Predicated region
      $region17: #{bert_combined_forward.1} parent=11 // pred_check
        %p602 = pneg %p69
      $region18: #{bert_combined_forward.1} parent=11 // pred_check_branch
        %604 = sbr.rel (%p602) target = $region20
      $region19: #{bert_combined_forward.1} parent=11 // pred_region
        _
      $region20: #{bert_combined_forward.1} parent=11 // pred_fallthru
        _
      // Predicated region
      $region21: #{bert_combined_forward.1} parent=11 // pred_check
        %p605 = pneg %p90
      $region22: #{bert_combined_forward.1} parent=11 // pred_check_branch
        %607 = sbr.rel (%p605) target = $region24
      $region23: #{bert_combined_forward.1} parent=11 // pred_region
        _
      $region24: #{bert_combined_forward.1} parent=11 // pred_fallthru
        _
    $region12: #{bert_combined_forward.1} parent=5 // pred_fallthru
      _
    %p608 = scmp.lt.s32.totalorder %s27, 2
    // Predicated region
    $region25: #{bert_combined_forward.1} parent=5 // pred_check
      %p609 = pneg %p608
    $region26: #{bert_combined_forward.1} parent=5 // pred_check_branch
      %611 = sbr.rel (%p609) target = $region28
    $region27: #{bert_combined_forward.1} parent=5 // pred_region
      // Predicated region
      $region29: #{bert_combined_forward.1} parent=27 // pred_check
        %p612 = pneg %p110
      $region30: #{bert_combined_forward.1} parent=27 // pred_check_branch
        %614 = sbr.rel (%p612) target = $region32
      $region31: #{bert_combined_forward.1} parent=27 // pred_region
        %p615 = scmp.lt.s32.totalorder %s27, 1
        %s616 = scalar_select %p615, %s27, 1
        %s617 = smul.addr %s616, 8
        %s618 = smul.addr %s617, 8
        %s619 = scalar_lea.vmem %s3, %s618
      $region32: #{bert_combined_forward.1} parent=27 // pred_fallthru
        _
      // Predicated region
      $region33: #{bert_combined_forward.1} parent=27 // pred_check
        %p620 = pneg %p136
      $region34: #{bert_combined_forward.1} parent=27 // pred_check_branch
        %622 = sbr.rel (%p620) target = $region36
      $region35: #{bert_combined_forward.1} parent=27 // pred_region
        %p623 = scmp.lt.s32.totalorder %s27, 1
        %s624 = scalar_select %p623, %s27, 1
        %s625 = smul.addr %s624, 2
        %s626 = smul.addr %s625, 8
        %s627 = scalar_lea.vmem %s4, %s626
      $region36: #{bert_combined_forward.1} parent=27 // pred_fallthru
        _
      // Predicated region
      $region37: #{bert_combined_forward.1} parent=27 // pred_check
        %p628 = pneg %p162
      $region38: #{bert_combined_forward.1} parent=27 // pred_check_branch
        %630 = sbr.rel (%p628) target = $region40
      $region39: #{bert_combined_forward.1} parent=27 // pred_region
        %p631 = scmp.lt.s32.totalorder %s27, 1
        %s632 = scalar_select %p631, %s27, 1
        %s633 = scalar_lea.vmem %s5, %s632
      $region40: #{bert_combined_forward.1} parent=27 // pred_fallthru
        _
      // Predicated region
      $region41: #{bert_combined_forward.1} parent=27 // pred_check
        %p634 = pneg %p188
      $region42: #{bert_combined_forward.1} parent=27 // pred_check_branch
        %636 = sbr.rel (%p634) target = $region44
      $region43: #{bert_combined_forward.1} parent=27 // pred_region
        %p637 = scmp.lt.s32.totalorder %s27, 1
        %s638 = scalar_select %p637, %s27, 1
        %s639 = scalar_lea.vmem %s6, %s638
      $region44: #{bert_combined_forward.1} parent=27 // pred_fallthru
        _
      // Predicated region
      $region45: #{bert_combined_forward.1} parent=27 // pred_check
        %p640 = pneg %p214
      $region46: #{bert_combined_forward.1} parent=27 // pred_check_branch
        %642 = sbr.rel (%p640) target = $region48
      $region47: #{bert_combined_forward.1} parent=27 // pred_region
        %p643 = scmp.lt.s32.totalorder %s27, 1
        %s644 = scalar_select %p643, %s27, 1
        %s645 = smul.addr %s644, 8
        %s646 = smul.addr %s645, 4
        %s647 = scalar_lea.vmem %s7, %s646
      $region48: #{bert_combined_forward.1} parent=27 // pred_fallthru
        _
      // Predicated region
      $region49: #{bert_combined_forward.1} parent=27 // pred_check
        %p648 = pneg %p240
      $region50: #{bert_combined_forward.1} parent=27 // pred_check_branch
        %650 = sbr.rel (%p648) target = $region52
      $region51: #{bert_combined_forward.1} parent=27 // pred_region
        %p651 = scmp.lt.s32.totalorder %s27, 1
        %s652 = scalar_select %p651, %s27, 1
        %s653 = smul.addr %s652, 2
        %s654 = scalar_lea.vmem %s8, %s653
      $region52: #{bert_combined_forward.1} parent=27 // pred_fallthru
        _
      // Predicated region
      $region53: #{bert_combined_forward.1} parent=27 // pred_check
        %p655 = pneg %p266
      $region54: #{bert_combined_forward.1} parent=27 // pred_check_branch
        %657 = sbr.rel (%p655) target = $region56
      $region55: #{bert_combined_forward.1} parent=27 // pred_region
        %p658 = scmp.lt.s32.totalorder %s27, 1
        %s659 = scalar_select %p658, %s27, 1
        %s660 = smul.addr %s659, 8
        %s661 = smul.addr %s660, 4
        %s662 = scalar_lea.vmem %s9, %s661
      $region56: #{bert_combined_forward.1} parent=27 // pred_fallthru
        _
      // Predicated region
      $region57: #{bert_combined_forward.1} parent=27 // pred_check
        %p663 = pneg %p292
      $region58: #{bert_combined_forward.1} parent=27 // pred_check_branch
        %665 = sbr.rel (%p663) target = $region60
      $region59: #{bert_combined_forward.1} parent=27 // pred_region
        %p666 = scmp.lt.s32.totalorder %s27, 1
        %s667 = scalar_select %p666, %s27, 1
        %s668 = smul.addr %s667, 2
        %s669 = scalar_lea.vmem %s10, %s668
      $region60: #{bert_combined_forward.1} parent=27 // pred_fallthru
        _
      // Predicated region
      $region61: #{bert_combined_forward.1} parent=27 // pred_check
        %p670 = pneg %p318
      $region62: #{bert_combined_forward.1} parent=27 // pred_check_branch
        %672 = sbr.rel (%p670) target = $region64
      $region63: #{bert_combined_forward.1} parent=27 // pred_region
        %p673 = scmp.lt.s32.totalorder %s27, 1
        %s674 = scalar_select %p673, %s27, 1
        %s675 = smul.addr %s674, 2
        %s676 = scalar_lea.vmem %s11, %s675
      $region64: #{bert_combined_forward.1} parent=27 // pred_fallthru
        _
      // Predicated region
      $region65: #{bert_combined_forward.1} parent=27 // pred_check
        %p677 = pneg %p344
      $region66: #{bert_combined_forward.1} parent=27 // pred_check_branch
        %679 = sbr.rel (%p677) target = $region68
      $region67: #{bert_combined_forward.1} parent=27 // pred_region
        %p680 = scmp.lt.s32.totalorder %s27, 1
        %s681 = scalar_select %p680, %s27, 1
        %s682 = smul.addr %s681, 2
        %s683 = scalar_lea.vmem %s12, %s682
      $region68: #{bert_combined_forward.1} parent=27 // pred_fallthru
        _
      // Predicated region
      $region69: #{bert_combined_forward.1} parent=27 // pred_check
        %p684 = pneg %p370
      $region70: #{bert_combined_forward.1} parent=27 // pred_check_branch
        %686 = sbr.rel (%p684) target = $region72
      $region71: #{bert_combined_forward.1} parent=27 // pred_region
        %p687 = scmp.lt.s32.totalorder %s27, 1
        %s688 = scalar_select %p687, %s27, 1
        %s689 = smul.addr %s688, 8
        %s690 = smul.addr %s689, 4
        %s691 = scalar_lea.vmem %s13, %s690
      $region72: #{bert_combined_forward.1} parent=27 // pred_fallthru
        _
      // Predicated region
      $region73: #{bert_combined_forward.1} parent=27 // pred_check
        %p692 = pneg %p396
      $region74: #{bert_combined_forward.1} parent=27 // pred_check_branch
        %694 = sbr.rel (%p692) target = $region76
      $region75: #{bert_combined_forward.1} parent=27 // pred_region
        %p695 = scmp.lt.s32.totalorder %s27, 1
        %s696 = scalar_select %p695, %s27, 1
        %s697 = smul.addr %s696, 2
        %s698 = scalar_lea.vmem %s14, %s697
      $region76: #{bert_combined_forward.1} parent=27 // pred_fallthru
        _
      // Predicated region
      $region77: #{bert_combined_forward.1} parent=27 // pred_check
        %p699 = pneg %p422
      $region78: #{bert_combined_forward.1} parent=27 // pred_check_branch
        %701 = sbr.rel (%p699) target = $region80
      $region79: #{bert_combined_forward.1} parent=27 // pred_region
        %p702 = scmp.lt.s32.totalorder %s27, 1
        %s703 = scalar_select %p702, %s27, 1
        %s704 = smul.addr %s703, 16
        %s705 = smul.addr %s704, 4
        %s706 = scalar_lea.vmem %s15, %s705
      $region80: #{bert_combined_forward.1} parent=27 // pred_fallthru
        _
      // Predicated region
      $region81: #{bert_combined_forward.1} parent=27 // pred_check
        %p707 = pneg %p448
      $region82: #{bert_combined_forward.1} parent=27 // pred_check_branch
        %709 = sbr.rel (%p707) target = $region84
      $region83: #{bert_combined_forward.1} parent=27 // pred_region
        %p710 = scmp.lt.s32.totalorder %s27, 1
        %s711 = scalar_select %p710, %s27, 1
        %s712 = smul.addr %s711, 2
        %s713 = scalar_lea.vmem %s16, %s712
      $region84: #{bert_combined_forward.1} parent=27 // pred_fallthru
        _
      // Predicated region
      $region85: #{bert_combined_forward.1} parent=27 // pred_check
        %p714 = pneg %p474
      $region86: #{bert_combined_forward.1} parent=27 // pred_check_branch
        %716 = sbr.rel (%p714) target = $region88
      $region87: #{bert_combined_forward.1} parent=27 // pred_region
        %p717 = scmp.lt.s32.totalorder %s27, 1
        %s718 = scalar_select %p717, %s27, 1
        %s719 = smul.addr %s718, 2
        %s720 = scalar_lea.vmem %s17, %s719
      $region88: #{bert_combined_forward.1} parent=27 // pred_fallthru
        _
      // Predicated region
      $region89: #{bert_combined_forward.1} parent=27 // pred_check
        %p721 = pneg %p500
      $region90: #{bert_combined_forward.1} parent=27 // pred_check_branch
        %723 = sbr.rel (%p721) target = $region92
      $region91: #{bert_combined_forward.1} parent=27 // pred_region
        %p724 = scmp.lt.s32.totalorder %s27, 1
        %s725 = scalar_select %p724, %s27, 1
        %s726 = smul.addr %s725, 2
        %s727 = scalar_lea.vmem %s18, %s726
      $region92: #{bert_combined_forward.1} parent=27 // pred_fallthru
        _
      // Predicated region
      $region93: #{bert_combined_forward.1} parent=27 // pred_check
        %p728 = pneg %p526
      $region94: #{bert_combined_forward.1} parent=27 // pred_check_branch
        %730 = sbr.rel (%p728) target = $region96
      $region95: #{bert_combined_forward.1} parent=27 // pred_region
        %p731 = scmp.lt.s32.totalorder %s27, 1
        %s732 = scalar_select %p731, %s27, 1
        %s733 = smul.addr %s732, 4
        %s734 = smul.addr %s733, 4
        %s735 = scalar_lea.vmem %s19, %s734
      $region96: #{bert_combined_forward.1} parent=27 // pred_fallthru
        _
      // Predicated region
      $region97: #{bert_combined_forward.1} parent=27 // pred_check
        %p736 = pneg %p552
      $region98: #{bert_combined_forward.1} parent=27 // pred_check_branch
        %738 = sbr.rel (%p736) target = $region100
      $region99: #{bert_combined_forward.1} parent=27 // pred_region
        %p739 = scmp.lt.s32.totalorder %s27, 1
        %s740 = scalar_select %p739, %s27, 1
        %s741 = scalar_lea.vmem %s20, %s740
      $region100: #{bert_combined_forward.1} parent=27 // pred_fallthru
        _
    $region28: #{bert_combined_forward.1} parent=5 // pred_fallthru
      _
    %p742 = scmp.le.s32.totalorder 1, %s27
    %p743 = scmp.lt.s32.totalorder %s27, 3
    %p744 = pnand %p742, %p743
    %p745 = pneg %p744
    // Predicated region
    $region101: #{bert_combined_forward.1} parent=5 // pred_check
      _
    $region102: #{bert_combined_forward.1} parent=5 // pred_check_branch
      %747 = sbr.rel (%p744) target = $region104
    $region103: #{bert_combined_forward.1} parent=5 // pred_region
      %s748 = ssub.s32 %s27, 1
      %p749 = pneg %p48
      %p750 = pneg %p45
      %p751 = pneg %p69
      %p752 = pneg %p66
      %p753 = pneg %p90
      %p754 = pneg %p87
      %p755 = scmp.lt.s32.totalorder %s32, 1
      %s756 = scalar_select %p755, %s32, 1
      %s757 = smul.addr %s756, 8
      %s758 = smul.addr %s757, 8
      %s759 = scalar_lea.vmem %s3, %s758
      %p760 = pneg %p116
      %p761 = pneg %p113
      %p762 = scmp.lt.s32.totalorder %s32, 1
      %s763 = scalar_select %p762, %s32, 1
      %s764 = smul.addr %s763, 2
      %s765 = smul.addr %s764, 8
      %s766 = scalar_lea.vmem %s4, %s765
      %p767 = pneg %p142
      %p768 = pneg %p139
      %p769 = scmp.lt.s32.totalorder %s32, 1
      %s770 = scalar_select %p769, %s32, 1
      %s771 = scalar_lea.vmem %s5, %s770
      %p772 = pneg %p168
      %p773 = pneg %p165
      %p774 = scmp.lt.s32.totalorder %s32, 1
      %s775 = scalar_select %p774, %s32, 1
      %s776 = scalar_lea.vmem %s6, %s775
      %p777 = pneg %p194
      %p778 = pneg %p191
      %p779 = scmp.lt.s32.totalorder %s32, 1
      %s780 = scalar_select %p779, %s32, 1
      %s781 = smul.addr %s780, 8
      %s782 = smul.addr %s781, 4
      %s783 = scalar_lea.vmem %s7, %s782
      %p784 = pneg %p220
      %p785 = pneg %p217
      %p786 = scmp.lt.s32.totalorder %s32, 1
      %s787 = scalar_select %p786, %s32, 1
      %s788 = smul.addr %s787, 2
      %s789 = scalar_lea.vmem %s8, %s788
      %p790 = pneg %p246
      %p791 = pneg %p243
      %p792 = scmp.lt.s32.totalorder %s32, 1
      %s793 = scalar_select %p792, %s32, 1
      %s794 = smul.addr %s793, 8
      %s795 = smul.addr %s794, 4
      %s796 = scalar_lea.vmem %s9, %s795
      %p797 = pneg %p272
      %p798 = pneg %p269
      %p799 = scmp.lt.s32.totalorder %s32, 1
      %s800 = scalar_select %p799, %s32, 1
      %s801 = smul.addr %s800, 2
      %s802 = scalar_lea.vmem %s10, %s801
      %p803 = pneg %p298
      %p804 = pneg %p295
      %p805 = scmp.lt.s32.totalorder %s32, 1
      %s806 = scalar_select %p805, %s32, 1
      %s807 = smul.addr %s806, 2
      %s808 = scalar_lea.vmem %s11, %s807
      %p809 = pneg %p324
      %p810 = pneg %p321
      %p811 = scmp.lt.s32.totalorder %s32, 1
      %s812 = scalar_select %p811, %s32, 1
      %s813 = smul.addr %s812, 2
      %s814 = scalar_lea.vmem %s12, %s813
      %p815 = pneg %p350
      %p816 = pneg %p347
      %p817 = scmp.lt.s32.totalorder %s32, 1
      %s818 = scalar_select %p817, %s32, 1
      %s819 = smul.addr %s818, 8
      %s820 = smul.addr %s819, 4
      %s821 = scalar_lea.vmem %s13, %s820
      %p822 = pneg %p376
      %p823 = pneg %p373
      %p824 = scmp.lt.s32.totalorder %s32, 1
      %s825 = scalar_select %p824, %s32, 1
      %s826 = smul.addr %s825, 2
      %s827 = scalar_lea.vmem %s14, %s826
      %p828 = pneg %p402
      %p829 = pneg %p399
      %p830 = scmp.lt.s32.totalorder %s32, 1
      %s831 = scalar_select %p830, %s32, 1
      %s832 = smul.addr %s831, 16
      %s833 = smul.addr %s832, 4
      %s834 = scalar_lea.vmem %s15, %s833
      %p835 = pneg %p428
      %p836 = pneg %p425
      %p837 = scmp.lt.s32.totalorder %s32, 1
      %s838 = scalar_select %p837, %s32, 1
      %s839 = smul.addr %s838, 2
      %s840 = scalar_lea.vmem %s16, %s839
      %p841 = pneg %p454
      %p842 = pneg %p451
      %p843 = scmp.lt.s32.totalorder %s32, 1
      %s844 = scalar_select %p843, %s32, 1
      %s845 = smul.addr %s844, 2
      %s846 = scalar_lea.vmem %s17, %s845
      %p847 = pneg %p480
      %p848 = pneg %p477
      %p849 = scmp.lt.s32.totalorder %s32, 1
      %s850 = scalar_select %p849, %s32, 1
      %s851 = smul.addr %s850, 2
      %s852 = scalar_lea.vmem %s18, %s851
      %p853 = pneg %p506
      %p854 = pneg %p503
      %p855 = scmp.lt.s32.totalorder %s32, 1
      %s856 = scalar_select %p855, %s32, 1
      %s857 = smul.addr %s856, 4
      %s858 = smul.addr %s857, 4
      %s859 = scalar_lea.vmem %s19, %s858
      %p860 = pneg %p532
      %p861 = pneg %p529
      %p862 = scmp.lt.s32.totalorder %s32, 1
      %s863 = scalar_select %p862, %s32, 1
      %s864 = scalar_lea.vmem %s20, %s863
      %p865 = pneg %p558
      %p866 = pneg %p555
      %p867 = pneg %p584
      %p868 = pneg %p581
      %p869 = scmp.lt.s32.totalorder %s32, 1
      %s870 = scalar_select %p869, %s32, 1
      %s871 = smul.addr %s870, 2
      %s872 = scalar_lea.vmem %s21, %s871
      %p873 = scmp.lt.s32.totalorder %s32, 1
      %s874 = scalar_select %p873, %s32, 1
      %s875 = smul.addr %s874, 8
      %s876 = smul.addr %s875, 8
      %s877 = scalar_lea.vmem %s3, %s876
      %p878 = scmp.lt.s32.totalorder %s32, 1
      %s879 = scalar_select %p878, %s32, 1
      %s880 = smul.addr %s879, 2
      %s881 = smul.addr %s880, 8
      %s882 = scalar_lea.vmem %s4, %s881
      %p883 = scmp.lt.s32.totalorder %s32, 1
      %s884 = scalar_select %p883, %s32, 1
      %s885 = scalar_lea.vmem %s5, %s884
      %p886 = scmp.lt.s32.totalorder %s32, 1
      %s887 = scalar_select %p886, %s32, 1
      %s888 = scalar_lea.vmem %s6, %s887
      %p889 = scmp.lt.s32.totalorder %s32, 1
      %s890 = scalar_select %p889, %s32, 1
      %s891 = smul.addr %s890, 8
      %s892 = smul.addr %s891, 4
      %s893 = scalar_lea.vmem %s7, %s892
      %p894 = scmp.lt.s32.totalorder %s32, 1
      %s895 = scalar_select %p894, %s32, 1
      %s896 = smul.addr %s895, 2
      %s897 = scalar_lea.vmem %s8, %s896
      %p898 = scmp.lt.s32.totalorder %s32, 1
      %s899 = scalar_select %p898, %s32, 1
      %s900 = smul.addr %s899, 8
      %s901 = smul.addr %s900, 4
      %s902 = scalar_lea.vmem %s9, %s901
      %p903 = scmp.lt.s32.totalorder %s32, 1
      %s904 = scalar_select %p903, %s32, 1
      %s905 = smul.addr %s904, 2
      %s906 = scalar_lea.vmem %s10, %s905
      %p907 = scmp.lt.s32.totalorder %s32, 1
      %s908 = scalar_select %p907, %s32, 1
      %s909 = smul.addr %s908, 2
      %s910 = scalar_lea.vmem %s11, %s909
      %p911 = scmp.lt.s32.totalorder %s32, 1
      %s912 = scalar_select %p911, %s32, 1
      %s913 = smul.addr %s912, 2
      %s914 = scalar_lea.vmem %s12, %s913
      %p915 = scmp.lt.s32.totalorder %s32, 1
      %s916 = scalar_select %p915, %s32, 1
      %s917 = smul.addr %s916, 8
      %s918 = smul.addr %s917, 4
      %s919 = scalar_lea.vmem %s13, %s918
      %p920 = scmp.lt.s32.totalorder %s32, 1
      %s921 = scalar_select %p920, %s32, 1
      %s922 = smul.addr %s921, 2
      %s923 = scalar_lea.vmem %s14, %s922
      %p924 = scmp.lt.s32.totalorder %s32, 1
      %s925 = scalar_select %p924, %s32, 1
      %s926 = smul.addr %s925, 16
      %s927 = smul.addr %s926, 4
      %s928 = scalar_lea.vmem %s15, %s927
      %p929 = scmp.lt.s32.totalorder %s32, 1
      %s930 = scalar_select %p929, %s32, 1
      %s931 = smul.addr %s930, 2
      %s932 = scalar_lea.vmem %s16, %s931
      %p933 = scmp.lt.s32.totalorder %s32, 1
      %s934 = scalar_select %p933, %s32, 1
      %s935 = smul.addr %s934, 2
      %s936 = scalar_lea.vmem %s17, %s935
      %p937 = scmp.lt.s32.totalorder %s32, 1
      %s938 = scalar_select %p937, %s32, 1
      %s939 = smul.addr %s938, 2
      %s940 = scalar_lea.vmem %s18, %s939
      %p941 = scmp.lt.s32.totalorder %s32, 1
      %s942 = scalar_select %p941, %s32, 1
      %s943 = smul.addr %s942, 4
      %s944 = smul.addr %s943, 4
      %s945 = scalar_lea.vmem %s19, %s944
      %p946 = scmp.lt.s32.totalorder %s32, 1
      %s947 = scalar_select %p946, %s32, 1
      %s948 = scalar_lea.vmem %s20, %s947
      %p949 = scmp.lt.s32.totalorder %s32, 1
      %s950 = scalar_select %p949, %s32, 1
      %s951 = smul.addr %s950, 2
      %s952 = scalar_lea.vmem %s21, %s951
      %v954 = vld [vmem:[%s0] sm:$0xff]
      %v955 = vld [vmem:[%s0 + $0x8] sm:$0xff]
      %v956 = vlaneseq
      %v957 = vand.u32 %v956, 127
      %958 = vset.pattern.permute.xlu0 0
      %959 = vperm.xlu0 %958, %v954
      %v960 = vpop.permute.xlu0 %959
      %961 = vset.pattern.permute.xlu0 0
      %962 = vperm.xlu0 %961, %v955
      %v963 = vpop.permute.xlu0 %962
      %vm964 = vcmp.eq.s32.totalorder %v957, %v960
      %vm965 = vcmp.eq.s32.totalorder %v957, %v963
      %v966 = vsel %vm964, 1, 0
      %v967 = vsel %vm965, 1, 0
      %v968 = vcvt.s32.f32 %v966
      %v969 = vcvt.s32.f32 %v967
      %v970 = vld [vmem:[%s877] sm:$0xff]
      %v971 = vld [vmem:[%s877 + $0x8] sm:$0xff]
      %v972 = vld [vmem:[%s877 + $0x10] sm:$0xff]
      %v973 = vld [vmem:[%s877 + $0x18] sm:$0xff]
      %v974 = vld [vmem:[%s877 + $0x20] sm:$0xff]
      %v975 = vld [vmem:[%s877 + $0x28] sm:$0xff]
      %v976 = vld [vmem:[%s877 + $0x30] sm:$0xff]
      %v977 = vld [vmem:[%s877 + $0x38] sm:$0xff]
      %v978 = vld [vmem:[%s882] sm:$0xff]
      %v979 = vld [vmem:[%s882 + $0x8] sm:$0xff]
      %vm980 = vcmask 523264
      %v982 = vsel %vm980, %v968, 0
      %v985 = vsel %vm980, %v969, 0
      %987 = vmatprep.subr.mxu0 0.0
      %988 = vmatpush1.msra.mxu0 %v970
      %989 = vmatprep.subr.mxu0 0.0
      %990 = vmatpush1.msra.mxu0 %v971
      %991 = vmatprep.subr.mxu0 0.0
      %992 = vmatpush1.msra.mxu0 %v972
      %993 = vmatprep.subr.mxu0 0.0
      %994 = vmatpush1.msra.mxu0 %v973
      %995 = vmatprep.subr.mxu0 0.0
      %996 = vmatpush1.msra.mxu0 %v974
      %997 = vmatprep.subr.mxu0 0.0
      %998 = vmatpush1.msra.mxu0 %v975
      %999 = vmatprep.subr.mxu0 0.0
      %1000 = vmatpush1.msra.mxu0 %v976
      %1001 = vmatprep.subr.mxu0 0.0
      %1002 = vmatpush1.msra.mxu0 %v977
      %1003 = vmatprep.subr.mxu0 0.0
      %1004 = vmatpush1.msra.mxu0 0.0
      %1005 = vmatprep.subr.mxu0 0.0
      %1006 = vmatpush1.msra.mxu0 0.0
      %1007 = vmatprep.subr.mxu0 0.0
      %1008 = vmatpush1.msra.mxu0 0.0
      %1009 = vmatprep.subr.mxu0 0.0
      %1010 = vmatpush1.msra.mxu0 0.0
      %1011 = vmatprep.subr.mxu0 0.0
      %1012 = vmatpush1.msra.mxu0 0.0
      %1013 = vmatprep.subr.mxu0 0.0
      %1014 = vmatpush1.msra.mxu0 0.0
      %1015 = vmatprep.subr.mxu0 0.0
      %1016 = vmatpush1.msra.mxu0 0.0
      %1017 = vmatprep.subr.mxu0 0.0
      %1018 = vmatpush1.msra.mxu0 0.0
      %1019 = vmatprep.subr.mxu0 0.0
      %1020 = vmatpush1.msra.mxu0 0.0
      %1021 = vmatprep.subr.mxu0 0.0
      %1022 = vmatpush1.msra.mxu0 0.0
      %1023 = vmatprep.subr.mxu0 0.0
      %1024 = vmatpush1.msra.mxu0 0.0
      %1025 = vmatprep.subr.mxu0 0.0
      %1026 = vmatpush1.msra.mxu0 0.0
      %1027 = vmatprep.subr.mxu0 0.0
      %1028 = vmatpush1.msra.mxu0 0.0
      %1029 = vmatprep.subr.mxu0 0.0
      %1030 = vmatpush1.msra.mxu0 0.0
      %1031 = vmatprep.subr.mxu0 0.0
      %1032 = vmatpush1.msra.mxu0 0.0
      %1033 = vmatprep.subr.mxu0 0.0
      %1034 = vmatpush1.msra.mxu0 0.0
      %1035 = vmatprep.subr.mxu0 0.0
      %1036 = vmatpush1.msra.mxu0 0.0
      %1037 = vmatprep.subr.mxu0 0.0
      %1038 = vmatpush1.msra.mxu0 0.0
      %1039 = vmatprep.subr.mxu0 0.0
      %1040 = vmatpush1.msra.mxu0 0.0
      %1041 = vmatprep.subr.mxu0 0.0
      %1042 = vmatpush1.msra.mxu0 0.0
      %1043 = vmatprep.subr.mxu0 0.0
      %1044 = vmatpush1.msra.mxu0 0.0
      %1045 = vmatprep.subr.mxu0 0.0
      %1046 = vmatpush1.msra.mxu0 0.0
      %1047 = vmatprep.subr.mxu0 0.0
      %1048 = vmatpush1.msra.mxu0 0.0
      %1049 = vmatprep.subr.mxu0 0.0
      %1050 = vmatpush1.msra.mxu0 0.0
      %1051 = vmatprep.mubr.f32.mxu0 0.0
      %1052 = vmatmul.mubr.f32.gmra.mrb[0].mxu0 %v982
      %v1053 = vpop.f32.mrb[0].mxu0
      %v1054 = vadd.f32 %v978, %v1053
      %v1055 = vpop.f32.mrb[0].mxu0
      %1056 = vmatprep.mubr.f32.mxu0 0.0
      %1057 = vmatmul.mubr.f32.gmra.mrb[0].mxu0 %v985
      %v1058 = vpop.f32.mrb[0].mxu0
      %v1059 = vadd.f32 %v979, %v1058
      %v1060 = vpop.f32.mrb[0].mxu0
      %1061 = vdwg.mxu0
      %v1062 = vld [vmem:[%s885] sm:$0x1]
      %v1063 = vld [vmem:[%s888] sm:$0x1]
      %vm1064 = vcmask 261120
      %v1065 = vsel %vm1064, %v1054, 0.0
      %1066 = vadd.xlane.f32.xlu0 %v1065
      %v1067 = vpop.xlane.xlu0 %1066
      %v1068 = vsel %vm1064, %v1059, 0.0
      %1069 = vadd.xlane.f32.xlu0 %v1068
      %v1070 = vpop.xlane.xlu0 %1069
      %v1071 = vrcp.pop 32.0
      %v1072 = vmul.f32 %v1067, %v1071
      %v1073 = vmul.f32 %v1070, %v1071
      %v1074 = vsub.f32 %v1054, %v1072
      %v1075 = vsub.f32 %v1059, %v1073
      %v1076 = vmul.f32 %v1074, %v1074
      %v1077 = vmul.f32 %v1075, %v1075
      %v1078 = vsel %vm1064, %v1076, 0.0
      %1079 = vadd.xlane.f32.xlu0 %v1078
      %v1080 = vpop.xlane.xlu0 %1079
      %v1081 = vsel %vm1064, %v1077, 0.0
      %1082 = vadd.xlane.f32.xlu0 %v1081
      %v1083 = vpop.xlane.xlu0 %1082
      %v1084 = vmul.f32 %v1080, %v1071
      %v1085 = vmul.f32 %v1083, %v1071
      %v1086 = vadd.f32 %v1084, 1e-12
      %v1087 = vadd.f32 %v1085, 1e-12
      %v1088 = vrsqrt.pop %v1086
      %v1089 = vrsqrt.pop %v1087
      %v1090 = vmul.f32 %v1074, %v1088
      %v1091 = vmul.f32 %v1075, %v1089
      %v1093 = vlaneseq
      %v1094 = vshrl.u32 %v1093, 7
      %v1095 = vsub.s32 0, %v1094
      %v1096 = vrot.slane %v1062, %v1095
      %v1098 = vmul.f32 %v1090, %v1096
      %v1099 = vmul.f32 %v1091, %v1096
      %v1101 = vlaneseq
      %v1102 = vshrl.u32 %v1101, 7
      %v1103 = vsub.s32 0, %v1102
      %v1104 = vrot.slane %v1063, %v1103
      %v1106 = vadd.f32 %v1098, %v1104
      %v1107 = vadd.f32 %v1099, %v1104
      %v1108 = vld [vmem:[%s2] sm:$0xff]
      %v1109 = vld [vmem:[%s2 + $0x8] sm:$0xff]
      %v1110 = vpack.c.bf16 %v1107, %v1106
      %v1111 = vld [vmem:[%s893] sm:$0xf]
      %v1112 = vld [vmem:[%s893 + $0x4] sm:$0xf]
      %v1113 = vld [vmem:[%s893 + $0x8] sm:$0xf]
      %v1114 = vld [vmem:[%s893 + $0xc] sm:$0xf]
      %v1115 = vld [vmem:[%s897] sm:$0x1]
      %v1117 = vlaneseq
      %v1118 = vshrl.u32 %v1117, 7
      %v1119 = vsub.s32 0, %v1118
      %v1120 = vrot.slane %v1115, %v1119
      %v1126 = vunpack.c.l.b16 %v1111
      %v1127 = vunpack.c.l.b16 %v1112
      %v1128 = vunpack.c.l.b16 %v1113
      %v1129 = vunpack.c.l.b16 %v1114
      %v1130 = vpack.c.b16 %v1127, %v1126
      %v1131 = vpack.c.b16 %v1129, %v1128
      %v1135 = vsel %vm1064, %v1110, 0
      %1137 = vmatprep.subr.bf16.mxu0 0
      %1138 = vmatpush1.bf16.msra.mxu0 %v1130
      %1139 = vmatprep.subr.bf16.mxu0 0
      %1140 = vmatpush1.bf16.msra.mxu0 %v1131
      %1141 = vmatprep.subr.bf16.mxu0 0
      %1142 = vmatpush1.bf16.msra.mxu0 0
      %1143 = vmatprep.subr.bf16.mxu0 0
      %1144 = vmatpush1.bf16.msra.mxu0 0
      %1145 = vmatprep.subr.bf16.mxu0 0
      %1146 = vmatpush1.bf16.msra.mxu0 0
      %1147 = vmatprep.subr.bf16.mxu0 0
      %1148 = vmatpush1.bf16.msra.mxu0 0
      %1149 = vmatprep.subr.bf16.mxu0 0
      %1150 = vmatpush1.bf16.msra.mxu0 0
      %1151 = vmatprep.subr.bf16.mxu0 0
      %1152 = vmatpush1.bf16.msra.mxu0 0
      %1153 = vmatprep.subr.bf16.mxu0 0
      %1154 = vmatpush1.bf16.msra.mxu0 0
      %1155 = vmatprep.subr.bf16.mxu0 0
      %1156 = vmatpush1.bf16.msra.mxu0 0
      %1157 = vmatprep.subr.bf16.mxu0 0
      %1158 = vmatpush1.bf16.msra.mxu0 0
      %1159 = vmatprep.subr.bf16.mxu0 0
      %1160 = vmatpush1.bf16.msra.mxu0 0
      %1161 = vmatprep.subr.bf16.mxu0 0
      %1162 = vmatpush1.bf16.msra.mxu0 0
      %1163 = vmatprep.subr.bf16.mxu0 0
      %1164 = vmatpush1.bf16.msra.mxu0 0
      %1165 = vmatprep.subr.bf16.mxu0 0
      %1166 = vmatpush1.bf16.msra.mxu0 0
      %1167 = vmatprep.subr.bf16.mxu0 0
      %1168 = vmatpush1.bf16.msra.mxu0 0
      %1169 = vmatprep.mubr.bf16.mxu0 0
      %1170 = vmatmul.mubr.bf16.gmra.mrb[0].mxu0 %v1135
      %v1171 = vpop.f32.mrb[0].mxu0
      %v1172 = vadd.f32 %v1120, %v1171
      %v1173 = vpop.f32.mrb[0].mxu0
      %v1174 = vpop.f32.mrb[0].mxu0
      %v1175 = vadd.f32 %v1120, %v1174
      %v1176 = vpop.f32.mrb[0].mxu0
      %1177 = vdwg.mxu0
      %v1178 = vld [vmem:[%s902] sm:$0xf]
      %v1179 = vld [vmem:[%s902 + $0x4] sm:$0xf]
      %v1180 = vld [vmem:[%s902 + $0x8] sm:$0xf]
      %v1181 = vld [vmem:[%s902 + $0xc] sm:$0xf]
      %v1182 = vpack.c.bf16 %v1175, %v1172
      %1184 = vrot.lane.b32.xlu0 %v1182, 96
      %v1185 = vpop.permute.xlu0 %1184
      %vm1186 = vcmask 130048
      %v1188 = vsel %vm1186, %v1182, 0
      %v1191 = vsel %vm1186, %v1185, 0
      %1193 = vmatprep.subr.bf16.mxu0 0
      %1194 = vmatpush1.bf16.xpose.msra.mxu0 %v1191
      %1195 = vmatprep.subr.bf16.mxu0 0
      %1196 = vmatpush1.bf16.xpose.msra.mxu0 0
      %1197 = vmatprep.subr.bf16.mxu0 0
      %1198 = vmatpush1.bf16.xpose.msra.mxu0 0
      %1199 = vmatprep.subr.bf16.mxu0 0
      %1200 = vmatpush1.bf16.xpose.msra.mxu0 0
      %1201 = vmatprep.subr.bf16.mxu0 0
      %1202 = vmatpush1.bf16.xpose.msra.mxu0 0
      %1203 = vmatprep.subr.bf16.mxu0 0
      %1204 = vmatpush1.bf16.xpose.msra.mxu0 0
      %1205 = vmatprep.subr.bf16.mxu0 0
      %1206 = vmatpush1.bf16.xpose.msra.mxu0 0
      %1207 = vmatprep.subr.bf16.mxu0 0
      %1208 = vmatpush1.bf16.xpose.msra.mxu0 0
      %1209 = vmatprep.subr.bf16.mxu0 0
      %1210 = vmatpush1.bf16.xpose.msra.mxu0 0
      %1211 = vmatprep.subr.bf16.mxu0 0
      %1212 = vmatpush1.bf16.xpose.msra.mxu0 0
      %1213 = vmatprep.subr.bf16.mxu0 0
      %1214 = vmatpush1.bf16.xpose.msra.mxu0 0
      %1215 = vmatprep.subr.bf16.mxu0 0
      %1216 = vmatpush1.bf16.xpose.msra.mxu0 0
      %1217 = vmatprep.subr.bf16.mxu0 0
      %1218 = vmatpush1.bf16.xpose.msra.mxu0 0
      %1219 = vmatprep.subr.bf16.mxu0 0
      %1220 = vmatpush1.bf16.xpose.msra.mxu0 0
      %1221 = vmatprep.subr.bf16.mxu0 0
      %1222 = vmatpush1.bf16.xpose.msra.mxu0 0
      %1223 = vmatprep.subr.bf16.mxu0 0
      %1224 = vmatpush1.bf16.xpose.msra.mxu0 0
      %1225 = vmatprep.mubr.bf16.mxu0 0
      %1226 = vmatmul.mubr.bf16.gmra.mrb[0].mxu0 %v1188
      %v1227 = vpop.f32.mrb[0].mxu0
      %v1228 = vadd.f32 0.0, %v1227
      %v1229 = vpop.f32.mrb[0].mxu0
      %v1230 = vpop.f32.mrb[0].mxu0
      %v1231 = vadd.f32 0.0, %v1230
      %v1232 = vpop.f32.mrb[0].mxu0
      %1233 = vdwg.mxu0
      %v1234 = vmul.f32 %v1228, 0.25
      %v1235 = vmul.f32 %v1231, 0.25
      %v1236 = vadd.f32 %v1234, %v1108
      %v1237 = vadd.f32 %v1235, %v1109
      %v1238 = vsel %vm1186, %v1236, -inf
      %1239 = vmax.xlane.f32.xlu0 %v1238
      %v1240 = vpop.xlane.xlu0 %1239
      %v1241 = vsel %vm1186, %v1237, -inf
      %1242 = vmax.xlane.f32.xlu0 %v1241
      %v1243 = vpop.xlane.xlu0 %1242
      %v1244 = vsub.f32 %v1236, %v1240
      %v1245 = vsub.f32 %v1237, %v1243
      %v1246 = vmul.f32 %v1244, 1.442695
      %v1247 = vpow.pop %v1246
      %v1248 = vmul.f32 %v1245, 1.442695
      %v1249 = vpow.pop %v1248
      %v1250 = vsel %vm1186, %v1247, 0.0
      %1251 = vadd.xlane.f32.xlu0 %v1250
      %v1252 = vpop.xlane.xlu0 %1251
      %v1253 = vsel %vm1186, %v1249, 0.0
      %1254 = vadd.xlane.f32.xlu0 %v1253
      %v1255 = vpop.xlane.xlu0 %1254
      %v1256 = vrcp.pop %v1252
      %v1257 = vrcp.pop %v1255
      %v1258 = vmul.f32 %v1247, %v1256
      %v1259 = vmul.f32 %v1249, %v1257
      %v1260 = vpack.c.bf16 %v1259, %v1258
      %1261 = vrot.lane.b32.xlu0 %v1182, 64
      %v1262 = vpop.permute.xlu0 %1261
      %v1265 = vsel %vm1186, %v1260, 0
      %1267 = vmatprep.subr.bf16.mxu0 0
      %1268 = vmatpush1.bf16.msra.mxu0 %v1262
      %1269 = vmatprep.subr.bf16.mxu0 0
      %1270 = vmatpush1.bf16.msra.mxu0 0
      %1271 = vmatprep.subr.bf16.mxu0 0
      %1272 = vmatpush1.bf16.msra.mxu0 0
      %1273 = vmatprep.subr.bf16.mxu0 0
      %1274 = vmatpush1.bf16.msra.mxu0 0
      %1275 = vmatprep.subr.bf16.mxu0 0
      %1276 = vmatpush1.bf16.msra.mxu0 0
      %1277 = vmatprep.subr.bf16.mxu0 0
      %1278 = vmatpush1.bf16.msra.mxu0 0
      %1279 = vmatprep.subr.bf16.mxu0 0
      %1280 = vmatpush1.bf16.msra.mxu0 0
      %1281 = vmatprep.subr.bf16.mxu0 0
      %1282 = vmatpush1.bf16.msra.mxu0 0
      %1283 = vmatprep.subr.bf16.mxu0 0
      %1284 = vmatpush1.bf16.msra.mxu0 0
      %1285 = vmatprep.subr.bf16.mxu0 0
      %1286 = vmatpush1.bf16.msra.mxu0 0
      %1287 = vmatprep.subr.bf16.mxu0 0
      %1288 = vmatpush1.bf16.msra.mxu0 0
      %1289 = vmatprep.subr.bf16.mxu0 0
      %1290 = vmatpush1.bf16.msra.mxu0 0
      %1291 = vmatprep.subr.bf16.mxu0 0
      %1292 = vmatpush1.bf16.msra.mxu0 0
      %1293 = vmatprep.subr.bf16.mxu0 0
      %1294 = vmatpush1.bf16.msra.mxu0 0
      %1295 = vmatprep.subr.bf16.mxu0 0
      %1296 = vmatpush1.bf16.msra.mxu0 0
      %1297 = vmatprep.subr.bf16.mxu0 0
      %1298 = vmatpush1.bf16.msra.mxu0 0
      %1299 = vmatprep.mubr.bf16.mxu0 0
      %1300 = vmatmul.mubr.bf16.gmra.mrb[0].mxu0 %v1265
      %v1301 = vpop.f32.mrb[0].mxu0
      %v1302 = vadd.f32 0.0, %v1301
      %v1303 = vpop.f32.mrb[0].mxu0
      %v1304 = vpop.f32.mrb[0].mxu0
      %v1305 = vadd.f32 0.0, %v1304
      %v1306 = vpop.f32.mrb[0].mxu0
      %1307 = vdwg.mxu0
      %v1308 = vpack.c.bf16 %v1305, %v1302
      %1309 = vrot.lane.b32.xlu0 %v1182, 112
      %v1310 = vpop.permute.xlu0 %1309
      %1311 = vrot.lane.b32.xlu0 %v1182, 80
      %v1312 = vpop.permute.xlu0 %1311
      %v1314 = vsel %vm1186, %v1310, 0
      %v1317 = vsel %vm1186, %v1312, 0
      %1319 = vmatprep.subr.bf16.mxu0 0
      %1320 = vmatpush1.bf16.xpose.msra.mxu0 %v1317
      %1321 = vmatprep.subr.bf16.mxu0 0
      %1322 = vmatpush1.bf16.xpose.msra.mxu0 0
      %1323 = vmatprep.subr.bf16.mxu0 0
      %1324 = vmatpush1.bf16.xpose.msra.mxu0 0
      %1325 = vmatprep.subr.bf16.mxu0 0
      %1326 = vmatpush1.bf16.xpose.msra.mxu0 0
      %1327 = vmatprep.subr.bf16.mxu0 0
      %1328 = vmatpush1.bf16.xpose.msra.mxu0 0
      %1329 = vmatprep.subr.bf16.mxu0 0
      %1330 = vmatpush1.bf16.xpose.msra.mxu0 0
      %1331 = vmatprep.subr.bf16.mxu0 0
      %1332 = vmatpush1.bf16.xpose.msra.mxu0 0
      %1333 = vmatprep.subr.bf16.mxu0 0
      %1334 = vmatpush1.bf16.xpose.msra.mxu0 0
      %1335 = vmatprep.subr.bf16.mxu0 0
      %1336 = vmatpush1.bf16.xpose.msra.mxu0 0
      %1337 = vmatprep.subr.bf16.mxu0 0
      %1338 = vmatpush1.bf16.xpose.msra.mxu0 0
      %1339 = vmatprep.subr.bf16.mxu0 0
      %1340 = vmatpush1.bf16.xpose.msra.mxu0 0
      %1341 = vmatprep.subr.bf16.mxu0 0
      %1342 = vmatpush1.bf16.xpose.msra.mxu0 0
      %1343 = vmatprep.subr.bf16.mxu0 0
      %1344 = vmatpush1.bf16.xpose.msra.mxu0 0
      %1345 = vmatprep.subr.bf16.mxu0 0
      %1346 = vmatpush1.bf16.xpose.msra.mxu0 0
      %1347 = vmatprep.subr.bf16.mxu0 0
      %1348 = vmatpush1.bf16.xpose.msra.mxu0 0
      %1349 = vmatprep.subr.bf16.mxu0 0
      %1350 = vmatpush1.bf16.xpose.msra.mxu0 0
      %1351 = vmatprep.mubr.bf16.mxu0 0
      %1352 = vmatmul.mubr.bf16.gmra.mrb[0].mxu0 %v1314
      %v1353 = vpop.f32.mrb[0].mxu0
      %v1354 = vadd.f32 0.0, %v1353
      %v1355 = vpop.f32.mrb[0].mxu0
      %v1356 = vpop.f32.mrb[0].mxu0
      %v1357 = vadd.f32 0.0, %v1356
      %v1358 = vpop.f32.mrb[0].mxu0
      %1359 = vdwg.mxu0
      %v1360 = vmul.f32 %v1354, 0.25
      %v1361 = vmul.f32 %v1357, 0.25
      %v1362 = vadd.f32 %v1360, %v1108
      %v1363 = vadd.f32 %v1361, %v1109
      %v1364 = vsel %vm1186, %v1362, -inf
      %1365 = vmax.xlane.f32.xlu0 %v1364
      %v1366 = vpop.xlane.xlu0 %1365
      %v1367 = vsel %vm1186, %v1363, -inf
      %1368 = vmax.xlane.f32.xlu0 %v1367
      %v1369 = vpop.xlane.xlu0 %1368
      %v1370 = vsub.f32 %v1362, %v1366
      %v1371 = vsub.f32 %v1363, %v1369
      %v1372 = vmul.f32 %v1370, 1.442695
      %v1373 = vpow.pop %v1372
      %v1374 = vmul.f32 %v1371, 1.442695
      %v1375 = vpow.pop %v1374
      %v1376 = vsel %vm1186, %v1373, 0.0
      %1377 = vadd.xlane.f32.xlu0 %v1376
      %v1378 = vpop.xlane.xlu0 %1377
      %v1379 = vsel %vm1186, %v1375, 0.0
      %1380 = vadd.xlane.f32.xlu0 %v1379
      %v1381 = vpop.xlane.xlu0 %1380
      %v1382 = vrcp.pop %v1378
      %v1383 = vrcp.pop %v1381
      %v1384 = vmul.f32 %v1373, %v1382
      %v1385 = vmul.f32 %v1375, %v1383
      %v1386 = vpack.c.bf16 %v1385, %v1384
      %1387 = vrot.lane.b32.xlu0 %v1182, 48
      %v1388 = vpop.permute.xlu0 %1387
      %v1391 = vsel %vm1186, %v1386, 0
      %1393 = vmatprep.subr.bf16.mxu0 0
      %1394 = vmatpush1.bf16.msra.mxu0 %v1388
      %1395 = vmatprep.subr.bf16.mxu0 0
      %1396 = vmatpush1.bf16.msra.mxu0 0
      %1397 = vmatprep.subr.bf16.mxu0 0
      %1398 = vmatpush1.bf16.msra.mxu0 0
      %1399 = vmatprep.subr.bf16.mxu0 0
      %1400 = vmatpush1.bf16.msra.mxu0 0
      %1401 = vmatprep.subr.bf16.mxu0 0
      %1402 = vmatpush1.bf16.msra.mxu0 0
      %1403 = vmatprep.subr.bf16.mxu0 0
      %1404 = vmatpush1.bf16.msra.mxu0 0
      %1405 = vmatprep.subr.bf16.mxu0 0
      %1406 = vmatpush1.bf16.msra.mxu0 0
      %1407 = vmatprep.subr.bf16.mxu0 0
      %1408 = vmatpush1.bf16.msra.mxu0 0
      %1409 = vmatprep.subr.bf16.mxu0 0
      %1410 = vmatpush1.bf16.msra.mxu0 0
      %1411 = vmatprep.subr.bf16.mxu0 0
      %1412 = vmatpush1.bf16.msra.mxu0 0
      %1413 = vmatprep.subr.bf16.mxu0 0
      %1414 = vmatpush1.bf16.msra.mxu0 0
      %1415 = vmatprep.subr.bf16.mxu0 0
      %1416 = vmatpush1.bf16.msra.mxu0 0
      %1417 = vmatprep.subr.bf16.mxu0 0
      %1418 = vmatpush1.bf16.msra.mxu0 0
      %1419 = vmatprep.subr.bf16.mxu0 0
      %1420 = vmatpush1.bf16.msra.mxu0 0
      %1421 = vmatprep.subr.bf16.mxu0 0
      %1422 = vmatpush1.bf16.msra.mxu0 0
      %1423 = vmatprep.subr.bf16.mxu0 0
      %1424 = vmatpush1.bf16.msra.mxu0 0
      %1425 = vmatprep.mubr.bf16.mxu0 0
      %1426 = vmatmul.mubr.bf16.gmra.mrb[0].mxu0 %v1391
      %v1427 = vpop.f32.mrb[0].mxu0
      %v1428 = vadd.f32 0.0, %v1427
      %v1429 = vpop.f32.mrb[0].mxu0
      %v1430 = vpop.f32.mrb[0].mxu0
      %v1431 = vadd.f32 0.0, %v1430
      %v1432 = vpop.f32.mrb[0].mxu0
      %1433 = vdwg.mxu0
      %v1434 = vpack.c.bf16 %v1431, %v1428
      %v1437 = vunpack.c.l.b16 %v1180
      %v1438 = vunpack.c.l.b16 %v1181
      %v1439 = vpack.c.b16 %v1438, %v1437
      %v1442 = vsel %vm1186, %v1434, 0
      %1444 = vmatprep.subr.bf16.mxu0 0
      %1445 = vmatpush1.bf16.msra.mxu0 %v1439
      %1446 = vmatprep.subr.bf16.mxu0 0
      %1447 = vmatpush1.bf16.msra.mxu0 0
      %1448 = vmatprep.subr.bf16.mxu0 0
      %1449 = vmatpush1.bf16.msra.mxu0 0
      %1450 = vmatprep.subr.bf16.mxu0 0
      %1451 = vmatpush1.bf16.msra.mxu0 0
      %1452 = vmatprep.subr.bf16.mxu0 0
      %1453 = vmatpush1.bf16.msra.mxu0 0
      %1454 = vmatprep.subr.bf16.mxu0 0
      %1455 = vmatpush1.bf16.msra.mxu0 0
      %1456 = vmatprep.subr.bf16.mxu0 0
      %1457 = vmatpush1.bf16.msra.mxu0 0
      %1458 = vmatprep.subr.bf16.mxu0 0
      %1459 = vmatpush1.bf16.msra.mxu0 0
      %1460 = vmatprep.subr.bf16.mxu0 0
      %1461 = vmatpush1.bf16.msra.mxu0 0
      %1462 = vmatprep.subr.bf16.mxu0 0
      %1463 = vmatpush1.bf16.msra.mxu0 0
      %1464 = vmatprep.subr.bf16.mxu0 0
      %1465 = vmatpush1.bf16.msra.mxu0 0
      %1466 = vmatprep.subr.bf16.mxu0 0
      %1467 = vmatpush1.bf16.msra.mxu0 0
      %1468 = vmatprep.subr.bf16.mxu0 0
      %1469 = vmatpush1.bf16.msra.mxu0 0
      %1470 = vmatprep.subr.bf16.mxu0 0
      %1471 = vmatpush1.bf16.msra.mxu0 0
      %1472 = vmatprep.subr.bf16.mxu0 0
      %1473 = vmatpush1.bf16.msra.mxu0 0
      %1474 = vmatprep.subr.bf16.mxu0 0
      %1475 = vmatpush1.bf16.msra.mxu0 0
      %1476 = vmatprep.mubr.bf16.mxu0 0
      %1477 = vmatmul.mubr.bf16.gmra.mrb[0].mxu0 %v1442
      %v1478 = vpop.f32.mrb[0].mxu0
      %v1479 = vadd.f32 0.0, %v1478
      %v1480 = vpop.f32.mrb[0].mxu0
      %v1481 = vpop.f32.mrb[0].mxu0
      %v1482 = vadd.f32 0.0, %v1481
      %v1483 = vpop.f32.mrb[0].mxu0
      %1484 = vdwg.mxu0
      %v1487 = vunpack.c.l.b16 %v1178
      %v1488 = vunpack.c.l.b16 %v1179
      %v1489 = vpack.c.b16 %v1488, %v1487
      %v1492 = vsel %vm1186, %v1308, 0
      %1494 = vmatprep.subr.bf16.mxu0 0
      %1495 = vmatpush1.bf16.msra.mxu0 %v1489
      %1496 = vmatprep.subr.bf16.mxu0 0
      %1497 = vmatpush1.bf16.msra.mxu0 0
      %1498 = vmatprep.subr.bf16.mxu0 0
      %1499 = vmatpush1.bf16.msra.mxu0 0
      %1500 = vmatprep.subr.bf16.mxu0 0
      %1501 = vmatpush1.bf16.msra.mxu0 0
      %1502 = vmatprep.subr.bf16.mxu0 0
      %1503 = vmatpush1.bf16.msra.mxu0 0
      %1504 = vmatprep.subr.bf16.mxu0 0
      %1505 = vmatpush1.bf16.msra.mxu0 0
      %1506 = vmatprep.subr.bf16.mxu0 0
      %1507 = vmatpush1.bf16.msra.mxu0 0
      %1508 = vmatprep.subr.bf16.mxu0 0
      %1509 = vmatpush1.bf16.msra.mxu0 0
      %1510 = vmatprep.subr.bf16.mxu0 0
      %1511 = vmatpush1.bf16.msra.mxu0 0
      %1512 = vmatprep.subr.bf16.mxu0 0
      %1513 = vmatpush1.bf16.msra.mxu0 0
      %1514 = vmatprep.subr.bf16.mxu0 0
      %1515 = vmatpush1.bf16.msra.mxu0 0
      %1516 = vmatprep.subr.bf16.mxu0 0
      %1517 = vmatpush1.bf16.msra.mxu0 0
      %1518 = vmatprep.subr.bf16.mxu0 0
      %1519 = vmatpush1.bf16.msra.mxu0 0
      %1520 = vmatprep.subr.bf16.mxu0 0
      %1521 = vmatpush1.bf16.msra.mxu0 0
      %1522 = vmatprep.subr.bf16.mxu0 0
      %1523 = vmatpush1.bf16.msra.mxu0 0
      %1524 = vmatprep.subr.bf16.mxu0 0
      %1525 = vmatpush1.bf16.msra.mxu0 0
      %1526 = vmatprep.mubr.bf16.mxu0 0
      %1527 = vmatmul.mubr.bf16.gmra.mrb[0].mxu0 %v1492
      %v1528 = vpop.f32.mrb[0].mxu0
      %v1529 = vadd.f32 %v1479, %v1528
      %v1530 = vpop.f32.mrb[0].mxu0
      %v1531 = vpop.f32.mrb[0].mxu0
      %v1532 = vadd.f32 %v1482, %v1531
      %v1533 = vpop.f32.mrb[0].mxu0
      %1534 = vdwg.mxu0
      %v1535 = vld [vmem:[%s906] sm:$0x1]
      %v1537 = vlaneseq
      %v1538 = vshrl.u32 %v1537, 7
      %v1539 = vsub.s32 0, %v1538
      %v1540 = vrot.slane %v1535, %v1539
      %v1542 = vadd.f32 %v1529, %v1540
      %v1543 = vadd.f32 %v1532, %v1540
      %v1544 = vadd.f32 %v1542, %v1106
      %v1545 = vadd.f32 %v1543, %v1107
      %v1546 = vld [vmem:[%s910] sm:$0x1]
      %v1547 = vld [vmem:[%s914] sm:$0x1]
      %v1548 = vsel %vm1064, %v1544, 0.0
      %1549 = vadd.xlane.f32.xlu0 %v1548
      %v1550 = vpop.xlane.xlu0 %1549
      %v1551 = vsel %vm1064, %v1545, 0.0
      %1552 = vadd.xlane.f32.xlu0 %v1551
      %v1553 = vpop.xlane.xlu0 %1552
      %v1554 = vmul.f32 %v1550, %v1071
      %v1555 = vmul.f32 %v1553, %v1071
      %v1556 = vsub.f32 %v1544, %v1554
      %v1557 = vsub.f32 %v1545, %v1555
      %v1558 = vmul.f32 %v1556, %v1556
      %v1559 = vmul.f32 %v1557, %v1557
      %v1560 = vsel %vm1064, %v1558, 0.0
      %1561 = vadd.xlane.f32.xlu0 %v1560
      %v1562 = vpop.xlane.xlu0 %1561
      %v1563 = vsel %vm1064, %v1559, 0.0
      %1564 = vadd.xlane.f32.xlu0 %v1563
      %v1565 = vpop.xlane.xlu0 %1564
      %v1566 = vmul.f32 %v1562, %v1071
      %v1567 = vmul.f32 %v1565, %v1071
      %v1568 = vadd.f32 %v1566, 1e-12
      %v1569 = vadd.f32 %v1567, 1e-12
      %v1570 = vrsqrt.pop %v1568
      %v1571 = vrsqrt.pop %v1569
      %v1572 = vmul.f32 %v1556, %v1570
      %v1573 = vmul.f32 %v1557, %v1571
      %v1575 = vlaneseq
      %v1576 = vshrl.u32 %v1575, 7
      %v1577 = vsub.s32 0, %v1576
      %v1578 = vrot.slane %v1546, %v1577
      %v1580 = vmul.f32 %v1572, %v1578
      %v1581 = vmul.f32 %v1573, %v1578
      %v1583 = vlaneseq
      %v1584 = vshrl.u32 %v1583, 7
      %v1585 = vsub.s32 0, %v1584
      %v1586 = vrot.slane %v1547, %v1585
      %v1588 = vadd.f32 %v1580, %v1586
      %v1589 = vadd.f32 %v1581, %v1586
      %v1590 = vpack.c.bf16 %v1589, %v1588
      %v1591 = vld [vmem:[%s919] sm:$0xf]
      %v1592 = vld [vmem:[%s919 + $0x4] sm:$0xf]
      %v1593 = vld [vmem:[%s919 + $0x8] sm:$0xf]
      %v1594 = vld [vmem:[%s919 + $0xc] sm:$0xf]
      %v1595 = vld [vmem:[%s923] sm:$0x1]
      %v1597 = vlaneseq
      %v1598 = vshrl.u32 %v1597, 7
      %v1599 = vsub.s32 0, %v1598
      %v1600 = vrot.slane %v1595, %v1599
      %v1606 = vunpack.c.l.b16 %v1591
      %v1607 = vunpack.c.l.b16 %v1592
      %v1608 = vunpack.c.l.b16 %v1593
      %v1609 = vunpack.c.l.b16 %v1594
      %v1610 = vpack.c.b16 %v1607, %v1606
      %v1611 = vpack.c.b16 %v1609, %v1608
      %v1615 = vsel %vm1064, %v1590, 0
      %1617 = vmatprep.subr.bf16.mxu0 0
      %1618 = vmatpush1.bf16.msra.mxu0 %v1610
      %1619 = vmatprep.subr.bf16.mxu0 0
      %1620 = vmatpush1.bf16.msra.mxu0 %v1611
      %1621 = vmatprep.subr.bf16.mxu0 0
      %1622 = vmatpush1.bf16.msra.mxu0 0
      %1623 = vmatprep.subr.bf16.mxu0 0
      %1624 = vmatpush1.bf16.msra.mxu0 0
      %1625 = vmatprep.subr.bf16.mxu0 0
      %1626 = vmatpush1.bf16.msra.mxu0 0
      %1627 = vmatprep.subr.bf16.mxu0 0
      %1628 = vmatpush1.bf16.msra.mxu0 0
      %1629 = vmatprep.subr.bf16.mxu0 0
      %1630 = vmatpush1.bf16.msra.mxu0 0
      %1631 = vmatprep.subr.bf16.mxu0 0
      %1632 = vmatpush1.bf16.msra.mxu0 0
      %1633 = vmatprep.subr.bf16.mxu0 0
      %1634 = vmatpush1.bf16.msra.mxu0 0
      %1635 = vmatprep.subr.bf16.mxu0 0
      %1636 = vmatpush1.bf16.msra.mxu0 0
      %1637 = vmatprep.subr.bf16.mxu0 0
      %1638 = vmatpush1.bf16.msra.mxu0 0
      %1639 = vmatprep.subr.bf16.mxu0 0
      %1640 = vmatpush1.bf16.msra.mxu0 0
      %1641 = vmatprep.subr.bf16.mxu0 0
      %1642 = vmatpush1.bf16.msra.mxu0 0
      %1643 = vmatprep.subr.bf16.mxu0 0
      %1644 = vmatpush1.bf16.msra.mxu0 0
      %1645 = vmatprep.subr.bf16.mxu0 0
      %1646 = vmatpush1.bf16.msra.mxu0 0
      %1647 = vmatprep.subr.bf16.mxu0 0
      %1648 = vmatpush1.bf16.msra.mxu0 0
      %1649 = vmatprep.mubr.bf16.mxu0 0
      %1650 = vmatmul.mubr.bf16.gmra.mrb[0].mxu0 %v1615
      %v1651 = vpop.f32.mrb[0].mxu0
      %v1652 = vadd.f32 %v1600, %v1651
      %v1653 = vpop.f32.mrb[0].mxu0
      %v1654 = vpop.f32.mrb[0].mxu0
      %v1655 = vadd.f32 %v1600, %v1654
      %v1656 = vpop.f32.mrb[0].mxu0
      %1657 = vdwg.mxu0
      %v1658 = vmul.f32 %v1652, 0.5
      %v1659 = vmul.f32 %v1655, 0.5
      %v1660 = vmul.f32 %v1652, 0.044715
      %v1661 = vmul.f32 %v1655, 0.044715
      %v1662 = vmul.f32 %v1660, %v1652
      %v1663 = vmul.f32 %v1661, %v1655
      %v1664 = vmul.f32 %v1662, %v1652
      %v1665 = vmul.f32 %v1663, %v1655
      %v1666 = vadd.f32 %v1652, %v1664
      %v1667 = vadd.f32 %v1655, %v1665
      %v1668 = vmul.f32 %v1666, 0.7978846
      %v1669 = vmul.f32 %v1667, 0.7978846
      %v1670 = vtanh.pop %v1668
      %v1671 = vtanh.pop %v1669
      %v1672 = vadd.f32 %v1670, 1.0
      %v1673 = vadd.f32 %v1671, 1.0
      %v1674 = vmul.f32 %v1658, %v1672
      %v1675 = vmul.f32 %v1659, %v1673
      %v1676 = vpack.c.bf16 %v1675, %v1674
      %v1677 = vld [vmem:[%s928] sm:$0xf]
      %v1678 = vld [vmem:[%s928 + $0x4] sm:$0xf]
      %v1679 = vld [vmem:[%s928 + $0x8] sm:$0xf]
      %v1680 = vld [vmem:[%s928 + $0xc] sm:$0xf]
      %v1681 = vld [vmem:[%s928 + $0x10] sm:$0xf]
      %v1682 = vld [vmem:[%s928 + $0x14] sm:$0xf]
      %v1683 = vld [vmem:[%s928 + $0x18] sm:$0xf]
      %v1684 = vld [vmem:[%s928 + $0x1c] sm:$0xf]
      %v1685 = vld [vmem:[%s932] sm:$0x1]
      %v1687 = vlaneseq
      %v1688 = vshrl.u32 %v1687, 7
      %v1689 = vsub.s32 0, %v1688
      %v1690 = vrot.slane %v1685, %v1689
      %v1700 = vunpack.c.l.b16 %v1677
      %v1701 = vunpack.c.l.b16 %v1678
      %v1702 = vunpack.c.l.b16 %v1679
      %v1703 = vunpack.c.l.b16 %v1680
      %v1704 = vunpack.c.l.b16 %v1681
      %v1705 = vunpack.c.l.b16 %v1682
      %v1706 = vunpack.c.l.b16 %v1683
      %v1707 = vunpack.c.l.b16 %v1684
      %v1708 = vpack.c.b16 %v1701, %v1700
      %v1709 = vpack.c.b16 %v1703, %v1702
      %v1710 = vpack.c.b16 %v1705, %v1704
      %v1711 = vpack.c.b16 %v1707, %v1706
      %v1717 = vsel %vm980, %v1676, 0
      %1719 = vmatprep.subr.bf16.mxu0 0
      %1720 = vmatpush1.bf16.msra.mxu0 %v1708
      %1721 = vmatprep.subr.bf16.mxu0 0
      %1722 = vmatpush1.bf16.msra.mxu0 %v1709
      %1723 = vmatprep.subr.bf16.mxu0 0
      %1724 = vmatpush1.bf16.msra.mxu0 %v1710
      %1725 = vmatprep.subr.bf16.mxu0 0
      %1726 = vmatpush1.bf16.msra.mxu0 %v1711
      %1727 = vmatprep.subr.bf16.mxu0 0
      %1728 = vmatpush1.bf16.msra.mxu0 0
      %1729 = vmatprep.subr.bf16.mxu0 0
      %1730 = vmatpush1.bf16.msra.mxu0 0
      %1731 = vmatprep.subr.bf16.mxu0 0
      %1732 = vmatpush1.bf16.msra.mxu0 0
      %1733 = vmatprep.subr.bf16.mxu0 0
      %1734 = vmatpush1.bf16.msra.mxu0 0
      %1735 = vmatprep.subr.bf16.mxu0 0
      %1736 = vmatpush1.bf16.msra.mxu0 0
      %1737 = vmatprep.subr.bf16.mxu0 0
      %1738 = vmatpush1.bf16.msra.mxu0 0
      %1739 = vmatprep.subr.bf16.mxu0 0
      %1740 = vmatpush1.bf16.msra.mxu0 0
      %1741 = vmatprep.subr.bf16.mxu0 0
      %1742 = vmatpush1.bf16.msra.mxu0 0
      %1743 = vmatprep.subr.bf16.mxu0 0
      %1744 = vmatpush1.bf16.msra.mxu0 0
      %1745 = vmatprep.subr.bf16.mxu0 0
      %1746 = vmatpush1.bf16.msra.mxu0 0
      %1747 = vmatprep.subr.bf16.mxu0 0
      %1748 = vmatpush1.bf16.msra.mxu0 0
      %1749 = vmatprep.subr.bf16.mxu0 0
      %1750 = vmatpush1.bf16.msra.mxu0 0
      %1751 = vmatprep.mubr.bf16.mxu0 0
      %1752 = vmatmul.mubr.bf16.gmra.mrb[0].mxu0 %v1717
      %v1753 = vpop.f32.mrb[0].mxu0
      %v1754 = vadd.f32 %v1690, %v1753
      %v1755 = vpop.f32.mrb[0].mxu0
      %v1756 = vpop.f32.mrb[0].mxu0
      %v1757 = vadd.f32 %v1690, %v1756
      %v1758 = vpop.f32.mrb[0].mxu0
      %1759 = vdwg.mxu0
      %v1760 = vadd.f32 %v1754, %v1588
      %v1761 = vadd.f32 %v1757, %v1589
      %v1762 = vld [vmem:[%s936] sm:$0x1]
      %v1763 = vld [vmem:[%s940] sm:$0x1]
      %v1764 = vsel %vm1064, %v1760, 0.0
      %1765 = vadd.xlane.f32.xlu0 %v1764
      %v1766 = vpop.xlane.xlu0 %1765
      %v1767 = vsel %vm1064, %v1761, 0.0
      %1768 = vadd.xlane.f32.xlu0 %v1767
      %v1769 = vpop.xlane.xlu0 %1768
      %v1770 = vmul.f32 %v1766, %v1071
      %v1771 = vmul.f32 %v1769, %v1071
      %v1772 = vsub.f32 %v1760, %v1770
      %v1773 = vsub.f32 %v1761, %v1771
      %v1774 = vmul.f32 %v1772, %v1772
      %v1775 = vmul.f32 %v1773, %v1773
      %v1776 = vsel %vm1064, %v1774, 0.0
      %1777 = vadd.xlane.f32.xlu0 %v1776
      %v1778 = vpop.xlane.xlu0 %1777
      %v1779 = vsel %vm1064, %v1775, 0.0
      %1780 = vadd.xlane.f32.xlu0 %v1779
      %v1781 = vpop.xlane.xlu0 %1780
      %v1782 = vmul.f32 %v1778, %v1071
      %v1783 = vmul.f32 %v1781, %v1071
      %v1784 = vadd.f32 %v1782, 1e-12
      %v1785 = vadd.f32 %v1783, 1e-12
      %v1786 = vrsqrt.pop %v1784
      %v1787 = vrsqrt.pop %v1785
      %v1788 = vmul.f32 %v1772, %v1786
      %v1789 = vmul.f32 %v1773, %v1787
      %v1791 = vlaneseq
      %v1792 = vshrl.u32 %v1791, 7
      %v1793 = vsub.s32 0, %v1792
      %v1794 = vrot.slane %v1762, %v1793
      %v1796 = vmul.f32 %v1788, %v1794
      %v1797 = vmul.f32 %v1789, %v1794
      %v1799 = vlaneseq
      %v1800 = vshrl.u32 %v1799, 7
      %v1801 = vsub.s32 0, %v1800
      %v1802 = vrot.slane %v1763, %v1801
      %v1804 = vadd.f32 %v1796, %v1802
      %v1805 = vadd.f32 %v1797, %v1802
      %v1806 = vpack.c.bf16 %v1805, %v1804
      %s1807 = scalar_lea.vmem %s893, 16
      %v1808 = vld [vmem:[%s1807] sm:$0xf]
      %v1809 = vld [vmem:[%s1807 + $0x4] sm:$0xf]
      %v1810 = vld [vmem:[%s1807 + $0x8] sm:$0xf]
      %v1811 = vld [vmem:[%s1807 + $0xc] sm:$0xf]
      %s1812 = scalar_lea.vmem %s897, 1
      %v1813 = vld [vmem:[%s1812] sm:$0x1]
      %v1815 = vlaneseq
      %v1816 = vshrl.u32 %v1815, 7
      %v1817 = vsub.s32 0, %v1816
      %v1818 = vrot.slane %v1813, %v1817
      %v1824 = vunpack.c.l.b16 %v1808
      %v1825 = vunpack.c.l.b16 %v1809
      %v1826 = vunpack.c.l.b16 %v1810
      %v1827 = vunpack.c.l.b16 %v1811
      %v1828 = vpack.c.b16 %v1825, %v1824
      %v1829 = vpack.c.b16 %v1827, %v1826
      %v1833 = vsel %vm1064, %v1806, 0
      %1835 = vmatprep.subr.bf16.mxu0 0
      %1836 = vmatpush1.bf16.msra.mxu0 %v1828
      %1837 = vmatprep.subr.bf16.mxu0 0
      %1838 = vmatpush1.bf16.msra.mxu0 %v1829
      %1839 = vmatprep.subr.bf16.mxu0 0
      %1840 = vmatpush1.bf16.msra.mxu0 0
      %1841 = vmatprep.subr.bf16.mxu0 0
      %1842 = vmatpush1.bf16.msra.mxu0 0
      %1843 = vmatprep.subr.bf16.mxu0 0
      %1844 = vmatpush1.bf16.msra.mxu0 0
      %1845 = vmatprep.subr.bf16.mxu0 0
      %1846 = vmatpush1.bf16.msra.mxu0 0
      %1847 = vmatprep.subr.bf16.mxu0 0
      %1848 = vmatpush1.bf16.msra.mxu0 0
      %1849 = vmatprep.subr.bf16.mxu0 0
      %1850 = vmatpush1.bf16.msra.mxu0 0
      %1851 = vmatprep.subr.bf16.mxu0 0
      %1852 = vmatpush1.bf16.msra.mxu0 0
      %1853 = vmatprep.subr.bf16.mxu0 0
      %1854 = vmatpush1.bf16.msra.mxu0 0
      %1855 = vmatprep.subr.bf16.mxu0 0
      %1856 = vmatpush1.bf16.msra.mxu0 0
      %1857 = vmatprep.subr.bf16.mxu0 0
      %1858 = vmatpush1.bf16.msra.mxu0 0
      %1859 = vmatprep.subr.bf16.mxu0 0
      %1860 = vmatpush1.bf16.msra.mxu0 0
      %1861 = vmatprep.subr.bf16.mxu0 0
      %1862 = vmatpush1.bf16.msra.mxu0 0
      %1863 = vmatprep.subr.bf16.mxu0 0
      %1864 = vmatpush1.bf16.msra.mxu0 0
      %1865 = vmatprep.subr.bf16.mxu0 0
      %1866 = vmatpush1.bf16.msra.mxu0 0
      %1867 = vmatprep.mubr.bf16.mxu0 0
      %1868 = vmatmul.mubr.bf16.gmra.mrb[0].mxu0 %v1833
      %v1869 = vpop.f32.mrb[0].mxu0
      %v1870 = vadd.f32 %v1818, %v1869
      %v1871 = vpop.f32.mrb[0].mxu0
      %v1872 = vpop.f32.mrb[0].mxu0
      %v1873 = vadd.f32 %v1818, %v1872
      %v1874 = vpop.f32.mrb[0].mxu0
      %1875 = vdwg.mxu0
      %s1876 = scalar_lea.vmem %s902, 16
      %v1877 = vld [vmem:[%s1876] sm:$0xf]
      %v1878 = vld [vmem:[%s1876 + $0x4] sm:$0xf]
      %v1879 = vld [vmem:[%s1876 + $0x8] sm:$0xf]
      %v1880 = vld [vmem:[%s1876 + $0xc] sm:$0xf]
      %v1881 = vpack.c.bf16 %v1873, %v1870
      %1883 = vrot.lane.b32.xlu0 %v1881, 96
      %v1884 = vpop.permute.xlu0 %1883
      %v1886 = vsel %vm1186, %v1881, 0
      %v1889 = vsel %vm1186, %v1884, 0
      %1891 = vmatprep.subr.bf16.mxu0 0
      %1892 = vmatpush1.bf16.xpose.msra.mxu0 %v1889
      %1893 = vmatprep.subr.bf16.mxu0 0
      %1894 = vmatpush1.bf16.xpose.msra.mxu0 0
      %1895 = vmatprep.subr.bf16.mxu0 0
      %1896 = vmatpush1.bf16.xpose.msra.mxu0 0
      %1897 = vmatprep.subr.bf16.mxu0 0
      %1898 = vmatpush1.bf16.xpose.msra.mxu0 0
      %1899 = vmatprep.subr.bf16.mxu0 0
      %1900 = vmatpush1.bf16.xpose.msra.mxu0 0
      %1901 = vmatprep.subr.bf16.mxu0 0
      %1902 = vmatpush1.bf16.xpose.msra.mxu0 0
      %1903 = vmatprep.subr.bf16.mxu0 0
      %1904 = vmatpush1.bf16.xpose.msra.mxu0 0
      %1905 = vmatprep.subr.bf16.mxu0 0
      %1906 = vmatpush1.bf16.xpose.msra.mxu0 0
      %1907 = vmatprep.subr.bf16.mxu0 0
      %1908 = vmatpush1.bf16.xpose.msra.mxu0 0
      %1909 = vmatprep.subr.bf16.mxu0 0
      %1910 = vmatpush1.bf16.xpose.msra.mxu0 0
      %1911 = vmatprep.subr.bf16.mxu0 0
      %1912 = vmatpush1.bf16.xpose.msra.mxu0 0
      %1913 = vmatprep.subr.bf16.mxu0 0
      %1914 = vmatpush1.bf16.xpose.msra.mxu0 0
      %1915 = vmatprep.subr.bf16.mxu0 0
      %1916 = vmatpush1.bf16.xpose.msra.mxu0 0
      %1917 = vmatprep.subr.bf16.mxu0 0
      %1918 = vmatpush1.bf16.xpose.msra.mxu0 0
      %1919 = vmatprep.subr.bf16.mxu0 0
      %1920 = vmatpush1.bf16.xpose.msra.mxu0 0
      %1921 = vmatprep.subr.bf16.mxu0 0
      %1922 = vmatpush1.bf16.xpose.msra.mxu0 0
      %1923 = vmatprep.mubr.bf16.mxu0 0
      %1924 = vmatmul.mubr.bf16.gmra.mrb[0].mxu0 %v1886
      %v1925 = vpop.f32.mrb[0].mxu0
      %v1926 = vadd.f32 0.0, %v1925
      %v1927 = vpop.f32.mrb[0].mxu0
      %v1928 = vpop.f32.mrb[0].mxu0
      %v1929 = vadd.f32 0.0, %v1928
      %v1930 = vpop.f32.mrb[0].mxu0
      %1931 = vdwg.mxu0
      %v1932 = vmul.f32 %v1926, 0.25
      %v1933 = vmul.f32 %v1929, 0.25
      %v1934 = vadd.f32 %v1932, %v1108
      %v1935 = vadd.f32 %v1933, %v1109
      %v1936 = vsel %vm1186, %v1934, -inf
      %1937 = vmax.xlane.f32.xlu0 %v1936
      %v1938 = vpop.xlane.xlu0 %1937
      %v1939 = vsel %vm1186, %v1935, -inf
      %1940 = vmax.xlane.f32.xlu0 %v1939
      %v1941 = vpop.xlane.xlu0 %1940
      %v1942 = vsub.f32 %v1934, %v1938
      %v1943 = vsub.f32 %v1935, %v1941
      %v1944 = vmul.f32 %v1942, 1.442695
      %v1945 = vpow.pop %v1944
      %v1946 = vmul.f32 %v1943, 1.442695
      %v1947 = vpow.pop %v1946
      %v1948 = vsel %vm1186, %v1945, 0.0
      %1949 = vadd.xlane.f32.xlu0 %v1948
      %v1950 = vpop.xlane.xlu0 %1949
      %v1951 = vsel %vm1186, %v1947, 0.0
      %1952 = vadd.xlane.f32.xlu0 %v1951
      %v1953 = vpop.xlane.xlu0 %1952
      %v1954 = vrcp.pop %v1950
      %v1955 = vrcp.pop %v1953
      %v1956 = vmul.f32 %v1945, %v1954
      %v1957 = vmul.f32 %v1947, %v1955
      %v1958 = vpack.c.bf16 %v1957, %v1956
      %1959 = vrot.lane.b32.xlu0 %v1881, 64
      %v1960 = vpop.permute.xlu0 %1959
      %v1963 = vsel %vm1186, %v1958, 0
      %1965 = vmatprep.subr.bf16.mxu0 0
      %1966 = vmatpush1.bf16.msra.mxu0 %v1960
      %1967 = vmatprep.subr.bf16.mxu0 0
      %1968 = vmatpush1.bf16.msra.mxu0 0
      %1969 = vmatprep.subr.bf16.mxu0 0
      %1970 = vmatpush1.bf16.msra.mxu0 0
      %1971 = vmatprep.subr.bf16.mxu0 0
      %1972 = vmatpush1.bf16.msra.mxu0 0
      %1973 = vmatprep.subr.bf16.mxu0 0
      %1974 = vmatpush1.bf16.msra.mxu0 0
      %1975 = vmatprep.subr.bf16.mxu0 0
      %1976 = vmatpush1.bf16.msra.mxu0 0
      %1977 = vmatprep.subr.bf16.mxu0 0
      %1978 = vmatpush1.bf16.msra.mxu0 0
      %1979 = vmatprep.subr.bf16.mxu0 0
      %1980 = vmatpush1.bf16.msra.mxu0 0
      %1981 = vmatprep.subr.bf16.mxu0 0
      %1982 = vmatpush1.bf16.msra.mxu0 0
      %1983 = vmatprep.subr.bf16.mxu0 0
      %1984 = vmatpush1.bf16.msra.mxu0 0
      %1985 = vmatprep.subr.bf16.mxu0 0
      %1986 = vmatpush1.bf16.msra.mxu0 0
      %1987 = vmatprep.subr.bf16.mxu0 0
      %1988 = vmatpush1.bf16.msra.mxu0 0
      %1989 = vmatprep.subr.bf16.mxu0 0
      %1990 = vmatpush1.bf16.msra.mxu0 0
      %1991 = vmatprep.subr.bf16.mxu0 0
      %1992 = vmatpush1.bf16.msra.mxu0 0
      %1993 = vmatprep.subr.bf16.mxu0 0
      %1994 = vmatpush1.bf16.msra.mxu0 0
      %1995 = vmatprep.subr.bf16.mxu0 0
      %1996 = vmatpush1.bf16.msra.mxu0 0
      %1997 = vmatprep.mubr.bf16.mxu0 0
      %1998 = vmatmul.mubr.bf16.gmra.mrb[0].mxu0 %v1963
      %v1999 = vpop.f32.mrb[0].mxu0
      %v2000 = vadd.f32 0.0, %v1999
      %v2001 = vpop.f32.mrb[0].mxu0
      %v2002 = vpop.f32.mrb[0].mxu0
      %v2003 = vadd.f32 0.0, %v2002
      %v2004 = vpop.f32.mrb[0].mxu0
      %2005 = vdwg.mxu0
      %v2006 = vpack.c.bf16 %v2003, %v2000
      %2007 = vrot.lane.b32.xlu0 %v1881, 112
      %v2008 = vpop.permute.xlu0 %2007
      %2009 = vrot.lane.b32.xlu0 %v1881, 80
      %v2010 = vpop.permute.xlu0 %2009
      %v2012 = vsel %vm1186, %v2008, 0
      %v2015 = vsel %vm1186, %v2010, 0
      %2017 = vmatprep.subr.bf16.mxu0 0
      %2018 = vmatpush1.bf16.xpose.msra.mxu0 %v2015
      %2019 = vmatprep.subr.bf16.mxu0 0
      %2020 = vmatpush1.bf16.xpose.msra.mxu0 0
      %2021 = vmatprep.subr.bf16.mxu0 0
      %2022 = vmatpush1.bf16.xpose.msra.mxu0 0
      %2023 = vmatprep.subr.bf16.mxu0 0
      %2024 = vmatpush1.bf16.xpose.msra.mxu0 0
      %2025 = vmatprep.subr.bf16.mxu0 0
      %2026 = vmatpush1.bf16.xpose.msra.mxu0 0
      %2027 = vmatprep.subr.bf16.mxu0 0
      %2028 = vmatpush1.bf16.xpose.msra.mxu0 0
      %2029 = vmatprep.subr.bf16.mxu0 0
      %2030 = vmatpush1.bf16.xpose.msra.mxu0 0
      %2031 = vmatprep.subr.bf16.mxu0 0
      %2032 = vmatpush1.bf16.xpose.msra.mxu0 0
      %2033 = vmatprep.subr.bf16.mxu0 0
      %2034 = vmatpush1.bf16.xpose.msra.mxu0 0
      %2035 = vmatprep.subr.bf16.mxu0 0
      %2036 = vmatpush1.bf16.xpose.msra.mxu0 0
      %2037 = vmatprep.subr.bf16.mxu0 0
      %2038 = vmatpush1.bf16.xpose.msra.mxu0 0
      %2039 = vmatprep.subr.bf16.mxu0 0
      %2040 = vmatpush1.bf16.xpose.msra.mxu0 0
      %2041 = vmatprep.subr.bf16.mxu0 0
      %2042 = vmatpush1.bf16.xpose.msra.mxu0 0
      %2043 = vmatprep.subr.bf16.mxu0 0
      %2044 = vmatpush1.bf16.xpose.msra.mxu0 0
      %2045 = vmatprep.subr.bf16.mxu0 0
      %2046 = vmatpush1.bf16.xpose.msra.mxu0 0
      %2047 = vmatprep.subr.bf16.mxu0 0
      %2048 = vmatpush1.bf16.xpose.msra.mxu0 0
      %2049 = vmatprep.mubr.bf16.mxu0 0
      %2050 = vmatmul.mubr.bf16.gmra.mrb[0].mxu0 %v2012
      %v2051 = vpop.f32.mrb[0].mxu0
      %v2052 = vadd.f32 0.0, %v2051
      %v2053 = vpop.f32.mrb[0].mxu0
      %v2054 = vpop.f32.mrb[0].mxu0
      %v2055 = vadd.f32 0.0, %v2054
      %v2056 = vpop.f32.mrb[0].mxu0
      %2057 = vdwg.mxu0
      %v2058 = vmul.f32 %v2052, 0.25
      %v2059 = vmul.f32 %v2055, 0.25
      %v2060 = vadd.f32 %v2058, %v1108
      %v2061 = vadd.f32 %v2059, %v1109
      %v2062 = vsel %vm1186, %v2060, -inf
      %2063 = vmax.xlane.f32.xlu0 %v2062
      %v2064 = vpop.xlane.xlu0 %2063
      %v2065 = vsel %vm1186, %v2061, -inf
      %2066 = vmax.xlane.f32.xlu0 %v2065
      %v2067 = vpop.xlane.xlu0 %2066
      %v2068 = vsub.f32 %v2060, %v2064
      %v2069 = vsub.f32 %v2061, %v2067
      %v2070 = vmul.f32 %v2068, 1.442695
      %v2071 = vpow.pop %v2070
      %v2072 = vmul.f32 %v2069, 1.442695
      %v2073 = vpow.pop %v2072
      %v2074 = vsel %vm1186, %v2071, 0.0
      %2075 = vadd.xlane.f32.xlu0 %v2074
      %v2076 = vpop.xlane.xlu0 %2075
      %v2077 = vsel %vm1186, %v2073, 0.0
      %2078 = vadd.xlane.f32.xlu0 %v2077
      %v2079 = vpop.xlane.xlu0 %2078
      %v2080 = vrcp.pop %v2076
      %v2081 = vrcp.pop %v2079
      %v2082 = vmul.f32 %v2071, %v2080
      %v2083 = vmul.f32 %v2073, %v2081
      %v2084 = vpack.c.bf16 %v2083, %v2082
      %2085 = vrot.lane.b32.xlu0 %v1881, 48
      %v2086 = vpop.permute.xlu0 %2085
      %v2089 = vsel %vm1186, %v2084, 0
      %2091 = vmatprep.subr.bf16.mxu0 0
      %2092 = vmatpush1.bf16.msra.mxu0 %v2086
      %2093 = vmatprep.subr.bf16.mxu0 0
      %2094 = vmatpush1.bf16.msra.mxu0 0
      %2095 = vmatprep.subr.bf16.mxu0 0
      %2096 = vmatpush1.bf16.msra.mxu0 0
      %2097 = vmatprep.subr.bf16.mxu0 0
      %2098 = vmatpush1.bf16.msra.mxu0 0
      %2099 = vmatprep.subr.bf16.mxu0 0
      %2100 = vmatpush1.bf16.msra.mxu0 0
      %2101 = vmatprep.subr.bf16.mxu0 0
      %2102 = vmatpush1.bf16.msra.mxu0 0
      %2103 = vmatprep.subr.bf16.mxu0 0
      %2104 = vmatpush1.bf16.msra.mxu0 0
      %2105 = vmatprep.subr.bf16.mxu0 0
      %2106 = vmatpush1.bf16.msra.mxu0 0
      %2107 = vmatprep.subr.bf16.mxu0 0
      %2108 = vmatpush1.bf16.msra.mxu0 0
      %2109 = vmatprep.subr.bf16.mxu0 0
      %2110 = vmatpush1.bf16.msra.mxu0 0
      %2111 = vmatprep.subr.bf16.mxu0 0
      %2112 = vmatpush1.bf16.msra.mxu0 0
      %2113 = vmatprep.subr.bf16.mxu0 0
      %2114 = vmatpush1.bf16.msra.mxu0 0
      %2115 = vmatprep.subr.bf16.mxu0 0
      %2116 = vmatpush1.bf16.msra.mxu0 0
      %2117 = vmatprep.subr.bf16.mxu0 0
      %2118 = vmatpush1.bf16.msra.mxu0 0
      %2119 = vmatprep.subr.bf16.mxu0 0
      %2120 = vmatpush1.bf16.msra.mxu0 0
      %2121 = vmatprep.subr.bf16.mxu0 0
      %2122 = vmatpush1.bf16.msra.mxu0 0
      %2123 = vmatprep.mubr.bf16.mxu0 0
      %2124 = vmatmul.mubr.bf16.gmra.mrb[0].mxu0 %v2089
      %v2125 = vpop.f32.mrb[0].mxu0
      %v2126 = vadd.f32 0.0, %v2125
      %v2127 = vpop.f32.mrb[0].mxu0
      %v2128 = vpop.f32.mrb[0].mxu0
      %v2129 = vadd.f32 0.0, %v2128
      %v2130 = vpop.f32.mrb[0].mxu0
      %2131 = vdwg.mxu0
      %v2132 = vpack.c.bf16 %v2129, %v2126
      %v2135 = vunpack.c.l.b16 %v1879
      %v2136 = vunpack.c.l.b16 %v1880
      %v2137 = vpack.c.b16 %v2136, %v2135
      %v2140 = vsel %vm1186, %v2132, 0
      %2142 = vmatprep.subr.bf16.mxu0 0
      %2143 = vmatpush1.bf16.msra.mxu0 %v2137
      %2144 = vmatprep.subr.bf16.mxu0 0
      %2145 = vmatpush1.bf16.msra.mxu0 0
      %2146 = vmatprep.subr.bf16.mxu0 0
      %2147 = vmatpush1.bf16.msra.mxu0 0
      %2148 = vmatprep.subr.bf16.mxu0 0
      %2149 = vmatpush1.bf16.msra.mxu0 0
      %2150 = vmatprep.subr.bf16.mxu0 0
      %2151 = vmatpush1.bf16.msra.mxu0 0
      %2152 = vmatprep.subr.bf16.mxu0 0
      %2153 = vmatpush1.bf16.msra.mxu0 0
      %2154 = vmatprep.subr.bf16.mxu0 0
      %2155 = vmatpush1.bf16.msra.mxu0 0
      %2156 = vmatprep.subr.bf16.mxu0 0
      %2157 = vmatpush1.bf16.msra.mxu0 0
      %2158 = vmatprep.subr.bf16.mxu0 0
      %2159 = vmatpush1.bf16.msra.mxu0 0
      %2160 = vmatprep.subr.bf16.mxu0 0
      %2161 = vmatpush1.bf16.msra.mxu0 0
      %2162 = vmatprep.subr.bf16.mxu0 0
      %2163 = vmatpush1.bf16.msra.mxu0 0
      %2164 = vmatprep.subr.bf16.mxu0 0
      %2165 = vmatpush1.bf16.msra.mxu0 0
      %2166 = vmatprep.subr.bf16.mxu0 0
      %2167 = vmatpush1.bf16.msra.mxu0 0
      %2168 = vmatprep.subr.bf16.mxu0 0
      %2169 = vmatpush1.bf16.msra.mxu0 0
      %2170 = vmatprep.subr.bf16.mxu0 0
      %2171 = vmatpush1.bf16.msra.mxu0 0
      %2172 = vmatprep.subr.bf16.mxu0 0
      %2173 = vmatpush1.bf16.msra.mxu0 0
      %2174 = vmatprep.mubr.bf16.mxu0 0
      %2175 = vmatmul.mubr.bf16.gmra.mrb[0].mxu0 %v2140
      %v2176 = vpop.f32.mrb[0].mxu0
      %v2177 = vadd.f32 0.0, %v2176
      %v2178 = vpop.f32.mrb[0].mxu0
      %v2179 = vpop.f32.mrb[0].mxu0
      %v2180 = vadd.f32 0.0, %v2179
      %v2181 = vpop.f32.mrb[0].mxu0
      %2182 = vdwg.mxu0
      %v2185 = vunpack.c.l.b16 %v1877
      %v2186 = vunpack.c.l.b16 %v1878
      %v2187 = vpack.c.b16 %v2186, %v2185
      %v2190 = vsel %vm1186, %v2006, 0
      %2192 = vmatprep.subr.bf16.mxu0 0
      %2193 = vmatpush1.bf16.msra.mxu0 %v2187
      %2194 = vmatprep.subr.bf16.mxu0 0
      %2195 = vmatpush1.bf16.msra.mxu0 0
      %2196 = vmatprep.subr.bf16.mxu0 0
      %2197 = vmatpush1.bf16.msra.mxu0 0
      %2198 = vmatprep.subr.bf16.mxu0 0
      %2199 = vmatpush1.bf16.msra.mxu0 0
      %2200 = vmatprep.subr.bf16.mxu0 0
      %2201 = vmatpush1.bf16.msra.mxu0 0
      %2202 = vmatprep.subr.bf16.mxu0 0
      %2203 = vmatpush1.bf16.msra.mxu0 0
      %2204 = vmatprep.subr.bf16.mxu0 0
      %2205 = vmatpush1.bf16.msra.mxu0 0
      %2206 = vmatprep.subr.bf16.mxu0 0
      %2207 = vmatpush1.bf16.msra.mxu0 0
      %2208 = vmatprep.subr.bf16.mxu0 0
      %2209 = vmatpush1.bf16.msra.mxu0 0
      %2210 = vmatprep.subr.bf16.mxu0 0
      %2211 = vmatpush1.bf16.msra.mxu0 0
      %2212 = vmatprep.subr.bf16.mxu0 0
      %2213 = vmatpush1.bf16.msra.mxu0 0
      %2214 = vmatprep.subr.bf16.mxu0 0
      %2215 = vmatpush1.bf16.msra.mxu0 0
      %2216 = vmatprep.subr.bf16.mxu0 0
      %2217 = vmatpush1.bf16.msra.mxu0 0
      %2218 = vmatprep.subr.bf16.mxu0 0
      %2219 = vmatpush1.bf16.msra.mxu0 0
      %2220 = vmatprep.subr.bf16.mxu0 0
      %2221 = vmatpush1.bf16.msra.mxu0 0
      %2222 = vmatprep.subr.bf16.mxu0 0
      %2223 = vmatpush1.bf16.msra.mxu0 0
      %2224 = vmatprep.mubr.bf16.mxu0 0
      %2225 = vmatmul.mubr.bf16.gmra.mrb[0].mxu0 %v2190
      %v2226 = vpop.f32.mrb[0].mxu0
      %v2227 = vadd.f32 %v2177, %v2226
      %v2228 = vpop.f32.mrb[0].mxu0
      %v2229 = vpop.f32.mrb[0].mxu0
      %v2230 = vadd.f32 %v2180, %v2229
      %v2231 = vpop.f32.mrb[0].mxu0
      %2232 = vdwg.mxu0
      %s2233 = scalar_lea.vmem %s906, 1
      %v2234 = vld [vmem:[%s2233] sm:$0x1]
      %v2236 = vlaneseq
      %v2237 = vshrl.u32 %v2236, 7
      %v2238 = vsub.s32 0, %v2237
      %v2239 = vrot.slane %v2234, %v2238
      %v2241 = vadd.f32 %v2227, %v2239
      %v2242 = vadd.f32 %v2230, %v2239
      %v2243 = vadd.f32 %v2241, %v1804
      %v2244 = vadd.f32 %v2242, %v1805
      %s2245 = scalar_lea.vmem %s910, 1
      %v2246 = vld [vmem:[%s2245] sm:$0x1]
      %s2247 = scalar_lea.vmem %s914, 1
      %v2248 = vld [vmem:[%s2247] sm:$0x1]
      %v2249 = vsel %vm1064, %v2243, 0.0
      %2250 = vadd.xlane.f32.xlu0 %v2249
      %v2251 = vpop.xlane.xlu0 %2250
      %v2252 = vsel %vm1064, %v2244, 0.0
      %2253 = vadd.xlane.f32.xlu0 %v2252
      %v2254 = vpop.xlane.xlu0 %2253
      %v2255 = vmul.f32 %v2251, %v1071
      %v2256 = vmul.f32 %v2254, %v1071
      %v2257 = vsub.f32 %v2243, %v2255
      %v2258 = vsub.f32 %v2244, %v2256
      %v2259 = vmul.f32 %v2257, %v2257
      %v2260 = vmul.f32 %v2258, %v2258
      %v2261 = vsel %vm1064, %v2259, 0.0
      %2262 = vadd.xlane.f32.xlu0 %v2261
      %v2263 = vpop.xlane.xlu0 %2262
      %v2264 = vsel %vm1064, %v2260, 0.0
      %2265 = vadd.xlane.f32.xlu0 %v2264
      %v2266 = vpop.xlane.xlu0 %2265
      %v2267 = vmul.f32 %v2263, %v1071
      %v2268 = vmul.f32 %v2266, %v1071
      %v2269 = vadd.f32 %v2267, 1e-12
      %v2270 = vadd.f32 %v2268, 1e-12
      %v2271 = vrsqrt.pop %v2269
      %v2272 = vrsqrt.pop %v2270
      %v2273 = vmul.f32 %v2257, %v2271
      %v2274 = vmul.f32 %v2258, %v2272
      %v2276 = vlaneseq
      %v2277 = vshrl.u32 %v2276, 7
      %v2278 = vsub.s32 0, %v2277
      %v2279 = vrot.slane %v2246, %v2278
      %v2281 = vmul.f32 %v2273, %v2279
      %v2282 = vmul.f32 %v2274, %v2279
      %v2284 = vlaneseq
      %v2285 = vshrl.u32 %v2284, 7
      %v2286 = vsub.s32 0, %v2285
      %v2287 = vrot.slane %v2248, %v2286
      %v2289 = vadd.f32 %v2281, %v2287
      %v2290 = vadd.f32 %v2282, %v2287
      %v2291 = vpack.c.bf16 %v2290, %v2289
      %s2292 = scalar_lea.vmem %s919, 16
      %v2293 = vld [vmem:[%s2292] sm:$0xf]
      %v2294 = vld [vmem:[%s2292 + $0x4] sm:$0xf]
      %v2295 = vld [vmem:[%s2292 + $0x8] sm:$0xf]
      %v2296 = vld [vmem:[%s2292 + $0xc] sm:$0xf]
      %s2297 = scalar_lea.vmem %s923, 1
      %v2298 = vld [vmem:[%s2297] sm:$0x1]
      %v2300 = vlaneseq
      %v2301 = vshrl.u32 %v2300, 7
      %v2302 = vsub.s32 0, %v2301
      %v2303 = vrot.slane %v2298, %v2302
      %v2309 = vunpack.c.l.b16 %v2293
      %v2310 = vunpack.c.l.b16 %v2294
      %v2311 = vunpack.c.l.b16 %v2295
      %v2312 = vunpack.c.l.b16 %v2296
      %v2313 = vpack.c.b16 %v2310, %v2309
      %v2314 = vpack.c.b16 %v2312, %v2311
      %v2318 = vsel %vm1064, %v2291, 0
      %2320 = vmatprep.subr.bf16.mxu0 0
      %2321 = vmatpush1.bf16.msra.mxu0 %v2313
      %2322 = vmatprep.subr.bf16.mxu0 0
      %2323 = vmatpush1.bf16.msra.mxu0 %v2314
      %2324 = vmatprep.subr.bf16.mxu0 0
      %2325 = vmatpush1.bf16.msra.mxu0 0
      %2326 = vmatprep.subr.bf16.mxu0 0
      %2327 = vmatpush1.bf16.msra.mxu0 0
      %2328 = vmatprep.subr.bf16.mxu0 0
      %2329 = vmatpush1.bf16.msra.mxu0 0
      %2330 = vmatprep.subr.bf16.mxu0 0
      %2331 = vmatpush1.bf16.msra.mxu0 0
      %2332 = vmatprep.subr.bf16.mxu0 0
      %2333 = vmatpush1.bf16.msra.mxu0 0
      %2334 = vmatprep.subr.bf16.mxu0 0
      %2335 = vmatpush1.bf16.msra.mxu0 0
      %2336 = vmatprep.subr.bf16.mxu0 0
      %2337 = vmatpush1.bf16.msra.mxu0 0
      %2338 = vmatprep.subr.bf16.mxu0 0
      %2339 = vmatpush1.bf16.msra.mxu0 0
      %2340 = vmatprep.subr.bf16.mxu0 0
      %2341 = vmatpush1.bf16.msra.mxu0 0
      %2342 = vmatprep.subr.bf16.mxu0 0
      %2343 = vmatpush1.bf16.msra.mxu0 0
      %2344 = vmatprep.subr.bf16.mxu0 0
      %2345 = vmatpush1.bf16.msra.mxu0 0
      %2346 = vmatprep.subr.bf16.mxu0 0
      %2347 = vmatpush1.bf16.msra.mxu0 0
      %2348 = vmatprep.subr.bf16.mxu0 0
      %2349 = vmatpush1.bf16.msra.mxu0 0
      %2350 = vmatprep.subr.bf16.mxu0 0
      %2351 = vmatpush1.bf16.msra.mxu0 0
      %2352 = vmatprep.mubr.bf16.mxu0 0
      %2353 = vmatmul.mubr.bf16.gmra.mrb[0].mxu0 %v2318
      %v2354 = vpop.f32.mrb[0].mxu0
      %v2355 = vadd.f32 %v2303, %v2354
      %v2356 = vpop.f32.mrb[0].mxu0
      %v2357 = vpop.f32.mrb[0].mxu0
      %v2358 = vadd.f32 %v2303, %v2357
      %v2359 = vpop.f32.mrb[0].mxu0
      %2360 = vdwg.mxu0
      %v2361 = vmul.f32 %v2355, 0.5
      %v2362 = vmul.f32 %v2358, 0.5
      %v2363 = vmul.f32 %v2355, 0.044715
      %v2364 = vmul.f32 %v2358, 0.044715
      %v2365 = vmul.f32 %v2363, %v2355
      %v2366 = vmul.f32 %v2364, %v2358
      %v2367 = vmul.f32 %v2365, %v2355
      %v2368 = vmul.f32 %v2366, %v2358
      %v2369 = vadd.f32 %v2355, %v2367
      %v2370 = vadd.f32 %v2358, %v2368
      %v2371 = vmul.f32 %v2369, 0.7978846
      %v2372 = vmul.f32 %v2370, 0.7978846
      %v2373 = vtanh.pop %v2371
      %v2374 = vtanh.pop %v2372
      %v2375 = vadd.f32 %v2373, 1.0
      %v2376 = vadd.f32 %v2374, 1.0
      %v2377 = vmul.f32 %v2361, %v2375
      %v2378 = vmul.f32 %v2362, %v2376
      %v2379 = vpack.c.bf16 %v2378, %v2377
      %s2380 = scalar_lea.vmem %s928, 32
      %v2381 = vld [vmem:[%s2380] sm:$0xf]
      %v2382 = vld [vmem:[%s2380 + $0x4] sm:$0xf]
      %v2383 = vld [vmem:[%s2380 + $0x8] sm:$0xf]
      %v2384 = vld [vmem:[%s2380 + $0xc] sm:$0xf]
      %v2385 = vld [vmem:[%s2380 + $0x10] sm:$0xf]
      %v2386 = vld [vmem:[%s2380 + $0x14] sm:$0xf]
      %v2387 = vld [vmem:[%s2380 + $0x18] sm:$0xf]
      %v2388 = vld [vmem:[%s2380 + $0x1c] sm:$0xf]
      %s2389 = scalar_lea.vmem %s932, 1
      %v2390 = vld [vmem:[%s2389] sm:$0x1]
      %v2392 = vlaneseq
      %v2393 = vshrl.u32 %v2392, 7
      %v2394 = vsub.s32 0, %v2393
      %v2395 = vrot.slane %v2390, %v2394
      %v2405 = vunpack.c.l.b16 %v2381
      %v2406 = vunpack.c.l.b16 %v2382
      %v2407 = vunpack.c.l.b16 %v2383
      %v2408 = vunpack.c.l.b16 %v2384
      %v2409 = vunpack.c.l.b16 %v2385
      %v2410 = vunpack.c.l.b16 %v2386
      %v2411 = vunpack.c.l.b16 %v2387
      %v2412 = vunpack.c.l.b16 %v2388
      %v2413 = vpack.c.b16 %v2406, %v2405
      %v2414 = vpack.c.b16 %v2408, %v2407
      %v2415 = vpack.c.b16 %v2410, %v2409
      %v2416 = vpack.c.b16 %v2412, %v2411
      %v2422 = vsel %vm980, %v2379, 0
      %2424 = vmatprep.subr.bf16.mxu0 0
      %2425 = vmatpush1.bf16.msra.mxu0 %v2413
      %2426 = vmatprep.subr.bf16.mxu0 0
      %2427 = vmatpush1.bf16.msra.mxu0 %v2414
      %2428 = vmatprep.subr.bf16.mxu0 0
      %2429 = vmatpush1.bf16.msra.mxu0 %v2415
      %2430 = vmatprep.subr.bf16.mxu0 0
      %2431 = vmatpush1.bf16.msra.mxu0 %v2416
      %2432 = vmatprep.subr.bf16.mxu0 0
      %2433 = vmatpush1.bf16.msra.mxu0 0
      %2434 = vmatprep.subr.bf16.mxu0 0
      %2435 = vmatpush1.bf16.msra.mxu0 0
      %2436 = vmatprep.subr.bf16.mxu0 0
      %2437 = vmatpush1.bf16.msra.mxu0 0
      %2438 = vmatprep.subr.bf16.mxu0 0
      %2439 = vmatpush1.bf16.msra.mxu0 0
      %2440 = vmatprep.subr.bf16.mxu0 0
      %2441 = vmatpush1.bf16.msra.mxu0 0
      %2442 = vmatprep.subr.bf16.mxu0 0
      %2443 = vmatpush1.bf16.msra.mxu0 0
      %2444 = vmatprep.subr.bf16.mxu0 0
      %2445 = vmatpush1.bf16.msra.mxu0 0
      %2446 = vmatprep.subr.bf16.mxu0 0
      %2447 = vmatpush1.bf16.msra.mxu0 0
      %2448 = vmatprep.subr.bf16.mxu0 0
      %2449 = vmatpush1.bf16.msra.mxu0 0
      %2450 = vmatprep.subr.bf16.mxu0 0
      %2451 = vmatpush1.bf16.msra.mxu0 0
      %2452 = vmatprep.subr.bf16.mxu0 0
      %2453 = vmatpush1.bf16.msra.mxu0 0
      %2454 = vmatprep.subr.bf16.mxu0 0
      %2455 = vmatpush1.bf16.msra.mxu0 0
      %2456 = vmatprep.mubr.bf16.mxu0 0
      %2457 = vmatmul.mubr.bf16.gmra.mrb[0].mxu0 %v2422
      %v2458 = vpop.f32.mrb[0].mxu0
      %v2459 = vadd.f32 %v2395, %v2458
      %v2460 = vpop.f32.mrb[0].mxu0
      %v2461 = vpop.f32.mrb[0].mxu0
      %v2462 = vadd.f32 %v2395, %v2461
      %v2463 = vpop.f32.mrb[0].mxu0
      %2464 = vdwg.mxu0
      %v2465 = vadd.f32 %v2459, %v2289
      %v2466 = vadd.f32 %v2462, %v2290
      %s2467 = scalar_lea.vmem %s936, 1
      %v2468 = vld [vmem:[%s2467] sm:$0x1]
      %s2469 = scalar_lea.vmem %s940, 1
      %v2470 = vld [vmem:[%s2469] sm:$0x1]
      %v2471 = vsel %vm1064, %v2465, 0.0
      %2472 = vadd.xlane.f32.xlu0 %v2471
      %v2473 = vpop.xlane.xlu0 %2472
      %v2474 = vsel %vm1064, %v2466, 0.0
      %2475 = vadd.xlane.f32.xlu0 %v2474
      %v2476 = vpop.xlane.xlu0 %2475
      %v2477 = vmul.f32 %v2473, %v1071
      %v2478 = vmul.f32 %v2476, %v1071
      %v2479 = vsub.f32 %v2465, %v2477
      %v2480 = vsub.f32 %v2466, %v2478
      %v2481 = vmul.f32 %v2479, %v2479
      %v2482 = vmul.f32 %v2480, %v2480
      %v2483 = vsel %vm1064, %v2481, 0.0
      %2484 = vadd.xlane.f32.xlu0 %v2483
      %v2485 = vpop.xlane.xlu0 %2484
      %v2486 = vsel %vm1064, %v2482, 0.0
      %2487 = vadd.xlane.f32.xlu0 %v2486
      %v2488 = vpop.xlane.xlu0 %2487
      %v2489 = vmul.f32 %v2485, %v1071
      %v2490 = vmul.f32 %v2488, %v1071
      %v2491 = vadd.f32 %v2489, 1e-12
      %v2492 = vadd.f32 %v2490, 1e-12
      %v2493 = vrsqrt.pop %v2491
      %v2494 = vrsqrt.pop %v2492
      %v2495 = vmul.f32 %v2479, %v2493
      %v2496 = vmul.f32 %v2480, %v2494
      %v2498 = vlaneseq
      %v2499 = vshrl.u32 %v2498, 7
      %v2500 = vsub.s32 0, %v2499
      %v2501 = vrot.slane %v2468, %v2500
      %v2503 = vmul.f32 %v2495, %v2501
      %v2504 = vmul.f32 %v2496, %v2501
      %v2506 = vlaneseq
      %v2507 = vshrl.u32 %v2506, 7
      %v2508 = vsub.s32 0, %v2507
      %v2509 = vrot.slane %v2470, %v2508
      %v2511 = vadd.f32 %v2503, %v2509
      %v2512 = vadd.f32 %v2504, %v2509
      %v2513 = vld [vmem:[%s1] sm:$0x3]
      %v2514 = vlaneseq
      %v2515 = vshrl.u32 %v2514, 7
      %v2516 = vmul.u32 %v2515, 8
      %v2517 = vadd.s32 %v2513, %v2516
      %2518 = vset.pattern.permute.xlu0 0
      %2519 = vperm.xlu0 %2518, %v2517
      %v2520 = vpop.permute.xlu0 %2519
      %vm2521 = vcmp.eq.s32.totalorder %v957, %v2520
      %v2522 = vsel %vm2521, 1, 0
      %v2523 = vcvt.s32.f32 %v2522
      %v2525 = vsel %vm1186, %v2523, 0
      %2527 = vmatprep.subr.mxu0 0.0
      %2528 = vmatpush1.msra.mxu0 %v2511
      %2529 = vmatprep.subr.mxu0 0.0
      %2530 = vmatpush1.msra.mxu0 %v2512
      %2531 = vmatprep.subr.mxu0 0.0
      %2532 = vmatpush1.msra.mxu0 0.0
      %2533 = vmatprep.subr.mxu0 0.0
      %2534 = vmatpush1.msra.mxu0 0.0
      %2535 = vmatprep.subr.mxu0 0.0
      %2536 = vmatpush1.msra.mxu0 0.0
      %2537 = vmatprep.subr.mxu0 0.0
      %2538 = vmatpush1.msra.mxu0 0.0
      %2539 = vmatprep.subr.mxu0 0.0
      %2540 = vmatpush1.msra.mxu0 0.0
      %2541 = vmatprep.subr.mxu0 0.0
      %2542 = vmatpush1.msra.mxu0 0.0
      %2543 = vmatprep.subr.mxu0 0.0
      %2544 = vmatpush1.msra.mxu0 0.0
      %2545 = vmatprep.subr.mxu0 0.0
      %2546 = vmatpush1.msra.mxu0 0.0
      %2547 = vmatprep.subr.mxu0 0.0
      %2548 = vmatpush1.msra.mxu0 0.0
      %2549 = vmatprep.subr.mxu0 0.0
      %2550 = vmatpush1.msra.mxu0 0.0
      %2551 = vmatprep.subr.mxu0 0.0
      %2552 = vmatpush1.msra.mxu0 0.0
      %2553 = vmatprep.subr.mxu0 0.0
      %2554 = vmatpush1.msra.mxu0 0.0
      %2555 = vmatprep.subr.mxu0 0.0
      %2556 = vmatpush1.msra.mxu0 0.0
      %2557 = vmatprep.subr.mxu0 0.0
      %2558 = vmatpush1.msra.mxu0 0.0
      %2559 = vmatprep.subr.mxu0 0.0
      %2560 = vmatpush1.msra.mxu0 0.0
      %2561 = vmatprep.subr.mxu0 0.0
      %2562 = vmatpush1.msra.mxu0 0.0
      %2563 = vmatprep.subr.mxu0 0.0
      %2564 = vmatpush1.msra.mxu0 0.0
      %2565 = vmatprep.subr.mxu0 0.0
      %2566 = vmatpush1.msra.mxu0 0.0
      %2567 = vmatprep.subr.mxu0 0.0
      %2568 = vmatpush1.msra.mxu0 0.0
      %2569 = vmatprep.subr.mxu0 0.0
      %2570 = vmatpush1.msra.mxu0 0.0
      %2571 = vmatprep.subr.mxu0 0.0
      %2572 = vmatpush1.msra.mxu0 0.0
      %2573 = vmatprep.subr.mxu0 0.0
      %2574 = vmatpush1.msra.mxu0 0.0
      %2575 = vmatprep.subr.mxu0 0.0
      %2576 = vmatpush1.msra.mxu0 0.0
      %2577 = vmatprep.subr.mxu0 0.0
      %2578 = vmatpush1.msra.mxu0 0.0
      %2579 = vmatprep.subr.mxu0 0.0
      %2580 = vmatpush1.msra.mxu0 0.0
      %2581 = vmatprep.subr.mxu0 0.0
      %2582 = vmatpush1.msra.mxu0 0.0
      %2583 = vmatprep.subr.mxu0 0.0
      %2584 = vmatpush1.msra.mxu0 0.0
      %2585 = vmatprep.subr.mxu0 0.0
      %2586 = vmatpush1.msra.mxu0 0.0
      %2587 = vmatprep.subr.mxu0 0.0
      %2588 = vmatpush1.msra.mxu0 0.0
      %2589 = vmatprep.subr.mxu0 0.0
      %2590 = vmatpush1.msra.mxu0 0.0
      %2591 = vmatprep.mubr.f32.mxu0 0.0
      %2592 = vmatmul.mubr.f32.gmra.mrb[0].mxu0 %v2525
      %v2593 = vpop.f32.mrb[0].mxu0
      %v2594 = vadd.f32 0.0, %v2593
      %v2595 = vpop.f32.mrb[0].mxu0
      %2596 = vdwg.mxu0
      %v2597 = vpack.c.bf16 %v2594, %v2594
      %v2598 = vld [vmem:[%s945] sm:$0xf]
      %v2599 = vld [vmem:[%s945 + $0x4] sm:$0xf]
      %v2600 = vld [vmem:[%s945 + $0x8] sm:$0xf]
      %v2601 = vld [vmem:[%s945 + $0xc] sm:$0xf]
      %v2602 = vld [vmem:[%s948] sm:$0x1]
      %v2604 = vlaneseq
      %v2605 = vshrl.u32 %v2604, 7
      %v2606 = vsub.s32 0, %v2605
      %v2607 = vrot.slane %v2602, %v2606
      %v2613 = vunpack.c.l.b16 %v2598
      %v2614 = vunpack.c.l.b16 %v2599
      %v2615 = vunpack.c.l.b16 %v2600
      %v2616 = vunpack.c.l.b16 %v2601
      %v2617 = vpack.c.b16 %v2614, %v2613
      %v2618 = vpack.c.b16 %v2616, %v2615
      %v2622 = vsel %vm1064, %v2597, 0
      %2624 = vmatprep.subr.bf16.mxu0 0
      %2625 = vmatpush1.bf16.msra.mxu0 %v2617
      %2626 = vmatprep.subr.bf16.mxu0 0
      %2627 = vmatpush1.bf16.msra.mxu0 %v2618
      %2628 = vmatprep.subr.bf16.mxu0 0
      %2629 = vmatpush1.bf16.msra.mxu0 0
      %2630 = vmatprep.subr.bf16.mxu0 0
      %2631 = vmatpush1.bf16.msra.mxu0 0
      %2632 = vmatprep.subr.bf16.mxu0 0
      %2633 = vmatpush1.bf16.msra.mxu0 0
      %2634 = vmatprep.subr.bf16.mxu0 0
      %2635 = vmatpush1.bf16.msra.mxu0 0
      %2636 = vmatprep.subr.bf16.mxu0 0
      %2637 = vmatpush1.bf16.msra.mxu0 0
      %2638 = vmatprep.subr.bf16.mxu0 0
      %2639 = vmatpush1.bf16.msra.mxu0 0
      %2640 = vmatprep.subr.bf16.mxu0 0
      %2641 = vmatpush1.bf16.msra.mxu0 0
      %2642 = vmatprep.subr.bf16.mxu0 0
      %2643 = vmatpush1.bf16.msra.mxu0 0
      %2644 = vmatprep.subr.bf16.mxu0 0
      %2645 = vmatpush1.bf16.msra.mxu0 0
      %2646 = vmatprep.subr.bf16.mxu0 0
      %2647 = vmatpush1.bf16.msra.mxu0 0
      %2648 = vmatprep.subr.bf16.mxu0 0
      %2649 = vmatpush1.bf16.msra.mxu0 0
      %2650 = vmatprep.subr.bf16.mxu0 0
      %2651 = vmatpush1.bf16.msra.mxu0 0
      %2652 = vmatprep.subr.bf16.mxu0 0
      %2653 = vmatpush1.bf16.msra.mxu0 0
      %2654 = vmatprep.subr.bf16.mxu0 0
      %2655 = vmatpush1.bf16.msra.mxu0 0
      %2656 = vmatprep.mubr.bf16.mxu0 0
      %2657 = vmatmul.mubr.bf16.gmra.mrb[0].mxu0 %v2622
      %v2658 = vpop.f32.mrb[0].mxu0
      %v2659 = vadd.f32 %v2607, %v2658
      %v2660 = vpop.f32.mrb[0].mxu0
      %v2661 = vpop.f32.mrb[0].mxu0
      %v2662 = vpop.f32.mrb[0].mxu0
      %2663 = vdwg.mxu0
      %2664 = vst [vmem:[%s952] sm:$0x3] %v2659
      %p2665 = scmp.lt.s32.totalorder %s32, 1
      %s2666 = scalar_select %p2665, %s32, 1
      %s2667 = smul.addr %s2666, 2
      %s2668 = scalar_lea.vmem %s21, %s2667
      // Predicated region
      $region105: #{bert_combined_forward.1} parent=103 // pred_check
        %p2669 = pneg %p581
      $region106: #{bert_combined_forward.1} parent=103 // pred_check_branch
        %2671 = sbr.rel (%p2669) target = $region108
      $region107: #{bert_combined_forward.1} parent=103 // pred_region
        _
      $region108: #{bert_combined_forward.1} parent=103 // pred_fallthru
        _
    $region104: #{bert_combined_forward.1} parent=5 // pred_fallthru
      _
    %p2672 = scmp.le.s32.totalorder 2, %s27
    // Predicated region
    $region109: #{bert_combined_forward.1} parent=5 // pred_check
      %p2673 = pneg %p2672
    $region110: #{bert_combined_forward.1} parent=5 // pred_check_branch
      %2675 = sbr.rel (%p2673) target = $region112
    $region111: #{bert_combined_forward.1} parent=5 // pred_region
      %s2676 = ssub.s32 %s27, 2
      // Predicated region
      $region113: #{bert_combined_forward.1} parent=111 // pred_check
        %p2677 = pneg %p587
      $region114: #{bert_combined_forward.1} parent=111 // pred_check_branch
        %2679 = sbr.rel (%p2677) target = $region116
      $region115: #{bert_combined_forward.1} parent=111 // pred_region
        %p2680 = scmp.lt.s32.totalorder %s33, 1
        %s2681 = scalar_select %p2680, %s33, 1
        %s2682 = smul.addr %s2681, 2
        %s2683 = scalar_lea.vmem %s21, %s2682
      $region116: #{bert_combined_forward.1} parent=111 // pred_fallthru
        _
    $region112: #{bert_combined_forward.1} parent=5 // pred_fallthru
      _
  $region6: #{bert_combined_forward.1} parent=0 // loop_footer
    %s31 = sadd.s32 1, %s27
  $region7: #{bert_combined_forward.1} parent=0 // loop_footer_branch
    %26 = sbr.rel target = $region3
  $region8: #{bert_combined_forward.1} parent=0 // loop_exit
    _

</llo_original>
